<compile_context>
chip_gen: v7x
topology: tpu7x:2x2x1
jax: 0.10.0
libtpu: 0.0.40
codegen_flags: <defaults>
</compile_context>

<pallas_src>
import functools

import jax
import jax.numpy as jnp
from jax.experimental import pallas as pl
from jax.experimental.pallas import tpu as pltpu


# ---------------------------------------------------------------------------
# Pallas kernel: rows-of-pixels 3x3 "same" conv + bias + ReLU
# ---------------------------------------------------------------------------
def _conv3x3_rows_kernel(x_ref, w_ref, s_ref, b_ref, o_ref):
    # x_ref: (R, K)      R = G*H image rows, K = W*Cin   (lane-dense)
    # w_ref: (3, K, M)   per-dy banded weights (dx taps + channel mix folded)
    # s_ref: (2, R, R)   row-shift matrices for dy=0 / dy=2 (zero across images)
    # b_ref: (1, M)      bias tiled over W
    # o_ref: (R, M)      lane-dense output rows
    x = x_ref[...]

    # dy = 1 (center tap); accumulator starts from the broadcast bias.
    acc = jnp.dot(x, w_ref[1], preferred_element_type=jnp.float32) + b_ref[...]

    # dy = 0: output row r reads input row r-1 (zero at the first row of every
    # image) -- realized as a banded shift matmul (pure MXU, no row slicing).
    x_up = jnp.dot(s_ref[0], x, preferred_element_type=jnp.float32)
    acc = acc + jnp.dot(x_up, w_ref[0], preferred_element_type=jnp.float32)

    # dy = 2: output row r reads input row r+1.
    x_dn = jnp.dot(s_ref[1], x, preferred_element_type=jnp.float32)
    acc = acc + jnp.dot(x_dn, w_ref[2], preferred_element_type=jnp.float32)

    o_ref[...] = jnp.maximum(acc, 0.0).astype(o_ref.dtype)  # fused ReLU


# ---------------------------------------------------------------------------
# Wrapper-side parameter / tiling helpers (static shapes, run under jit)
# ---------------------------------------------------------------------------
def _build_row_weights(w_hwio, bias, W):
    """Fold the 3 dx taps and channel mix into (3, W*Cin, W*Cout) matrices."""
    _, _, Ci, Co = w_hwio.shape
    wx = jnp.arange(W)[:, None]          # input column
    wo = jnp.arange(W)[None, :]          # output column
    dx = wx - wo + 1                     # kernel-column tap, valid in [0, 2]
    valid = (dx >= 0) & (dx <= 2)
    dxc = jnp.clip(dx, 0, 2)
    m = w_hwio[:, dxc]                                   # (3, wx, wo, ci, co)
    m = jnp.where(valid[None, :, :, None, None], m, 0.0)
    m = jnp.transpose(m, (0, 1, 3, 2, 4))                # (3, wx, ci, wo, co)
    w_rows = m.reshape(3, W * Ci, W * Co)
    b_rows = jnp.tile(bias.astype(jnp.float32), (W,)).reshape(1, W * Co)
    return w_rows.astype(jnp.float32), b_rows


def _build_shift_matrices(R, H):
    """(2, R, R) banded matrices: pick the row above / below within one image."""
    r = jnp.arange(R)
    row, col = r[:, None], r[None, :]
    same_img = (row // H) == (col // H)
    s_up = ((col == row - 1) & same_img).astype(jnp.float32)   # x[row-1]
    s_dn = ((col == row + 1) & same_img).astype(jnp.float32)   # x[row+1]
    return jnp.stack([s_up, s_dn])


def _choose_group(num_images, rows_per_image, target_rows=256):
    """Images per grid step: big matmul rows, divisor of B, >=2 grid steps."""
    g = min(num_images, max(1, target_rows // max(rows_per_image, 1)))
    while num_images % g:
        g -= 1
    # Prefer >=2 grid steps so both v7x TensorCores get work.
    if num_images // g < 2 and num_images > 1:
        g2 = max(1, g // 2)
        while num_images % g2:
            g2 -= 1
        g = g2
    # (8,128) rule: block sublane count must be a multiple of 8 or the full dim.
    if (g * rows_per_image) % 8 != 0:
        g = num_images
    return g


def _conv3x3_relu_rows(x_rows, w_rows, s_mats, b_rows, *, rows_per_block):
    BH, K = x_rows.shape
    M = w_rows.shape[2]
    R = rows_per_block
    grid = BH // R
    # Advisory cost hint for the XLA scheduler around the custom call.
    flops = 2 * BH * K * M * 3 + 2 * 2 * BH * R * K
    bytes_accessed = 4 * (x_rows.size + w_rows.size + s_mats.size
                          + b_rows.size + BH * M)
    return pl.pallas_call(
        _conv3x3_rows_kernel,
        out_shape=jax.ShapeDtypeStruct((BH, M), jnp.float32),
        grid=(grid,),
        in_specs=[
            pl.BlockSpec((R, K), lambda i: (i, 0)),
            pl.BlockSpec((3, K, M), lambda i: (0, 0, 0)),   # resident weights
            pl.BlockSpec((2, R, R), lambda i: (0, 0, 0)),   # resident shifts
            pl.BlockSpec((1, M), lambda i: (0, 0)),         # resident bias
        ],
        out_specs=pl.BlockSpec((R, M), lambda i: (i, 0)),
        compiler_params=pltpu.CompilerParams(
            dimension_semantics=("parallel",)
        ),
        cost_estimate=pl.CostEstimate(
            flops=flops, transcendentals=0, bytes_accessed=bytes_accessed
        ),
    )(x_rows, w_rows, s_mats, b_rows)


def conv3x3_relu_nhwc(x_nhwc, w_hwio, bias):
    """3x3 'same' conv + bias + ReLU on NHWC input, via the rows kernel."""
    B, H, W, Ci = x_nhwc.shape
    Co = w_hwio.shape[3]
    G = _choose_group(B, H)
    R = G * H
    w_rows, b_rows = _build_row_weights(w_hwio, bias, W)
    s_mats = _build_shift_matrices(R, H)
    y = _conv3x3_relu_rows(
        x_nhwc.reshape(B * H, W * Ci), w_rows, s_mats, b_rows, rows_per_block=R
    )
    return y.reshape(B, H, W, Co)


# ---------------------------------------------------------------------------
# AltFilter forward
# ---------------------------------------------------------------------------
@functools.partial(jax.jit, static_argnames=("an",))
def alt_filter(x, w_spa, b_spa, w_ang, b_ang, *, an):
    """Mirror of AltFilter.forward. x: (N*an*an, 64, h, w) NCHW float32."""
    B, c, h, w = x.shape
    N = B // (an * an)

    # NCHW -> NHWC once at the module boundary; stay channel-last throughout.
    out = jnp.transpose(x, (0, 2, 3, 1))                       # (B, h, w, c)

    # --- spatial conv + relu ---
    out = conv3x3_relu_nhwc(out, w_spa, b_spa)                 # (B, h, w, c)

    # --- reshuffle: spatial plane -> angular plane (torch transpose(1,3)) ---
    out = out.reshape(N, an, an, h, w, c)
    out = jnp.transpose(out, (0, 3, 4, 1, 2, 5))               # (N, h, w, an, an, c)
    out = out.reshape(N * h * w, an, an, c)

    # --- angular conv + relu ---
    out = conv3x3_relu_nhwc(out, w_ang, b_ang)                 # (N*h*w, an, an, c)

    # --- reshuffle back: angular plane -> spatial plane ---
    out = out.reshape(N, h, w, an, an, c)
    out = jnp.transpose(out, (0, 3, 4, 1, 2, 5))               # (N, an, an, h, w, c)
    out = out.reshape(N * an * an, h, w, c)

    # back to NCHW at the module boundary
    return jnp.transpose(out, (0, 3, 1, 2))


# ---------------------------------------------------------------------------
# Pure-JAX reference (lax conv) with identical semantics for validation
# ---------------------------------------------------------------------------
def _reference_forward(x, w_spa, b_spa, w_ang, b_ang, an):
    def conv_relu(x_nchw, w_hwio, b):
        y = jax.lax.conv_general_dilated(
            x_nchw, w_hwio, (1, 1), "SAME",
            dimension_numbers=("NCHW", "HWIO", "NCHW"),
        ) + b[None, :, None, None]
        return jnp.maximum(y, 0.0)

    B, c, h, w = x.shape
    N = B // (an * an)
    out = conv_relu(x, w_spa, b_spa)
    out = out.reshape(N, an * an, c, h * w)
    out = jnp.transpose(out, (0, 3, 2, 1))
    out = out.reshape(N * h * w, c, an, an)
    out = conv_relu(out, w_ang, b_ang)
    out = out.reshape(N, h * w, c, an * an)
    out = jnp.transpose(out, (0, 3, 2, 1))
    out = out.reshape(N * an * an, c, h, w)
    return out


if __name__ == "__main__":
    an = 2          # angular resolution
    N = 2           # number of light fields
    c = 64          # fixed by the module (Conv2d 64->64)
    h = w = 8       # spatial resolution
    B = N * an * an

    key = jax.random.PRNGKey(0)
    kx, kws, kbs, kwa, kba = jax.random.split(key, 5)

    x = jax.random.normal(kx, (B, c, h, w), dtype=jnp.float32)
    # Deterministic synthetic parameters (HWIO layout).
    w_spa = jax.random.normal(kws, (3, 3, c, c), dtype=jnp.float32) * 0.05
    b_spa = jax.random.normal(kbs, (c,), dtype=jnp.float32) * 0.05
    w_ang = jax.random.normal(kwa, (3, 3, c, c), dtype=jnp.float32) * 0.05
    b_ang = jax.random.normal(kba, (c,), dtype=jnp.float32) * 0.05

    out = alt_filter(x, w_spa, b_spa, w_ang, b_ang, an=an)
    out = jax.block_until_ready(out)

    ref = _reference_forward(x, w_spa, b_spa, w_ang, b_ang, an)
    assert out.shape == (B, c, h, w), out.shape
    assert jnp.allclose(out, ref, atol=1e-3, rtol=1e-3), "mismatch vs reference"

    print("KERNEL_OK")
</pallas_src>

<mosaic_0001>
module attributes {stable_mosaic.version = 11 : i64} {
  func.func @_conv3x3_rows_kernel(%arg0: i32, %arg1: memref<32x512xf32, #tpu.memory_space<vmem>>, %arg2: memref<3x512x512xf32, #tpu.memory_space<vmem>>, %arg3: memref<2x32x32xf32, #tpu.memory_space<vmem>>, %arg4: memref<1x512xf32, #tpu.memory_space<vmem>>, %arg5: memref<32x512xf32, #tpu.memory_space<vmem>>) attributes {dimension_semantics = [#tpu.dimension_semantics<parallel>], iteration_bounds = array<i64: 2>, scalar_prefetch = 0 : i64, scratch_operands = 0 : i64, tpu.core_type = #tpu.core_type<tc>, window_params = [{transform_indices = @transform_0, window_bounds = array<i64: 32, 512>}, {pipeline_mode = #tpu.pipeline_mode<synchronous>, transform_indices = @transform_1, window_bounds = array<i64: 3, 512, 512>}, {pipeline_mode = #tpu.pipeline_mode<synchronous>, transform_indices = @transform_2, window_bounds = array<i64: 2, 32, 32>}, {pipeline_mode = #tpu.pipeline_mode<synchronous>, transform_indices = @transform_3, window_bounds = array<i64: 1, 512>}, {transform_indices = @transform_4, window_bounds = array<i64: 32, 512>}]} {
    %c0 = arith.constant 0 : index
    %c0_0 = arith.constant 0 : index
    %0 = vector.load %arg1[%c0, %c0_0] : memref<32x512xf32, #tpu.memory_space<vmem>>, vector<32x512xf32>
    %c1 = arith.constant 1 : index
    %c0_1 = arith.constant 0 : index
    %c0_2 = arith.constant 0 : index
    %1 = vector.load %arg2[%c1, %c0_1, %c0_2] : memref<3x512x512xf32, #tpu.memory_space<vmem>>, vector<1x512x512xf32>
    %2 = vector.shape_cast %1 : vector<1x512x512xf32> to vector<512x512xf32>
    %cst = arith.constant dense<0.000000e+00> : vector<32x512xf32>
    %3 = tpu.matmul %0, %2, %cst {dimension_numbers = #tpu.dot_dimension_numbers<[1], [0], [0], [1], [0, 0, 1, 1], [], []>} : vector<32x512xf32>, vector<512x512xf32>, vector<32x512xf32> -> vector<32x512xf32>
    %c0_3 = arith.constant 0 : index
    %c0_4 = arith.constant 0 : index
    %4 = vector.load %arg4[%c0_3, %c0_4] : memref<1x512xf32, #tpu.memory_space<vmem>>, vector<1x512xf32>
    %5 = vector.broadcast %4 : vector<1x512xf32> to vector<32x512xf32>
    %6 = arith.addf %3, %5 : vector<32x512xf32>
    %c0_5 = arith.constant 0 : index
    %c0_6 = arith.constant 0 : index
    %c0_7 = arith.constant 0 : index
    %7 = vector.load %arg3[%c0_5, %c0_6, %c0_7] : memref<2x32x32xf32, #tpu.memory_space<vmem>>, vector<1x32x32xf32>
    %8 = vector.shape_cast %7 : vector<1x32x32xf32> to vector<32x32xf32>
    %cst_8 = arith.constant dense<0.000000e+00> : vector<32x512xf32>
    %9 = tpu.matmul %8, %0, %cst_8 {dimension_numbers = #tpu.dot_dimension_numbers<[1], [0], [0], [1], [0, 0, 1, 1], [], []>} : vector<32x32xf32>, vector<32x512xf32>, vector<32x512xf32> -> vector<32x512xf32>
    %c0_9 = arith.constant 0 : index
    %c0_10 = arith.constant 0 : index
    %c0_11 = arith.constant 0 : index
    %10 = vector.load %arg2[%c0_9, %c0_10, %c0_11] : memref<3x512x512xf32, #tpu.memory_space<vmem>>, vector<1x512x512xf32>
    %11 = vector.shape_cast %10 : vector<1x512x512xf32> to vector<512x512xf32>
    %cst_12 = arith.constant dense<0.000000e+00> : vector<32x512xf32>
    %12 = tpu.matmul %9, %11, %cst_12 {dimension_numbers = #tpu.dot_dimension_numbers<[1], [0], [0], [1], [0, 0, 1, 1], [], []>} : vector<32x512xf32>, vector<512x512xf32>, vector<32x512xf32> -> vector<32x512xf32>
    %13 = arith.addf %6, %12 : vector<32x512xf32>
    %c1_13 = arith.constant 1 : index
    %c0_14 = arith.constant 0 : index
    %c0_15 = arith.constant 0 : index
    %14 = vector.load %arg3[%c1_13, %c0_14, %c0_15] : memref<2x32x32xf32, #tpu.memory_space<vmem>>, vector<1x32x32xf32>
    %15 = vector.shape_cast %14 : vector<1x32x32xf32> to vector<32x32xf32>
    %cst_16 = arith.constant dense<0.000000e+00> : vector<32x512xf32>
    %16 = tpu.matmul %15, %0, %cst_16 {dimension_numbers = #tpu.dot_dimension_numbers<[1], [0], [0], [1], [0, 0, 1, 1], [], []>} : vector<32x32xf32>, vector<32x512xf32>, vector<32x512xf32> -> vector<32x512xf32>
    %c2 = arith.constant 2 : index
    %c0_17 = arith.constant 0 : index
    %c0_18 = arith.constant 0 : index
    %17 = vector.load %arg2[%c2, %c0_17, %c0_18] : memref<3x512x512xf32, #tpu.memory_space<vmem>>, vector<1x512x512xf32>
    %18 = vector.shape_cast %17 : vector<1x512x512xf32> to vector<512x512xf32>
    %cst_19 = arith.constant dense<0.000000e+00> : vector<32x512xf32>
    %19 = tpu.matmul %16, %18, %cst_19 {dimension_numbers = #tpu.dot_dimension_numbers<[1], [0], [0], [1], [0, 0, 1, 1], [], []>} : vector<32x512xf32>, vector<512x512xf32>, vector<32x512xf32> -> vector<32x512xf32>
    %20 = arith.addf %13, %19 : vector<32x512xf32>
    %cst_20 = arith.constant 0.000000e+00 : f32
    %21 = vector.broadcast %cst_20 : f32 to vector<32x512xf32>
    %22 = arith.maximumf %20, %21 : vector<32x512xf32>
    %c0_21 = arith.constant 0 : index
    %c0_22 = arith.constant 0 : index
    %23 = vector.load %arg5[%c0_21, %c0_22] : memref<32x512xf32, #tpu.memory_space<vmem>>, vector<32x512xf32>
    tpu.vector_store %arg5[%c0_21, %c0_22], %22 {strides = array<i32>} : memref<32x512xf32, #tpu.memory_space<vmem>>, vector<32x512xf32>,
    return
  }
  func.func @transform_0(%arg0: i32) -> (i32, i32) {
    %c0_i32 = arith.constant 0 : i32
    %c0_i32_0 = arith.constant 0 : i32
    return %arg0, %c0_i32 : i32, i32
  }
  func.func @transform_1(%arg0: i32) -> (i32, i32, i32) {
    %c0_i32 = arith.constant 0 : i32
    %c0_i32_0 = arith.constant 0 : i32
    %c0_i32_1 = arith.constant 0 : i32
    %c0_i32_2 = arith.constant 0 : i32
    return %c0_i32, %c0_i32_0, %c0_i32_1 : i32, i32, i32
  }
  func.func @transform_2(%arg0: i32) -> (i32, i32, i32) {
    %c0_i32 = arith.constant 0 : i32
    %c0_i32_0 = arith.constant 0 : i32
    %c0_i32_1 = arith.constant 0 : i32
    %c0_i32_2 = arith.constant 0 : i32
    return %c0_i32, %c0_i32_0, %c0_i32_1 : i32, i32, i32
  }
  func.func @transform_3(%arg0: i32) -> (i32, i32) {
    %c0_i32 = arith.constant 0 : i32
    %c0_i32_0 = arith.constant 0 : i32
    %c0_i32_1 = arith.constant 0 : i32
    return %c0_i32, %c0_i32_0 : i32, i32
  }
  func.func @transform_4(%arg0: i32) -> (i32, i32) {
    %c0_i32 = arith.constant 0 : i32
    %c0_i32_0 = arith.constant 0 : i32
    return %arg0, %c0_i32 : i32, i32
  }
}

module attributes {stable_mosaic.version = 11 : i64} {
  func.func @_conv3x3_rows_kernel(%arg0: i32, %arg1: memref<128x128xf32, #tpu.memory_space<vmem>>, %arg2: memref<3x128x128xf32, #tpu.memory_space<vmem>>, %arg3: memref<2x128x128xf32, #tpu.memory_space<vmem>>, %arg4: memref<1x128xf32, #tpu.memory_space<vmem>>, %arg5: memref<128x128xf32, #tpu.memory_space<vmem>>) attributes {dimension_semantics = [#tpu.dimension_semantics<parallel>], iteration_bounds = array<i64: 2>, scalar_prefetch = 0 : i64, scratch_operands = 0 : i64, tpu.core_type = #tpu.core_type<tc>, window_params = [{transform_indices = @transform_0, window_bounds = array<i64: 128, 128>}, {pipeline_mode = #tpu.pipeline_mode<synchronous>, transform_indices = @transform_1, window_bounds = array<i64: 3, 128, 128>}, {pipeline_mode = #tpu.pipeline_mode<synchronous>, transform_indices = @transform_2, window_bounds = array<i64: 2, 128, 128>}, {pipeline_mode = #tpu.pipeline_mode<synchronous>, transform_indices = @transform_3, window_bounds = array<i64: 1, 128>}, {transform_indices = @transform_4, window_bounds = array<i64: 128, 128>}]} {
    %c0 = arith.constant 0 : index
    %c0_0 = arith.constant 0 : index
    %0 = vector.load %arg1[%c0, %c0_0] : memref<128x128xf32, #tpu.memory_space<vmem>>, vector<128x128xf32>
    %c1 = arith.constant 1 : index
    %c0_1 = arith.constant 0 : index
    %c0_2 = arith.constant 0 : index
    %1 = vector.load %arg2[%c1, %c0_1, %c0_2] : memref<3x128x128xf32, #tpu.memory_space<vmem>>, vector<1x128x128xf32>
    %2 = vector.shape_cast %1 : vector<1x128x128xf32> to vector<128x128xf32>
    %cst = arith.constant dense<0.000000e+00> : vector<128x128xf32>
    %3 = tpu.matmul %0, %2, %cst {dimension_numbers = #tpu.dot_dimension_numbers<[1], [0], [0], [1], [0, 0, 1, 1], [], []>} : vector<128x128xf32>, vector<128x128xf32>, vector<128x128xf32> -> vector<128x128xf32>
    %c0_3 = arith.constant 0 : index
    %c0_4 = arith.constant 0 : index
    %4 = vector.load %arg4[%c0_3, %c0_4] : memref<1x128xf32, #tpu.memory_space<vmem>>, vector<1x128xf32>
    %5 = vector.broadcast %4 : vector<1x128xf32> to vector<128x128xf32>
    %6 = arith.addf %3, %5 : vector<128x128xf32>
    %c0_5 = arith.constant 0 : index
    %c0_6 = arith.constant 0 : index
    %c0_7 = arith.constant 0 : index
    %7 = vector.load %arg3[%c0_5, %c0_6, %c0_7] : memref<2x128x128xf32, #tpu.memory_space<vmem>>, vector<1x128x128xf32>
    %8 = vector.shape_cast %7 : vector<1x128x128xf32> to vector<128x128xf32>
    %cst_8 = arith.constant dense<0.000000e+00> : vector<128x128xf32>
    %9 = tpu.matmul %8, %0, %cst_8 {dimension_numbers = #tpu.dot_dimension_numbers<[1], [0], [0], [1], [0, 0, 1, 1], [], []>} : vector<128x128xf32>, vector<128x128xf32>, vector<128x128xf32> -> vector<128x128xf32>
    %c0_9 = arith.constant 0 : index
    %c0_10 = arith.constant 0 : index
    %c0_11 = arith.constant 0 : index
    %10 = vector.load %arg2[%c0_9, %c0_10, %c0_11] : memref<3x128x128xf32, #tpu.memory_space<vmem>>, vector<1x128x128xf32>
    %11 = vector.shape_cast %10 : vector<1x128x128xf32> to vector<128x128xf32>
    %cst_12 = arith.constant dense<0.000000e+00> : vector<128x128xf32>
    %12 = tpu.matmul %9, %11, %cst_12 {dimension_numbers = #tpu.dot_dimension_numbers<[1], [0], [0], [1], [0, 0, 1, 1], [], []>} : vector<128x128xf32>, vector<128x128xf32>, vector<128x128xf32> -> vector<128x128xf32>
    %13 = arith.addf %6, %12 : vector<128x128xf32>
    %c1_13 = arith.constant 1 : index
    %c0_14 = arith.constant 0 : index
    %c0_15 = arith.constant 0 : index
    %14 = vector.load %arg3[%c1_13, %c0_14, %c0_15] : memref<2x128x128xf32, #tpu.memory_space<vmem>>, vector<1x128x128xf32>
    %15 = vector.shape_cast %14 : vector<1x128x128xf32> to vector<128x128xf32>
    %cst_16 = arith.constant dense<0.000000e+00> : vector<128x128xf32>
    %16 = tpu.matmul %15, %0, %cst_16 {dimension_numbers = #tpu.dot_dimension_numbers<[1], [0], [0], [1], [0, 0, 1, 1], [], []>} : vector<128x128xf32>, vector<128x128xf32>, vector<128x128xf32> -> vector<128x128xf32>
    %c2 = arith.constant 2 : index
    %c0_17 = arith.constant 0 : index
    %c0_18 = arith.constant 0 : index
    %17 = vector.load %arg2[%c2, %c0_17, %c0_18] : memref<3x128x128xf32, #tpu.memory_space<vmem>>, vector<1x128x128xf32>
    %18 = vector.shape_cast %17 : vector<1x128x128xf32> to vector<128x128xf32>
    %cst_19 = arith.constant dense<0.000000e+00> : vector<128x128xf32>
    %19 = tpu.matmul %16, %18, %cst_19 {dimension_numbers = #tpu.dot_dimension_numbers<[1], [0], [0], [1], [0, 0, 1, 1], [], []>} : vector<128x128xf32>, vector<128x128xf32>, vector<128x128xf32> -> vector<128x128xf32>
    %20 = arith.addf %13, %19 : vector<128x128xf32>
    %cst_20 = arith.constant 0.000000e+00 : f32
    %21 = vector.broadcast %cst_20 : f32 to vector<128x128xf32>
    %22 = arith.maximumf %20, %21 : vector<128x128xf32>
    %c0_21 = arith.constant 0 : index
    %c0_22 = arith.constant 0 : index
    %23 = vector.load %arg5[%c0_21, %c0_22] : memref<128x128xf32, #tpu.memory_space<vmem>>, vector<128x128xf32>
    tpu.vector_store %arg5[%c0_21, %c0_22], %22 {strides = array<i32>} : memref<128x128xf32, #tpu.memory_space<vmem>>, vector<128x128xf32>,
    return
  }
  func.func @transform_0(%arg0: i32) -> (i32, i32) {
    %c0_i32 = arith.constant 0 : i32
    %c0_i32_0 = arith.constant 0 : i32
    return %arg0, %c0_i32 : i32, i32
  }
  func.func @transform_1(%arg0: i32) -> (i32, i32, i32) {
    %c0_i32 = arith.constant 0 : i32
    %c0_i32_0 = arith.constant 0 : i32
    %c0_i32_1 = arith.constant 0 : i32
    %c0_i32_2 = arith.constant 0 : i32
    return %c0_i32, %c0_i32_0, %c0_i32_1 : i32, i32, i32
  }
  func.func @transform_2(%arg0: i32) -> (i32, i32, i32) {
    %c0_i32 = arith.constant 0 : i32
    %c0_i32_0 = arith.constant 0 : i32
    %c0_i32_1 = arith.constant 0 : i32
    %c0_i32_2 = arith.constant 0 : i32
    return %c0_i32, %c0_i32_0, %c0_i32_1 : i32, i32, i32
  }
  func.func @transform_3(%arg0: i32) -> (i32, i32) {
    %c0_i32 = arith.constant 0 : i32
    %c0_i32_0 = arith.constant 0 : i32
    %c0_i32_1 = arith.constant 0 : i32
    return %c0_i32, %c0_i32_0 : i32, i32
  }
  func.func @transform_4(%arg0: i32) -> (i32, i32) {
    %c0_i32 = arith.constant 0 : i32
    %c0_i32_0 = arith.constant 0 : i32
    return %arg0, %c0_i32 : i32, i32
  }
}

</mosaic_0001>

<llo_original>
// kernel: tile.13
$region0: #{tile.13}
  #allocation0 [shape = 's32[1]{0}', space=sflag, size = 0x4, scoped, tag = 'scoped memory for tile.13']
  %s0 = inlined_call_operand.vmem [shape: f32[64], index: 0, kind: input, shape index: {}]
  %s1 = inlined_call_operand.vmem [shape: f32[8,64], index: 1, kind: output, shape index: {}]
  // Predicated region
  $region2: #{tile.13} parent=0 // pred_check
    _
  $region3: #{tile.13} parent=0 // pred_check_branch
    %3 = sbr.rel (0) target = $region5
  $region4: #{tile.13} parent=0 // pred_region
    _
  $region5: #{tile.13} parent=0 // pred_fallthru
    _
  %v4 = vld [vmem:[%s0] ss:$0 sm:$0xff]
  %5 = vst [vmem:[%s1] sm:$0xff] %v4

// kernel: tile.14
$region0: #{tile.14}
  %s0 = inlined_call_operand.vmem [shape: f32[8,64], index: 0, kind: input, shape index: {}]
  %s1 = inlined_call_operand.vmem [shape: f32[1,512], index: 1, kind: output, shape index: {}]
  $region1: #{tile.14} parent=0
    #allocation0 [shape = 'u8[16384]{0}', space=vmem, size = 0x4000, scoped, tag = 'scoped mem for output reshape']
    %v2 = vld [vmem:[%s0] ss:$2 sm:$0xf]
    %vm3 = vcmask 523264
    %4 = vst.msk [vmem:[#allocation0] ss:$8 sm:$0xf] %vm3, %v2
    %s5 = scalar_lea.vmem %s0, 1
    %v6 = vld [vmem:[%s5] ss:$2 sm:$0xf]
    %7 = vrot.lane.b32.xlu0 %v6, 64
    %v8 = vpop.permute.xlu0 %7
    %vm9 = vcmask 1048064
    %10 = vst.msk [vmem:[#allocation0] ss:$8 sm:$0xf] %vm9, %v8
    %s12 = sshllo.u32 0, 1
    %v14 = vld [vmem:[#allocation0] sm:%s12]
    %s15 = sshllo.u32 0, 1
    %16 = vst [vmem:[%s1] sm:%s15] %v14
    %s17 = scalar_lea.vmem [#allocation0], 8
    %v18 = vld [vmem:[%s17] sm:%s12]
    %s19 = sshllo.u32 0, 1
    %s20 = scalar_lea.vmem %s1, 1
    %21 = vst [vmem:[%s20] sm:%s19] %v18
    %s22 = scalar_lea.vmem [#allocation0], 16
    %v23 = vld [vmem:[%s22] sm:%s12]
    %s24 = sshllo.u32 0, 1
    %s25 = smul.addr 1, 2
    %s26 = scalar_lea.vmem %s1, %s25
    %27 = vst [vmem:[%s26] sm:%s24] %v23
    %s28 = scalar_lea.vmem [#allocation0], 24
    %v29 = vld [vmem:[%s28] sm:%s12]
    %s30 = sshllo.u32 0, 1
    %s31 = smul.addr 1, 3
    %s32 = scalar_lea.vmem %s1, %s31
    %33 = vst [vmem:[%s32] sm:%s30] %v29

// kernel: alt_filter.2
$region0: #{alt_filter.2}
  #allocation0 [shape = 'u32[]', space=smem, size = 0x4, offset = 0x4, fixed_abs, tag = 'smem constant byte address 0x4 - core index']
  #allocation1 [shape = 'u32[144,128]{1,0:T(1,128)}', space=vmem, size = 0x12000, scoped, tag = 'internal scratch']
  %s0 = inlined_call_operand.vmem [shape: f32[64,512], index: 0, kind: input, shape index: {}]
  %s1 = inlined_call_operand.vmem [shape: f32[3,512,512], index: 1, kind: input, shape index: {}]
  %s2 = inlined_call_operand.vmem [shape: f32[2,32,32], index: 2, kind: input, shape index: {}]
  %s3 = inlined_call_operand.vmem [shape: f32[1,512], index: 3, kind: input, shape index: {}]
  %s4 = inlined_call_operand.vmem [shape: f32[64,512], index: 4, kind: output, shape index: {}]
  %s5 = sld [smem:[#allocation0]]
  $region49: #{alt_filter.2} parent=0
    _
  %s7 = ssub.s32 1, %s5
  %s8 = scalar_select 0, %s7, %s5
  loop: start=0, step=1, limit=4
  $region2: #{alt_filter.2} parent=0 // loop_pre_header
    _
  $region3: #{alt_filter.2} parent=0 // loop_header
    %s10 = sphi 0, %s14
    %p11 = scmp.ge.s32.totalorder %s10, 4
    %s20 = sphi 0, %s22
    %s23 = sphi 0, %s20
    %s24 = sphi 0, %s23
    %s40 = sphi 0, %s24
    %s44 = sphi 0, %s44
    %s46 = sphi 0, %s44
    %s47 = sphi 0, %s46
    %s61 = sphi 0, %s47
    %s65 = sphi 0, %s65
    %s67 = sphi 0, %s65
    %s68 = sphi 0, %s67
    %s82 = sphi 0, %s68
    %s86 = sphi 0, %s86
    %s88 = sphi 0, %s86
    %s89 = sphi 0, %s88
    %s103 = sphi 0, %s89
    %s109 = sphi 0, %s111
    %s112 = sphi 0, %s109
    %s113 = sphi 0, %s112
    %s129 = sphi 0, %s113
  $region4: #{alt_filter.2} parent=0 // loop_header_branch
    %13 = sbr.rel (%p11) target = $region8
  $region5: #{alt_filter.2} parent=0 // loop_body
    %s15 = ssub.s32 %s10, 1
    %s16 = ssub.s32 %s10, 2
    %s17 = sadd.s32 %s10, 1
    %s18 = ssub.s32 %s10, %s17
    %p19 = scmp.eq.s32.totalorder %s18, 0
    %s21 = sadd.s32 %s20, 1
    %s22 = scalar_select %p19, %s20, %s21
    %p25 = pneg %p19
    %p26 = scmp.eq.s32.totalorder %s10, 1
    %p27 = por %p25, %p26
    %p28 = scmp.ne.s32.totalorder %s20, %s23
    %p29 = scmp.eq.s32.totalorder %s10, 0
    %p30 = por %p28, %p29
    %p31 = scmp.ne.s32.totalorder %s20, %s23
    %p32 = scmp.eq.s32.totalorder %s15, 1
    %p33 = por %p31, %p32
    %p34 = scmp.ne.s32.totalorder %s23, %s24
    %p35 = scmp.eq.s32.totalorder %s15, 0
    %p36 = por %p34, %p35
    %p37 = scmp.ne.s32.totalorder %s23, %s24
    %p38 = scmp.eq.s32.totalorder %s16, 1
    %p39 = por %p37, %p38
    %p41 = scmp.ne.s32.totalorder %s24, %s40
    %p42 = scmp.eq.s32.totalorder %s16, 0
    %p43 = por %p41, %p42
    %s45 = sadd.s32 %s44, 1
    %p48 = scmp.eq.s32.totalorder %s10, 1
    %p49 = scmp.ne.s32.totalorder %s44, %s46
    %p50 = scmp.eq.s32.totalorder %s10, 0
    %p51 = por %p49, %p50
    %p52 = scmp.ne.s32.totalorder %s44, %s46
    %p53 = scmp.eq.s32.totalorder %s15, 1
    %p54 = por %p52, %p53
    %p55 = scmp.ne.s32.totalorder %s46, %s47
    %p56 = scmp.eq.s32.totalorder %s15, 0
    %p57 = por %p55, %p56
    %p58 = scmp.ne.s32.totalorder %s46, %s47
    %p59 = scmp.eq.s32.totalorder %s16, 1
    %p60 = por %p58, %p59
    %p62 = scmp.ne.s32.totalorder %s47, %s61
    %p63 = scmp.eq.s32.totalorder %s16, 0
    %p64 = por %p62, %p63
    %s66 = sadd.s32 %s65, 1
    %p69 = scmp.eq.s32.totalorder %s10, 1
    %p70 = scmp.ne.s32.totalorder %s65, %s67
    %p71 = scmp.eq.s32.totalorder %s10, 0
    %p72 = por %p70, %p71
    %p73 = scmp.ne.s32.totalorder %s65, %s67
    %p74 = scmp.eq.s32.totalorder %s15, 1
    %p75 = por %p73, %p74
    %p76 = scmp.ne.s32.totalorder %s67, %s68
    %p77 = scmp.eq.s32.totalorder %s15, 0
    %p78 = por %p76, %p77
    %p79 = scmp.ne.s32.totalorder %s67, %s68
    %p80 = scmp.eq.s32.totalorder %s16, 1
    %p81 = por %p79, %p80
    %p83 = scmp.ne.s32.totalorder %s68, %s82
    %p84 = scmp.eq.s32.totalorder %s16, 0
    %p85 = por %p83, %p84
    %s87 = sadd.s32 %s86, 1
    %p90 = scmp.eq.s32.totalorder %s10, 1
    %p91 = scmp.ne.s32.totalorder %s86, %s88
    %p92 = scmp.eq.s32.totalorder %s10, 0
    %p93 = por %p91, %p92
    %p94 = scmp.ne.s32.totalorder %s86, %s88
    %p95 = scmp.eq.s32.totalorder %s15, 1
    %p96 = por %p94, %p95
    %p97 = scmp.ne.s32.totalorder %s88, %s89
    %p98 = scmp.eq.s32.totalorder %s15, 0
    %p99 = por %p97, %p98
    %p100 = scmp.ne.s32.totalorder %s88, %s89
    %p101 = scmp.eq.s32.totalorder %s16, 1
    %p102 = por %p100, %p101
    %p104 = scmp.ne.s32.totalorder %s89, %s103
    %p105 = scmp.eq.s32.totalorder %s16, 0
    %p106 = por %p104, %p105
    %s107 = ssub.s32 %s10, %s17
    %p108 = scmp.eq.s32.totalorder %s107, 0
    %s110 = sadd.s32 %s109, 1
    %s111 = scalar_select %p108, %s109, %s110
    %p114 = pneg %p108
    %p115 = scmp.eq.s32.totalorder %s10, 1
    %p116 = por %p114, %p115
    %p117 = scmp.ne.s32.totalorder %s109, %s112
    %p118 = scmp.eq.s32.totalorder %s10, 0
    %p119 = por %p117, %p118
    %p120 = scmp.ne.s32.totalorder %s109, %s112
    %p121 = scmp.eq.s32.totalorder %s15, 1
    %p122 = por %p120, %p121
    %p123 = scmp.ne.s32.totalorder %s112, %s113
    %p124 = scmp.eq.s32.totalorder %s15, 0
    %p125 = por %p123, %p124
    %p126 = scmp.ne.s32.totalorder %s112, %s113
    %p127 = scmp.eq.s32.totalorder %s16, 1
    %p128 = por %p126, %p127
    %p130 = scmp.ne.s32.totalorder %s113, %s129
    %p131 = scmp.eq.s32.totalorder %s16, 0
    %p132 = por %p130, %p131
    %p133 = scmp.le.s32.totalorder 1, %s10
    %p134 = scmp.lt.s32.totalorder %s10, 3
    %p135 = pnand %p133, %p134
    %p136 = pneg %p135
    // Predicated region
    $region9: #{alt_filter.2} parent=5 // pred_check
      _
    $region10: #{alt_filter.2} parent=5 // pred_check_branch
      %138 = sbr.rel (%p135) target = $region12
    $region11: #{alt_filter.2} parent=5 // pred_region
      %s139 = ssub.s32 %s10, 1
      // Predicated region
      $region13: #{alt_filter.2} parent=11 // pred_check
        %p140 = pneg %p57
      $region14: #{alt_filter.2} parent=11 // pred_check_branch
        %142 = sbr.rel (%p140) target = $region16
      $region15: #{alt_filter.2} parent=11 // pred_region
        _
      $region16: #{alt_filter.2} parent=11 // pred_fallthru
        _
      // Predicated region
      $region17: #{alt_filter.2} parent=11 // pred_check
        %p143 = pneg %p78
      $region18: #{alt_filter.2} parent=11 // pred_check_branch
        %145 = sbr.rel (%p143) target = $region20
      $region19: #{alt_filter.2} parent=11 // pred_region
        _
      $region20: #{alt_filter.2} parent=11 // pred_fallthru
        _
      // Predicated region
      $region21: #{alt_filter.2} parent=11 // pred_check
        %p146 = pneg %p99
      $region22: #{alt_filter.2} parent=11 // pred_check_branch
        %148 = sbr.rel (%p146) target = $region24
      $region23: #{alt_filter.2} parent=11 // pred_region
        _
      $region24: #{alt_filter.2} parent=11 // pred_fallthru
        _
    $region12: #{alt_filter.2} parent=5 // pred_fallthru
      _
    %p149 = scmp.lt.s32.totalorder %s10, 2
    // Predicated region
    $region25: #{alt_filter.2} parent=5 // pred_check
      %p150 = pneg %p149
    $region26: #{alt_filter.2} parent=5 // pred_check_branch
      %152 = sbr.rel (%p150) target = $region28
    $region27: #{alt_filter.2} parent=5 // pred_region
      // Predicated region
      $region29: #{alt_filter.2} parent=27 // pred_check
        %p153 = pneg %p30
      $region30: #{alt_filter.2} parent=27 // pred_check_branch
        %155 = sbr.rel (%p153) target = $region32
      $region31: #{alt_filter.2} parent=27 // pred_region
        %s156 = smul.u32 4, %s10
        %p157 = scmp.lt.s32.totalorder %s156, 7
        %s158 = scalar_select %p157, %s156, 7
        %s159 = smul.addr %s158, 4
        %s160 = smul.addr %s159, 8
        %s161 = scalar_lea.vmem %s0, %s160
        %s162 = smul.u32 4, %s10
      $region32: #{alt_filter.2} parent=27 // pred_fallthru
        _
    $region28: #{alt_filter.2} parent=5 // pred_fallthru
      _
    %p163 = scmp.le.s32.totalorder 1, %s10
    %p164 = scmp.lt.s32.totalorder %s10, 3
    %p165 = pnand %p163, %p164
    %p166 = pneg %p165
    // Predicated region
    $region33: #{alt_filter.2} parent=5 // pred_check
      _
    $region34: #{alt_filter.2} parent=5 // pred_check_branch
      %168 = sbr.rel (%p165) target = $region36
    $region35: #{alt_filter.2} parent=5 // pred_region
      %s169 = ssub.s32 %s10, 1
      %s170 = smul.u32 4, %s15
      %p171 = scmp.lt.s32.totalorder %s170, 7
      %s172 = scalar_select %p171, %s170, 7
      %s173 = smul.addr %s172, 4
      %s174 = smul.addr %s173, 8
      %s175 = scalar_lea.vmem %s0, %s174
      %p176 = pneg %p36
      %p177 = pneg %p33
      %p178 = pneg %p57
      %p179 = pneg %p54
      %p180 = pneg %p78
      %p181 = pneg %p75
      %p182 = pneg %p99
      %p183 = pneg %p96
      %p184 = pneg %p125
      %p185 = pneg %p122
      %s186 = smul.u32 4, %s15
      %p187 = scmp.lt.s32.totalorder %s186, 7
      %s188 = scalar_select %p187, %s186, 7
      %s189 = smul.addr %s188, 4
      %s190 = smul.addr %s189, 8
      %s191 = scalar_lea.vmem %s4, %s190
      %s192 = smul.u32 4, %s15
      %p193 = scmp.lt.s32.totalorder %s192, 7
      %s194 = scalar_select %p193, %s192, 7
      %s195 = smul.addr %s194, 4
      %s196 = smul.addr %s195, 8
      %s197 = scalar_lea.vmem %s0, %s196
      %s198 = smul.u32 4, %s15
      %s199 = smul.u32 4, %s15
      %p200 = scmp.lt.s32.totalorder %s199, 7
      %s201 = scalar_select %p200, %s199, 7
      %s202 = smul.addr %s201, 4
      %s203 = smul.addr %s202, 8
      %s204 = scalar_lea.vmem %s4, %s203
      %s205 = smul.u32 4, %s15
      %v206 = vld [vmem:[%s197] sm:$0xff]
      %v207 = vld [vmem:[%s197 + $0x8] sm:$0xff]
      %v208 = vld [vmem:[%s197 + $0x10] sm:$0xff]
      %v209 = vld [vmem:[%s197 + $0x18] sm:$0xff]
      %v210 = vld [vmem:[%s197 + $0x20] sm:$0xff]
      %v211 = vld [vmem:[%s197 + $0x28] sm:$0xff]
      %v212 = vld [vmem:[%s197 + $0x30] sm:$0xff]
      %v213 = vld [vmem:[%s197 + $0x38] sm:$0xff]
      %v214 = vld [vmem:[%s197 + $0x40] sm:$0xff]
      %v215 = vld [vmem:[%s197 + $0x48] sm:$0xff]
      %v216 = vld [vmem:[%s197 + $0x50] sm:$0xff]
      %v217 = vld [vmem:[%s197 + $0x58] sm:$0xff]
      %v218 = vld [vmem:[%s197 + $0x60] sm:$0xff]
      %v219 = vld [vmem:[%s197 + $0x68] sm:$0xff]
      %v220 = vld [vmem:[%s197 + $0x70] sm:$0xff]
      %v221 = vld [vmem:[%s197 + $0x78] sm:$0xff]
      %s222 = scalar_lea.vmem %s1, 2048
      %v223 = vld [vmem:[%s222] sm:$0xff]
      %v224 = vld [vmem:[%s222 + $0x8] sm:$0xff]
      %v225 = vld [vmem:[%s222 + $0x10] sm:$0xff]
      %v226 = vld [vmem:[%s222 + $0x18] sm:$0xff]
      %v227 = vld [vmem:[%s222 + $0x20] sm:$0xff]
      %v228 = vld [vmem:[%s222 + $0x28] sm:$0xff]
      %v229 = vld [vmem:[%s222 + $0x30] sm:$0xff]
      %v230 = vld [vmem:[%s222 + $0x38] sm:$0xff]
      %v231 = vld [vmem:[%s222 + $0x40] sm:$0xff]
      %v232 = vld [vmem:[%s222 + $0x48] sm:$0xff]
      %v233 = vld [vmem:[%s222 + $0x50] sm:$0xff]
      %v234 = vld [vmem:[%s222 + $0x58] sm:$0xff]
      %v235 = vld [vmem:[%s222 + $0x60] sm:$0xff]
      %v236 = vld [vmem:[%s222 + $0x68] sm:$0xff]
      %v237 = vld [vmem:[%s222 + $0x70] sm:$0xff]
      %v238 = vld [vmem:[%s222 + $0x78] sm:$0xff]
      %v239 = vld [vmem:[%s222 + $0x80] sm:$0xff]
      %v240 = vld [vmem:[%s222 + $0x88] sm:$0xff]
      %v241 = vld [vmem:[%s222 + $0x90] sm:$0xff]
      %v242 = vld [vmem:[%s222 + $0x98] sm:$0xff]
      %v243 = vld [vmem:[%s222 + $0xa0] sm:$0xff]
      %v244 = vld [vmem:[%s222 + $0xa8] sm:$0xff]
      %v245 = vld [vmem:[%s222 + $0xb0] sm:$0xff]
      %v246 = vld [vmem:[%s222 + $0xb8] sm:$0xff]
      %v247 = vld [vmem:[%s222 + $0xc0] sm:$0xff]
      %v248 = vld [vmem:[%s222 + $0xc8] sm:$0xff]
      %v249 = vld [vmem:[%s222 + $0xd0] sm:$0xff]
      %v250 = vld [vmem:[%s222 + $0xd8] sm:$0xff]
      %v251 = vld [vmem:[%s222 + $0xe0] sm:$0xff]
      %v252 = vld [vmem:[%s222 + $0xe8] sm:$0xff]
      %v253 = vld [vmem:[%s222 + $0xf0] sm:$0xff]
      %v254 = vld [vmem:[%s222 + $0xf8] sm:$0xff]
      %v255 = vld [vmem:[%s222 + $0x100] sm:$0xff]
      %v256 = vld [vmem:[%s222 + $0x108] sm:$0xff]
      %v257 = vld [vmem:[%s222 + $0x110] sm:$0xff]
      %v258 = vld [vmem:[%s222 + $0x118] sm:$0xff]
      %v259 = vld [vmem:[%s222 + $0x120] sm:$0xff]
      %v260 = vld [vmem:[%s222 + $0x128] sm:$0xff]
      %v261 = vld [vmem:[%s222 + $0x130] sm:$0xff]
      %v262 = vld [vmem:[%s222 + $0x138] sm:$0xff]
      %v263 = vld [vmem:[%s222 + $0x140] sm:$0xff]
      %v264 = vld [vmem:[%s222 + $0x148] sm:$0xff]
      %v265 = vld [vmem:[%s222 + $0x150] sm:$0xff]
      %v266 = vld [vmem:[%s222 + $0x158] sm:$0xff]
      %v267 = vld [vmem:[%s222 + $0x160] sm:$0xff]
      %v268 = vld [vmem:[%s222 + $0x168] sm:$0xff]
      %v269 = vld [vmem:[%s222 + $0x170] sm:$0xff]
      %v270 = vld [vmem:[%s222 + $0x178] sm:$0xff]
      %v271 = vld [vmem:[%s222 + $0x180] sm:$0xff]
      %v272 = vld [vmem:[%s222 + $0x188] sm:$0xff]
      %v273 = vld [vmem:[%s222 + $0x190] sm:$0xff]
      %v274 = vld [vmem:[%s222 + $0x198] sm:$0xff]
      %v275 = vld [vmem:[%s222 + $0x1a0] sm:$0xff]
      %v276 = vld [vmem:[%s222 + $0x1a8] sm:$0xff]
      %v277 = vld [vmem:[%s222 + $0x1b0] sm:$0xff]
      %v278 = vld [vmem:[%s222 + $0x1b8] sm:$0xff]
      %v279 = vld [vmem:[%s222 + $0x1c0] sm:$0xff]
      %v280 = vld [vmem:[%s222 + $0x1c8] sm:$0xff]
      %v281 = vld [vmem:[%s222 + $0x1d0] sm:$0xff]
      %v282 = vld [vmem:[%s222 + $0x1d8] sm:$0xff]
      %v283 = vld [vmem:[%s222 + $0x1e0] sm:$0xff]
      %v284 = vld [vmem:[%s222 + $0x1e8] sm:$0xff]
      %v285 = vld [vmem:[%s222 + $0x1f0] sm:$0xff]
      %v286 = vld [vmem:[%s222 + $0x1f8] sm:$0xff]
      %v287 = vld [vmem:[%s222 + $0x200] sm:$0xff]
      %v288 = vld [vmem:[%s222 + $0x208] sm:$0xff]
      %v289 = vld [vmem:[%s222 + $0x210] sm:$0xff]
      %v290 = vld [vmem:[%s222 + $0x218] sm:$0xff]
      %v291 = vld [vmem:[%s222 + $0x220] sm:$0xff]
      %v292 = vld [vmem:[%s222 + $0x228] sm:$0xff]
      %v293 = vld [vmem:[%s222 + $0x230] sm:$0xff]
      %v294 = vld [vmem:[%s222 + $0x238] sm:$0xff]
      %v295 = vld [vmem:[%s222 + $0x240] sm:$0xff]
      %v296 = vld [vmem:[%s222 + $0x248] sm:$0xff]
      %v297 = vld [vmem:[%s222 + $0x250] sm:$0xff]
      %v298 = vld [vmem:[%s222 + $0x258] sm:$0xff]
      %v299 = vld [vmem:[%s222 + $0x260] sm:$0xff]
      %v300 = vld [vmem:[%s222 + $0x268] sm:$0xff]
      %v301 = vld [vmem:[%s222 + $0x270] sm:$0xff]
      %v302 = vld [vmem:[%s222 + $0x278] sm:$0xff]
      %v303 = vld [vmem:[%s222 + $0x280] sm:$0xff]
      %v304 = vld [vmem:[%s222 + $0x288] sm:$0xff]
      %v305 = vld [vmem:[%s222 + $0x290] sm:$0xff]
      %v306 = vld [vmem:[%s222 + $0x298] sm:$0xff]
      %v307 = vld [vmem:[%s222 + $0x2a0] sm:$0xff]
      %v308 = vld [vmem:[%s222 + $0x2a8] sm:$0xff]
      %v309 = vld [vmem:[%s222 + $0x2b0] sm:$0xff]
      %v310 = vld [vmem:[%s222 + $0x2b8] sm:$0xff]
      %v311 = vld [vmem:[%s222 + $0x2c0] sm:$0xff]
      %v312 = vld [vmem:[%s222 + $0x2c8] sm:$0xff]
      %v313 = vld [vmem:[%s222 + $0x2d0] sm:$0xff]
      %v314 = vld [vmem:[%s222 + $0x2d8] sm:$0xff]
      %v315 = vld [vmem:[%s222 + $0x2e0] sm:$0xff]
      %v316 = vld [vmem:[%s222 + $0x2e8] sm:$0xff]
      %v317 = vld [vmem:[%s222 + $0x2f0] sm:$0xff]
      %v318 = vld [vmem:[%s222 + $0x2f8] sm:$0xff]
      %v319 = vld [vmem:[%s222 + $0x300] sm:$0xff]
      %v320 = vld [vmem:[%s222 + $0x308] sm:$0xff]
      %v321 = vld [vmem:[%s222 + $0x310] sm:$0xff]
      %v322 = vld [vmem:[%s222 + $0x318] sm:$0xff]
      %v323 = vld [vmem:[%s222 + $0x320] sm:$0xff]
      %v324 = vld [vmem:[%s222 + $0x328] sm:$0xff]
      %v325 = vld [vmem:[%s222 + $0x330] sm:$0xff]
      %v326 = vld [vmem:[%s222 + $0x338] sm:$0xff]
      %v327 = vld [vmem:[%s222 + $0x340] sm:$0xff]
      %v328 = vld [vmem:[%s222 + $0x348] sm:$0xff]
      %v329 = vld [vmem:[%s222 + $0x350] sm:$0xff]
      %v330 = vld [vmem:[%s222 + $0x358] sm:$0xff]
      %v331 = vld [vmem:[%s222 + $0x360] sm:$0xff]
      %v332 = vld [vmem:[%s222 + $0x368] sm:$0xff]
      %v333 = vld [vmem:[%s222 + $0x370] sm:$0xff]
      %v334 = vld [vmem:[%s222 + $0x378] sm:$0xff]
      %v335 = vld [vmem:[%s222 + $0x380] sm:$0xff]
      %v336 = vld [vmem:[%s222 + $0x388] sm:$0xff]
      %v337 = vld [vmem:[%s222 + $0x390] sm:$0xff]
      %v338 = vld [vmem:[%s222 + $0x398] sm:$0xff]
      %v339 = vld [vmem:[%s222 + $0x3a0] sm:$0xff]
      %v340 = vld [vmem:[%s222 + $0x3a8] sm:$0xff]
      %v341 = vld [vmem:[%s222 + $0x3b0] sm:$0xff]
      %v342 = vld [vmem:[%s222 + $0x3b8] sm:$0xff]
      %v343 = vld [vmem:[%s222 + $0x3c0] sm:$0xff]
      %v344 = vld [vmem:[%s222 + $0x3c8] sm:$0xff]
      %v345 = vld [vmem:[%s222 + $0x3d0] sm:$0xff]
      %v346 = vld [vmem:[%s222 + $0x3d8] sm:$0xff]
      %v347 = vld [vmem:[%s222 + $0x3e0] sm:$0xff]
      %v348 = vld [vmem:[%s222 + $0x3e8] sm:$0xff]
      %v349 = vld [vmem:[%s222 + $0x3f0] sm:$0xff]
      %v350 = vld [vmem:[%s222 + $0x3f8] sm:$0xff]
      %v351 = vld [vmem:[%s222 + $0x400] sm:$0xff]
      %v352 = vld [vmem:[%s222 + $0x408] sm:$0xff]
      %v353 = vld [vmem:[%s222 + $0x410] sm:$0xff]
      %v354 = vld [vmem:[%s222 + $0x418] sm:$0xff]
      %v355 = vld [vmem:[%s222 + $0x420] sm:$0xff]
      %v356 = vld [vmem:[%s222 + $0x428] sm:$0xff]
      %v357 = vld [vmem:[%s222 + $0x430] sm:$0xff]
      %v358 = vld [vmem:[%s222 + $0x438] sm:$0xff]
      %v359 = vld [vmem:[%s222 + $0x440] sm:$0xff]
      %v360 = vld [vmem:[%s222 + $0x448] sm:$0xff]
      %v361 = vld [vmem:[%s222 + $0x450] sm:$0xff]
      %v362 = vld [vmem:[%s222 + $0x458] sm:$0xff]
      %v363 = vld [vmem:[%s222 + $0x460] sm:$0xff]
      %v364 = vld [vmem:[%s222 + $0x468] sm:$0xff]
      %v365 = vld [vmem:[%s222 + $0x470] sm:$0xff]
      %v366 = vld [vmem:[%s222 + $0x478] sm:$0xff]
      %v367 = vld [vmem:[%s222 + $0x480] sm:$0xff]
      %v368 = vld [vmem:[%s222 + $0x488] sm:$0xff]
      %v369 = vld [vmem:[%s222 + $0x490] sm:$0xff]
      %v370 = vld [vmem:[%s222 + $0x498] sm:$0xff]
      %v371 = vld [vmem:[%s222 + $0x4a0] sm:$0xff]
      %v372 = vld [vmem:[%s222 + $0x4a8] sm:$0xff]
      %v373 = vld [vmem:[%s222 + $0x4b0] sm:$0xff]
      %v374 = vld [vmem:[%s222 + $0x4b8] sm:$0xff]
      %v375 = vld [vmem:[%s222 + $0x4c0] sm:$0xff]
      %v376 = vld [vmem:[%s222 + $0x4c8] sm:$0xff]
      %v377 = vld [vmem:[%s222 + $0x4d0] sm:$0xff]
      %v378 = vld [vmem:[%s222 + $0x4d8] sm:$0xff]
      %v379 = vld [vmem:[%s222 + $0x4e0] sm:$0xff]
      %v380 = vld [vmem:[%s222 + $0x4e8] sm:$0xff]
      %v381 = vld [vmem:[%s222 + $0x4f0] sm:$0xff]
      %v382 = vld [vmem:[%s222 + $0x4f8] sm:$0xff]
      %v383 = vld [vmem:[%s222 + $0x500] sm:$0xff]
      %v384 = vld [vmem:[%s222 + $0x508] sm:$0xff]
      %v385 = vld [vmem:[%s222 + $0x510] sm:$0xff]
      %v386 = vld [vmem:[%s222 + $0x518] sm:$0xff]
      %v387 = vld [vmem:[%s222 + $0x520] sm:$0xff]
      %v388 = vld [vmem:[%s222 + $0x528] sm:$0xff]
      %v389 = vld [vmem:[%s222 + $0x530] sm:$0xff]
      %v390 = vld [vmem:[%s222 + $0x538] sm:$0xff]
      %v391 = vld [vmem:[%s222 + $0x540] sm:$0xff]
      %v392 = vld [vmem:[%s222 + $0x548] sm:$0xff]
      %v393 = vld [vmem:[%s222 + $0x550] sm:$0xff]
      %v394 = vld [vmem:[%s222 + $0x558] sm:$0xff]
      %v395 = vld [vmem:[%s222 + $0x560] sm:$0xff]
      %v396 = vld [vmem:[%s222 + $0x568] sm:$0xff]
      %v397 = vld [vmem:[%s222 + $0x570] sm:$0xff]
      %v398 = vld [vmem:[%s222 + $0x578] sm:$0xff]
      %v399 = vld [vmem:[%s222 + $0x580] sm:$0xff]
      %v400 = vld [vmem:[%s222 + $0x588] sm:$0xff]
      %v401 = vld [vmem:[%s222 + $0x590] sm:$0xff]
      %v402 = vld [vmem:[%s222 + $0x598] sm:$0xff]
      %v403 = vld [vmem:[%s222 + $0x5a0] sm:$0xff]
      %v404 = vld [vmem:[%s222 + $0x5a8] sm:$0xff]
      %v405 = vld [vmem:[%s222 + $0x5b0] sm:$0xff]
      %v406 = vld [vmem:[%s222 + $0x5b8] sm:$0xff]
      %v407 = vld [vmem:[%s222 + $0x5c0] sm:$0xff]
      %v408 = vld [vmem:[%s222 + $0x5c8] sm:$0xff]
      %v409 = vld [vmem:[%s222 + $0x5d0] sm:$0xff]
      %v410 = vld [vmem:[%s222 + $0x5d8] sm:$0xff]
      %v411 = vld [vmem:[%s222 + $0x5e0] sm:$0xff]
      %v412 = vld [vmem:[%s222 + $0x5e8] sm:$0xff]
      %v413 = vld [vmem:[%s222 + $0x5f0] sm:$0xff]
      %v414 = vld [vmem:[%s222 + $0x5f8] sm:$0xff]
      %v415 = vld [vmem:[%s222 + $0x600] sm:$0xff]
      %v416 = vld [vmem:[%s222 + $0x608] sm:$0xff]
      %v417 = vld [vmem:[%s222 + $0x610] sm:$0xff]
      %v418 = vld [vmem:[%s222 + $0x618] sm:$0xff]
      %v419 = vld [vmem:[%s222 + $0x620] sm:$0xff]
      %v420 = vld [vmem:[%s222 + $0x628] sm:$0xff]
      %v421 = vld [vmem:[%s222 + $0x630] sm:$0xff]
      %v422 = vld [vmem:[%s222 + $0x638] sm:$0xff]
      %v423 = vld [vmem:[%s222 + $0x640] sm:$0xff]
      %v424 = vld [vmem:[%s222 + $0x648] sm:$0xff]
      %v425 = vld [vmem:[%s222 + $0x650] sm:$0xff]
      %v426 = vld [vmem:[%s222 + $0x658] sm:$0xff]
      %v427 = vld [vmem:[%s222 + $0x660] sm:$0xff]
      %v428 = vld [vmem:[%s222 + $0x668] sm:$0xff]
      %v429 = vld [vmem:[%s222 + $0x670] sm:$0xff]
      %v430 = vld [vmem:[%s222 + $0x678] sm:$0xff]
      %v431 = vld [vmem:[%s222 + $0x680] sm:$0xff]
      %v432 = vld [vmem:[%s222 + $0x688] sm:$0xff]
      %v433 = vld [vmem:[%s222 + $0x690] sm:$0xff]
      %v434 = vld [vmem:[%s222 + $0x698] sm:$0xff]
      %v435 = vld [vmem:[%s222 + $0x6a0] sm:$0xff]
      %v436 = vld [vmem:[%s222 + $0x6a8] sm:$0xff]
      %v437 = vld [vmem:[%s222 + $0x6b0] sm:$0xff]
      %v438 = vld [vmem:[%s222 + $0x6b8] sm:$0xff]
      %v439 = vld [vmem:[%s222 + $0x6c0] sm:$0xff]
      %v440 = vld [vmem:[%s222 + $0x6c8] sm:$0xff]
      %v441 = vld [vmem:[%s222 + $0x6d0] sm:$0xff]
      %v442 = vld [vmem:[%s222 + $0x6d8] sm:$0xff]
      %v443 = vld [vmem:[%s222 + $0x6e0] sm:$0xff]
      %v444 = vld [vmem:[%s222 + $0x6e8] sm:$0xff]
      %v445 = vld [vmem:[%s222 + $0x6f0] sm:$0xff]
      %v446 = vld [vmem:[%s222 + $0x6f8] sm:$0xff]
      %v447 = vld [vmem:[%s222 + $0x700] sm:$0xff]
      %v448 = vld [vmem:[%s222 + $0x708] sm:$0xff]
      %v449 = vld [vmem:[%s222 + $0x710] sm:$0xff]
      %v450 = vld [vmem:[%s222 + $0x718] sm:$0xff]
      %v451 = vld [vmem:[%s222 + $0x720] sm:$0xff]
      %v452 = vld [vmem:[%s222 + $0x728] sm:$0xff]
      %v453 = vld [vmem:[%s222 + $0x730] sm:$0xff]
      %v454 = vld [vmem:[%s222 + $0x738] sm:$0xff]
      %v455 = vld [vmem:[%s222 + $0x740] sm:$0xff]
      %v456 = vld [vmem:[%s222 + $0x748] sm:$0xff]
      %v457 = vld [vmem:[%s222 + $0x750] sm:$0xff]
      %v458 = vld [vmem:[%s222 + $0x758] sm:$0xff]
      %v459 = vld [vmem:[%s222 + $0x760] sm:$0xff]
      %v460 = vld [vmem:[%s222 + $0x768] sm:$0xff]
      %v461 = vld [vmem:[%s222 + $0x770] sm:$0xff]
      %v462 = vld [vmem:[%s222 + $0x778] sm:$0xff]
      %v463 = vld [vmem:[%s222 + $0x780] sm:$0xff]
      %v464 = vld [vmem:[%s222 + $0x788] sm:$0xff]
      %v465 = vld [vmem:[%s222 + $0x790] sm:$0xff]
      %v466 = vld [vmem:[%s222 + $0x798] sm:$0xff]
      %v467 = vld [vmem:[%s222 + $0x7a0] sm:$0xff]
      %v468 = vld [vmem:[%s222 + $0x7a8] sm:$0xff]
      %v469 = vld [vmem:[%s222 + $0x7b0] sm:$0xff]
      %v470 = vld [vmem:[%s222 + $0x7b8] sm:$0xff]
      %v471 = vld [vmem:[%s222 + $0x7c0] sm:$0xff]
      %v472 = vld [vmem:[%s222 + $0x7c8] sm:$0xff]
      %v473 = vld [vmem:[%s222 + $0x7d0] sm:$0xff]
      %v474 = vld [vmem:[%s222 + $0x7d8] sm:$0xff]
      %v475 = vld [vmem:[%s222 + $0x7e0] sm:$0xff]
      %v476 = vld [vmem:[%s222 + $0x7e8] sm:$0xff]
      %v477 = vld [vmem:[%s222 + $0x7f0] sm:$0xff]
      %v478 = vld [vmem:[%s222 + $0x7f8] sm:$0xff]
      %v479 = vld [vmem:[%s3] sm:$0xf]
      %v481 = vlaneseq
      %v482 = vshrl.u32 %v481, 7
      %v483 = vsub.s32 0, %v482
      %v484 = vrot.slane %v479, %v483
      %v485 = vlaneseq
      %v486 = vshrl.u32 %v485, 7
      %v487 = vsub.s32 1, %v486
      %v488 = vrot.slane %v479, %v487
      %v489 = vlaneseq
      %v490 = vshrl.u32 %v489, 7
      %v491 = vsub.s32 2, %v490
      %v492 = vrot.slane %v479, %v491
      %v493 = vlaneseq
      %v494 = vshrl.u32 %v493, 7
      %v495 = vsub.s32 3, %v494
      %v496 = vrot.slane %v479, %v495
      %501 = vmatprep.subr.mxu0 %v224
      %502 = vmatpush1.msra.mxu0 %v223
      %503 = vmatprep.subr.mxu0 %v228
      %504 = vmatpush1.msra.mxu0 %v227
      %505 = vmatprep.subr.mxu0 %v232
      %506 = vmatpush1.msra.mxu0 %v231
      %507 = vmatprep.subr.mxu0 %v236
      %508 = vmatpush1.msra.mxu0 %v235
      %509 = vmatprep.subr.mxu0 %v240
      %510 = vmatpush1.msra.mxu0 %v239
      %511 = vmatprep.subr.mxu0 %v244
      %512 = vmatpush1.msra.mxu0 %v243
      %513 = vmatprep.subr.mxu0 %v248
      %514 = vmatpush1.msra.mxu0 %v247
      %515 = vmatprep.subr.mxu0 %v252
      %516 = vmatpush1.msra.mxu0 %v251
      %517 = vmatprep.subr.mxu0 %v256
      %518 = vmatpush1.msra.mxu0 %v255
      %519 = vmatprep.subr.mxu0 %v260
      %520 = vmatpush1.msra.mxu0 %v259
      %521 = vmatprep.subr.mxu0 %v264
      %522 = vmatpush1.msra.mxu0 %v263
      %523 = vmatprep.subr.mxu0 %v268
      %524 = vmatpush1.msra.mxu0 %v267
      %525 = vmatprep.subr.mxu0 %v272
      %526 = vmatpush1.msra.mxu0 %v271
      %527 = vmatprep.subr.mxu0 %v276
      %528 = vmatpush1.msra.mxu0 %v275
      %529 = vmatprep.subr.mxu0 %v280
      %530 = vmatpush1.msra.mxu0 %v279
      %531 = vmatprep.subr.mxu0 %v284
      %532 = vmatpush1.msra.mxu0 %v283
      %533 = vmatprep.subr.mxu0 %v288
      %534 = vmatpush1.msra.mxu0 %v287
      %535 = vmatprep.subr.mxu0 %v292
      %536 = vmatpush1.msra.mxu0 %v291
      %537 = vmatprep.subr.mxu0 %v296
      %538 = vmatpush1.msra.mxu0 %v295
      %539 = vmatprep.subr.mxu0 %v300
      %540 = vmatpush1.msra.mxu0 %v299
      %541 = vmatprep.subr.mxu0 %v304
      %542 = vmatpush1.msra.mxu0 %v303
      %543 = vmatprep.subr.mxu0 %v308
      %544 = vmatpush1.msra.mxu0 %v307
      %545 = vmatprep.subr.mxu0 %v312
      %546 = vmatpush1.msra.mxu0 %v311
      %547 = vmatprep.subr.mxu0 %v316
      %548 = vmatpush1.msra.mxu0 %v315
      %549 = vmatprep.subr.mxu0 %v320
      %550 = vmatpush1.msra.mxu0 %v319
      %551 = vmatprep.subr.mxu0 %v324
      %552 = vmatpush1.msra.mxu0 %v323
      %553 = vmatprep.subr.mxu0 %v328
      %554 = vmatpush1.msra.mxu0 %v327
      %555 = vmatprep.subr.mxu0 %v332
      %556 = vmatpush1.msra.mxu0 %v331
      %557 = vmatprep.subr.mxu0 %v336
      %558 = vmatpush1.msra.mxu0 %v335
      %559 = vmatprep.subr.mxu0 %v340
      %560 = vmatpush1.msra.mxu0 %v339
      %561 = vmatprep.subr.mxu0 %v344
      %562 = vmatpush1.msra.mxu0 %v343
      %563 = vmatprep.subr.mxu0 %v348
      %564 = vmatpush1.msra.mxu0 %v347
      %565 = vmatprep.mubr.f32.mxu0 %v207
      %566 = vmatmul.mubr.f32.gmra.mrb[0].mxu0 %v206
      %v567 = vpop.f32.mrb[0].mxu0
      %v568 = vadd.f32 %v484, %v567
      %v569 = vpop.f32.mrb[0].mxu0
      %v570 = vadd.f32 %v488, %v569
      %571 = vmatprep.mubr.f32.mxu0 %v211
      %572 = vmatmul.mubr.f32.gmra.mrb[0].mxu0 %v210
      %v573 = vpop.f32.mrb[0].mxu0
      %v574 = vadd.f32 %v484, %v573
      %v575 = vpop.f32.mrb[0].mxu0
      %v576 = vadd.f32 %v488, %v575
      %577 = vmatprep.mubr.f32.mxu0 %v215
      %578 = vmatmul.mubr.f32.gmra.mrb[0].mxu0 %v214
      %v579 = vpop.f32.mrb[0].mxu0
      %v580 = vadd.f32 %v484, %v579
      %v581 = vpop.f32.mrb[0].mxu0
      %v582 = vadd.f32 %v488, %v581
      %583 = vmatprep.mubr.f32.mxu0 %v219
      %584 = vmatmul.mubr.f32.gmra.mrb[0].mxu0 %v218
      %v585 = vpop.f32.mrb[0].mxu0
      %v586 = vadd.f32 %v484, %v585
      %v587 = vpop.f32.mrb[0].mxu0
      %v588 = vadd.f32 %v488, %v587
      %589 = vdwg.mxu0
      %590 = vmatprep.subr.mxu0 %v352
      %591 = vmatpush1.msra.mxu0 %v351
      %592 = vmatprep.subr.mxu0 %v356
      %593 = vmatpush1.msra.mxu0 %v355
      %594 = vmatprep.subr.mxu0 %v360
      %595 = vmatpush1.msra.mxu0 %v359
      %596 = vmatprep.subr.mxu0 %v364
      %597 = vmatpush1.msra.mxu0 %v363
      %598 = vmatprep.subr.mxu0 %v368
      %599 = vmatpush1.msra.mxu0 %v367
      %600 = vmatprep.subr.mxu0 %v372
      %601 = vmatpush1.msra.mxu0 %v371
      %602 = vmatprep.subr.mxu0 %v376
      %603 = vmatpush1.msra.mxu0 %v375
      %604 = vmatprep.subr.mxu0 %v380
      %605 = vmatpush1.msra.mxu0 %v379
      %606 = vmatprep.subr.mxu0 %v384
      %607 = vmatpush1.msra.mxu0 %v383
      %608 = vmatprep.subr.mxu0 %v388
      %609 = vmatpush1.msra.mxu0 %v387
      %610 = vmatprep.subr.mxu0 %v392
      %611 = vmatpush1.msra.mxu0 %v391
      %612 = vmatprep.subr.mxu0 %v396
      %613 = vmatpush1.msra.mxu0 %v395
      %614 = vmatprep.subr.mxu0 %v400
      %615 = vmatpush1.msra.mxu0 %v399
      %616 = vmatprep.subr.mxu0 %v404
      %617 = vmatpush1.msra.mxu0 %v403
      %618 = vmatprep.subr.mxu0 %v408
      %619 = vmatpush1.msra.mxu0 %v407
      %620 = vmatprep.subr.mxu0 %v412
      %621 = vmatpush1.msra.mxu0 %v411
      %622 = vmatprep.subr.mxu0 %v416
      %623 = vmatpush1.msra.mxu0 %v415
      %624 = vmatprep.subr.mxu0 %v420
      %625 = vmatpush1.msra.mxu0 %v419
      %626 = vmatprep.subr.mxu0 %v424
      %627 = vmatpush1.msra.mxu0 %v423
      %628 = vmatprep.subr.mxu0 %v428
      %629 = vmatpush1.msra.mxu0 %v427
      %630 = vmatprep.subr.mxu0 %v432
      %631 = vmatpush1.msra.mxu0 %v431
      %632 = vmatprep.subr.mxu0 %v436
      %633 = vmatpush1.msra.mxu0 %v435
      %634 = vmatprep.subr.mxu0 %v440
      %635 = vmatpush1.msra.mxu0 %v439
      %636 = vmatprep.subr.mxu0 %v444
      %637 = vmatpush1.msra.mxu0 %v443
      %638 = vmatprep.subr.mxu0 %v448
      %639 = vmatpush1.msra.mxu0 %v447
      %640 = vmatprep.subr.mxu0 %v452
      %641 = vmatpush1.msra.mxu0 %v451
      %642 = vmatprep.subr.mxu0 %v456
      %643 = vmatpush1.msra.mxu0 %v455
      %644 = vmatprep.subr.mxu0 %v460
      %645 = vmatpush1.msra.mxu0 %v459
      %646 = vmatprep.subr.mxu0 %v464
      %647 = vmatpush1.msra.mxu0 %v463
      %648 = vmatprep.subr.mxu0 %v468
      %649 = vmatpush1.msra.mxu0 %v467
      %650 = vmatprep.subr.mxu0 %v472
      %651 = vmatpush1.msra.mxu0 %v471
      %652 = vmatprep.subr.mxu0 %v476
      %653 = vmatpush1.msra.mxu0 %v475
      %654 = vmatprep.mubr.f32.mxu0 %v209
      %655 = vmatmul.mubr.f32.gmra.mrb[0].mxu0 %v208
      %v656 = vpop.f32.mrb[0].mxu0
      %v657 = vadd.f32 %v568, %v656
      %v658 = vpop.f32.mrb[0].mxu0
      %v659 = vadd.f32 %v570, %v658
      %660 = vmatprep.mubr.f32.mxu0 %v213
      %661 = vmatmul.mubr.f32.gmra.mrb[0].mxu0 %v212
      %v662 = vpop.f32.mrb[0].mxu0
      %v663 = vadd.f32 %v574, %v662
      %v664 = vpop.f32.mrb[0].mxu0
      %v665 = vadd.f32 %v576, %v664
      %666 = vmatprep.mubr.f32.mxu0 %v217
      %667 = vmatmul.mubr.f32.gmra.mrb[0].mxu0 %v216
      %v668 = vpop.f32.mrb[0].mxu0
      %v669 = vadd.f32 %v580, %v668
      %v670 = vpop.f32.mrb[0].mxu0
      %v671 = vadd.f32 %v582, %v670
      %672 = vmatprep.mubr.f32.mxu0 %v221
      %673 = vmatmul.mubr.f32.gmra.mrb[0].mxu0 %v220
      %v674 = vpop.f32.mrb[0].mxu0
      %v675 = vadd.f32 %v586, %v674
      %v676 = vpop.f32.mrb[0].mxu0
      %v677 = vadd.f32 %v588, %v676
      %678 = vdwg.mxu0
      %679 = vmatprep.subr.mxu0 %v226
      %680 = vmatpush1.msra.mxu0 %v225
      %681 = vmatprep.subr.mxu0 %v230
      %682 = vmatpush1.msra.mxu0 %v229
      %683 = vmatprep.subr.mxu0 %v234
      %684 = vmatpush1.msra.mxu0 %v233
      %685 = vmatprep.subr.mxu0 %v238
      %686 = vmatpush1.msra.mxu0 %v237
      %687 = vmatprep.subr.mxu0 %v242
      %688 = vmatpush1.msra.mxu0 %v241
      %689 = vmatprep.subr.mxu0 %v246
      %690 = vmatpush1.msra.mxu0 %v245
      %691 = vmatprep.subr.mxu0 %v250
      %692 = vmatpush1.msra.mxu0 %v249
      %693 = vmatprep.subr.mxu0 %v254
      %694 = vmatpush1.msra.mxu0 %v253
      %695 = vmatprep.subr.mxu0 %v258
      %696 = vmatpush1.msra.mxu0 %v257
      %697 = vmatprep.subr.mxu0 %v262
      %698 = vmatpush1.msra.mxu0 %v261
      %699 = vmatprep.subr.mxu0 %v266
      %700 = vmatpush1.msra.mxu0 %v265
      %701 = vmatprep.subr.mxu0 %v270
      %702 = vmatpush1.msra.mxu0 %v269
      %703 = vmatprep.subr.mxu0 %v274
      %704 = vmatpush1.msra.mxu0 %v273
      %705 = vmatprep.subr.mxu0 %v278
      %706 = vmatpush1.msra.mxu0 %v277
      %707 = vmatprep.subr.mxu0 %v282
      %708 = vmatpush1.msra.mxu0 %v281
      %709 = vmatprep.subr.mxu0 %v286
      %710 = vmatpush1.msra.mxu0 %v285
      %711 = vmatprep.subr.mxu0 %v290
      %712 = vmatpush1.msra.mxu0 %v289
      %713 = vmatprep.subr.mxu0 %v294
      %714 = vmatpush1.msra.mxu0 %v293
      %715 = vmatprep.subr.mxu0 %v298
      %716 = vmatpush1.msra.mxu0 %v297
      %717 = vmatprep.subr.mxu0 %v302
      %718 = vmatpush1.msra.mxu0 %v301
      %719 = vmatprep.subr.mxu0 %v306
      %720 = vmatpush1.msra.mxu0 %v305
      %721 = vmatprep.subr.mxu0 %v310
      %722 = vmatpush1.msra.mxu0 %v309
      %723 = vmatprep.subr.mxu0 %v314
      %724 = vmatpush1.msra.mxu0 %v313
      %725 = vmatprep.subr.mxu0 %v318
      %726 = vmatpush1.msra.mxu0 %v317
      %727 = vmatprep.subr.mxu0 %v322
      %728 = vmatpush1.msra.mxu0 %v321
      %729 = vmatprep.subr.mxu0 %v326
      %730 = vmatpush1.msra.mxu0 %v325
      %731 = vmatprep.subr.mxu0 %v330
      %732 = vmatpush1.msra.mxu0 %v329
      %733 = vmatprep.subr.mxu0 %v334
      %734 = vmatpush1.msra.mxu0 %v333
      %735 = vmatprep.subr.mxu0 %v338
      %736 = vmatpush1.msra.mxu0 %v337
      %737 = vmatprep.subr.mxu0 %v342
      %738 = vmatpush1.msra.mxu0 %v341
      %739 = vmatprep.subr.mxu0 %v346
      %740 = vmatpush1.msra.mxu0 %v345
      %741 = vmatprep.subr.mxu0 %v350
      %742 = vmatpush1.msra.mxu0 %v349
      %743 = vmatprep.mubr.f32.mxu0 %v207
      %744 = vmatmul.mubr.f32.gmra.mrb[0].mxu0 %v206
      %v745 = vpop.f32.mrb[0].mxu0
      %v746 = vadd.f32 %v492, %v745
      %v747 = vpop.f32.mrb[0].mxu0
      %v748 = vadd.f32 %v496, %v747
      %749 = vmatprep.mubr.f32.mxu0 %v211
      %750 = vmatmul.mubr.f32.gmra.mrb[0].mxu0 %v210
      %v751 = vpop.f32.mrb[0].mxu0
      %v752 = vadd.f32 %v492, %v751
      %v753 = vpop.f32.mrb[0].mxu0
      %v754 = vadd.f32 %v496, %v753
      %755 = vmatprep.mubr.f32.mxu0 %v215
      %756 = vmatmul.mubr.f32.gmra.mrb[0].mxu0 %v214
      %v757 = vpop.f32.mrb[0].mxu0
      %v758 = vadd.f32 %v492, %v757
      %v759 = vpop.f32.mrb[0].mxu0
      %v760 = vadd.f32 %v496, %v759
      %761 = vmatprep.mubr.f32.mxu0 %v219
      %762 = vmatmul.mubr.f32.gmra.mrb[0].mxu0 %v218
      %v763 = vpop.f32.mrb[0].mxu0
      %v764 = vadd.f32 %v492, %v763
      %v765 = vpop.f32.mrb[0].mxu0
      %v766 = vadd.f32 %v496, %v765
      %767 = vdwg.mxu0
      %768 = vmatprep.subr.mxu0 %v354
      %769 = vmatpush1.msra.mxu0 %v353
      %770 = vmatprep.subr.mxu0 %v358
      %771 = vmatpush1.msra.mxu0 %v357
      %772 = vmatprep.subr.mxu0 %v362
      %773 = vmatpush1.msra.mxu0 %v361
      %774 = vmatprep.subr.mxu0 %v366
      %775 = vmatpush1.msra.mxu0 %v365
      %776 = vmatprep.subr.mxu0 %v370
      %777 = vmatpush1.msra.mxu0 %v369
      %778 = vmatprep.subr.mxu0 %v374
      %779 = vmatpush1.msra.mxu0 %v373
      %780 = vmatprep.subr.mxu0 %v378
      %781 = vmatpush1.msra.mxu0 %v377
      %782 = vmatprep.subr.mxu0 %v382
      %783 = vmatpush1.msra.mxu0 %v381
      %784 = vmatprep.subr.mxu0 %v386
      %785 = vmatpush1.msra.mxu0 %v385
      %786 = vmatprep.subr.mxu0 %v390
      %787 = vmatpush1.msra.mxu0 %v389
      %788 = vmatprep.subr.mxu0 %v394
      %789 = vmatpush1.msra.mxu0 %v393
      %790 = vmatprep.subr.mxu0 %v398
      %791 = vmatpush1.msra.mxu0 %v397
      %792 = vmatprep.subr.mxu0 %v402
      %793 = vmatpush1.msra.mxu0 %v401
      %794 = vmatprep.subr.mxu0 %v406
      %795 = vmatpush1.msra.mxu0 %v405
      %796 = vmatprep.subr.mxu0 %v410
      %797 = vmatpush1.msra.mxu0 %v409
      %798 = vmatprep.subr.mxu0 %v414
      %799 = vmatpush1.msra.mxu0 %v413
      %800 = vmatprep.subr.mxu0 %v418
      %801 = vmatpush1.msra.mxu0 %v417
      %802 = vmatprep.subr.mxu0 %v422
      %803 = vmatpush1.msra.mxu0 %v421
      %804 = vmatprep.subr.mxu0 %v426
      %805 = vmatpush1.msra.mxu0 %v425
      %806 = vmatprep.subr.mxu0 %v430
      %807 = vmatpush1.msra.mxu0 %v429
      %808 = vmatprep.subr.mxu0 %v434
      %809 = vmatpush1.msra.mxu0 %v433
      %810 = vmatprep.subr.mxu0 %v438
      %811 = vmatpush1.msra.mxu0 %v437
      %812 = vmatprep.subr.mxu0 %v442
      %813 = vmatpush1.msra.mxu0 %v441
      %814 = vmatprep.subr.mxu0 %v446
      %815 = vmatpush1.msra.mxu0 %v445
      %816 = vmatprep.subr.mxu0 %v450
      %817 = vmatpush1.msra.mxu0 %v449
      %818 = vmatprep.subr.mxu0 %v454
      %819 = vmatpush1.msra.mxu0 %v453
      %820 = vmatprep.subr.mxu0 %v458
      %821 = vmatpush1.msra.mxu0 %v457
      %822 = vmatprep.subr.mxu0 %v462
      %823 = vmatpush1.msra.mxu0 %v461
      %824 = vmatprep.subr.mxu0 %v466
      %825 = vmatpush1.msra.mxu0 %v465
      %826 = vmatprep.subr.mxu0 %v470
      %827 = vmatpush1.msra.mxu0 %v469
      %828 = vmatprep.subr.mxu0 %v474
      %829 = vmatpush1.msra.mxu0 %v473
      %830 = vmatprep.subr.mxu0 %v478
      %831 = vmatpush1.msra.mxu0 %v477
      %832 = vmatprep.mubr.f32.mxu0 %v209
      %833 = vmatmul.mubr.f32.gmra.mrb[0].mxu0 %v208
      %v834 = vpop.f32.mrb[0].mxu0
      %v835 = vadd.f32 %v746, %v834
      %v836 = vpop.f32.mrb[0].mxu0
      %v837 = vadd.f32 %v748, %v836
      %838 = vmatprep.mubr.f32.mxu0 %v213
      %839 = vmatmul.mubr.f32.gmra.mrb[0].mxu0 %v212
      %v840 = vpop.f32.mrb[0].mxu0
      %v841 = vadd.f32 %v752, %v840
      %v842 = vpop.f32.mrb[0].mxu0
      %v843 = vadd.f32 %v754, %v842
      %844 = vmatprep.mubr.f32.mxu0 %v217
      %845 = vmatmul.mubr.f32.gmra.mrb[0].mxu0 %v216
      %v846 = vpop.f32.mrb[0].mxu0
      %v847 = vadd.f32 %v758, %v846
      %v848 = vpop.f32.mrb[0].mxu0
      %v849 = vadd.f32 %v760, %v848
      %850 = vmatprep.mubr.f32.mxu0 %v221
      %851 = vmatmul.mubr.f32.gmra.mrb[0].mxu0 %v220
      %v852 = vpop.f32.mrb[0].mxu0
      %v853 = vadd.f32 %v764, %v852
      %v854 = vpop.f32.mrb[0].mxu0
      %v855 = vadd.f32 %v766, %v854
      %856 = vdwg.mxu0
      %v857 = vld [vmem:[%s2] sm:$0xff]
      %v858 = vld [vmem:[%s2 + $0x8] sm:$0xff]
      %v859 = vld [vmem:[%s2 + $0x10] sm:$0xff]
      %v860 = vld [vmem:[%s2 + $0x18] sm:$0xff]
      %vm861 = vcmask 261120
      %v863 = vsel %vm861, %v857, 0
      %v866 = vsel %vm861, %v858, 0
      %v869 = vsel %vm861, %v859, 0
      %v872 = vsel %vm861, %v860, 0
      %874 = vmatprep.subr.mxu0 %v207
      %875 = vmatpush1.msra.mxu0 %v206
      %876 = vmatprep.subr.mxu0 %v211
      %877 = vmatpush1.msra.mxu0 %v210
      %878 = vmatprep.subr.mxu0 %v215
      %879 = vmatpush1.msra.mxu0 %v214
      %880 = vmatprep.subr.mxu0 %v219
      %881 = vmatpush1.msra.mxu0 %v218
      %882 = vmatprep.subr.mxu0 0.0
      %883 = vmatpush1.msra.mxu0 0.0
      %884 = vmatprep.subr.mxu0 0.0
      %885 = vmatpush1.msra.mxu0 0.0
      %886 = vmatprep.subr.mxu0 0.0
      %887 = vmatpush1.msra.mxu0 0.0
      %888 = vmatprep.subr.mxu0 0.0
      %889 = vmatpush1.msra.mxu0 0.0
      %890 = vmatprep.subr.mxu0 0.0
      %891 = vmatpush1.msra.mxu0 0.0
      %892 = vmatprep.subr.mxu0 0.0
      %893 = vmatpush1.msra.mxu0 0.0
      %894 = vmatprep.subr.mxu0 0.0
      %895 = vmatpush1.msra.mxu0 0.0
      %896 = vmatprep.subr.mxu0 0.0
      %897 = vmatpush1.msra.mxu0 0.0
      %898 = vmatprep.subr.mxu0 0.0
      %899 = vmatpush1.msra.mxu0 0.0
      %900 = vmatprep.subr.mxu0 0.0
      %901 = vmatpush1.msra.mxu0 0.0
      %902 = vmatprep.subr.mxu0 0.0
      %903 = vmatpush1.msra.mxu0 0.0
      %904 = vmatprep.subr.mxu0 0.0
      %905 = vmatpush1.msra.mxu0 0.0
      %906 = vmatprep.subr.mxu0 0.0
      %907 = vmatpush1.msra.mxu0 0.0
      %908 = vmatprep.subr.mxu0 0.0
      %909 = vmatpush1.msra.mxu0 0.0
      %910 = vmatprep.subr.mxu0 0.0
      %911 = vmatpush1.msra.mxu0 0.0
      %912 = vmatprep.subr.mxu0 0.0
      %913 = vmatpush1.msra.mxu0 0.0
      %914 = vmatprep.subr.mxu0 0.0
      %915 = vmatpush1.msra.mxu0 0.0
      %916 = vmatprep.subr.mxu0 0.0
      %917 = vmatpush1.msra.mxu0 0.0
      %918 = vmatprep.subr.mxu0 0.0
      %919 = vmatpush1.msra.mxu0 0.0
      %920 = vmatprep.subr.mxu0 0.0
      %921 = vmatpush1.msra.mxu0 0.0
      %922 = vmatprep.subr.mxu0 0.0
      %923 = vmatpush1.msra.mxu0 0.0
      %924 = vmatprep.subr.mxu0 0.0
      %925 = vmatpush1.msra.mxu0 0.0
      %926 = vmatprep.subr.mxu0 0.0
      %927 = vmatpush1.msra.mxu0 0.0
      %928 = vmatprep.subr.mxu0 0.0
      %929 = vmatpush1.msra.mxu0 0.0
      %930 = vmatprep.subr.mxu0 0.0
      %931 = vmatpush1.msra.mxu0 0.0
      %932 = vmatprep.subr.mxu0 0.0
      %933 = vmatpush1.msra.mxu0 0.0
      %934 = vmatprep.subr.mxu0 0.0
      %935 = vmatpush1.msra.mxu0 0.0
      %936 = vmatprep.subr.mxu0 0.0
      %937 = vmatpush1.msra.mxu0 0.0
      %938 = vmatprep.mubr.f32.mxu0 0.0
      %939 = vmatmul.mubr.f32.gmra.mrb[0].mxu0 %v863
      %v940 = vpop.f32.mrb[0].mxu0
      %v941 = vadd.f32 0.0, %v940
      %v942 = vpop.f32.mrb[0].mxu0
      %v943 = vadd.f32 0.0, %v942
      %944 = vmatprep.mubr.f32.mxu0 0.0
      %945 = vmatmul.mubr.f32.gmra.mrb[0].mxu0 %v866
      %v946 = vpop.f32.mrb[0].mxu0
      %v947 = vadd.f32 0.0, %v946
      %v948 = vpop.f32.mrb[0].mxu0
      %v949 = vadd.f32 0.0, %v948
      %950 = vmatprep.mubr.f32.mxu0 0.0
      %951 = vmatmul.mubr.f32.gmra.mrb[0].mxu0 %v869
      %v952 = vpop.f32.mrb[0].mxu0
      %v953 = vadd.f32 0.0, %v952
      %v954 = vpop.f32.mrb[0].mxu0
      %v955 = vadd.f32 0.0, %v954
      %956 = vmatprep.mubr.f32.mxu0 0.0
      %957 = vmatmul.mubr.f32.gmra.mrb[0].mxu0 %v872
      %v958 = vpop.f32.mrb[0].mxu0
      %v959 = vadd.f32 0.0, %v958
      %v960 = vpop.f32.mrb[0].mxu0
      %v961 = vadd.f32 0.0, %v960
      %962 = vdwg.mxu0
      %963 = vmatprep.subr.mxu0 %v209
      %964 = vmatpush1.msra.mxu0 %v208
      %965 = vmatprep.subr.mxu0 %v213
      %966 = vmatpush1.msra.mxu0 %v212
      %967 = vmatprep.subr.mxu0 %v217
      %968 = vmatpush1.msra.mxu0 %v216
      %969 = vmatprep.subr.mxu0 %v221
      %970 = vmatpush1.msra.mxu0 %v220
      %971 = vmatprep.subr.mxu0 0.0
      %972 = vmatpush1.msra.mxu0 0.0
      %973 = vmatprep.subr.mxu0 0.0
      %974 = vmatpush1.msra.mxu0 0.0
      %975 = vmatprep.subr.mxu0 0.0
      %976 = vmatpush1.msra.mxu0 0.0
      %977 = vmatprep.subr.mxu0 0.0
      %978 = vmatpush1.msra.mxu0 0.0
      %979 = vmatprep.subr.mxu0 0.0
      %980 = vmatpush1.msra.mxu0 0.0
      %981 = vmatprep.subr.mxu0 0.0
      %982 = vmatpush1.msra.mxu0 0.0
      %983 = vmatprep.subr.mxu0 0.0
      %984 = vmatpush1.msra.mxu0 0.0
      %985 = vmatprep.subr.mxu0 0.0
      %986 = vmatpush1.msra.mxu0 0.0
      %987 = vmatprep.subr.mxu0 0.0
      %988 = vmatpush1.msra.mxu0 0.0
      %989 = vmatprep.subr.mxu0 0.0
      %990 = vmatpush1.msra.mxu0 0.0
      %991 = vmatprep.subr.mxu0 0.0
      %992 = vmatpush1.msra.mxu0 0.0
      %993 = vmatprep.subr.mxu0 0.0
      %994 = vmatpush1.msra.mxu0 0.0
      %995 = vmatprep.subr.mxu0 0.0
      %996 = vmatpush1.msra.mxu0 0.0
      %997 = vmatprep.subr.mxu0 0.0
      %998 = vmatpush1.msra.mxu0 0.0
      %999 = vmatprep.subr.mxu0 0.0
      %1000 = vmatpush1.msra.mxu0 0.0
      %1001 = vmatprep.subr.mxu0 0.0
      %1002 = vmatpush1.msra.mxu0 0.0
      %1003 = vmatprep.subr.mxu0 0.0
      %1004 = vmatpush1.msra.mxu0 0.0
      %1005 = vmatprep.subr.mxu0 0.0
      %1006 = vmatpush1.msra.mxu0 0.0
      %1007 = vmatprep.subr.mxu0 0.0
      %1008 = vmatpush1.msra.mxu0 0.0
      %1009 = vmatprep.subr.mxu0 0.0
      %1010 = vmatpush1.msra.mxu0 0.0
      %1011 = vmatprep.subr.mxu0 0.0
      %1012 = vmatpush1.msra.mxu0 0.0
      %1013 = vmatprep.subr.mxu0 0.0
      %1014 = vmatpush1.msra.mxu0 0.0
      %1015 = vmatprep.subr.mxu0 0.0
      %1016 = vmatpush1.msra.mxu0 0.0
      %1017 = vmatprep.subr.mxu0 0.0
      %1018 = vmatpush1.msra.mxu0 0.0
      %1019 = vmatprep.subr.mxu0 0.0
      %1020 = vmatpush1.msra.mxu0 0.0
      %1021 = vmatprep.subr.mxu0 0.0
      %1022 = vmatpush1.msra.mxu0 0.0
      %1023 = vmatprep.subr.mxu0 0.0
      %1024 = vmatpush1.msra.mxu0 0.0
      %1025 = vmatprep.subr.mxu0 0.0
      %1026 = vmatpush1.msra.mxu0 0.0
      %1027 = vmatprep.mubr.f32.mxu0 0.0
      %1028 = vmatmul.mubr.f32.gmra.mrb[0].mxu0 %v863
      %v1029 = vpop.f32.mrb[0].mxu0
      %v1030 = vadd.f32 0.0, %v1029
      %v1031 = vpop.f32.mrb[0].mxu0
      %v1032 = vadd.f32 0.0, %v1031
      %1033 = vmatprep.mubr.f32.mxu0 0.0
      %1034 = vmatmul.mubr.f32.gmra.mrb[0].mxu0 %v866
      %v1035 = vpop.f32.mrb[0].mxu0
      %v1036 = vadd.f32 0.0, %v1035
      %v1037 = vpop.f32.mrb[0].mxu0
      %v1038 = vadd.f32 0.0, %v1037
      %1039 = vmatprep.mubr.f32.mxu0 0.0
      %1040 = vmatmul.mubr.f32.gmra.mrb[0].mxu0 %v869
      %v1041 = vpop.f32.mrb[0].mxu0
      %v1042 = vadd.f32 0.0, %v1041
      %v1043 = vpop.f32.mrb[0].mxu0
      %v1044 = vadd.f32 0.0, %v1043
      %1045 = vmatprep.mubr.f32.mxu0 0.0
      %1046 = vmatmul.mubr.f32.gmra.mrb[0].mxu0 %v872
      %v1047 = vpop.f32.mrb[0].mxu0
      %v1048 = vadd.f32 0.0, %v1047
      %v1049 = vpop.f32.mrb[0].mxu0
      %v1050 = vadd.f32 0.0, %v1049
      %1051 = vdwg.mxu0
      %v1052 = vld [vmem:[%s1] sm:$0xff]
      %v1053 = vld [vmem:[%s1 + $0x8] sm:$0xff]
      %v1054 = vld [vmem:[%s1 + $0x10] sm:$0xff]
      %v1055 = vld [vmem:[%s1 + $0x18] sm:$0xff]
      %v1056 = vld [vmem:[%s1 + $0x20] sm:$0xff]
      %v1057 = vld [vmem:[%s1 + $0x28] sm:$0xff]
      %v1058 = vld [vmem:[%s1 + $0x30] sm:$0xff]
      %v1059 = vld [vmem:[%s1 + $0x38] sm:$0xff]
      %v1060 = vld [vmem:[%s1 + $0x40] sm:$0xff]
      %v1061 = vld [vmem:[%s1 + $0x48] sm:$0xff]
      %v1062 = vld [vmem:[%s1 + $0x50] sm:$0xff]
      %v1063 = vld [vmem:[%s1 + $0x58] sm:$0xff]
      %v1064 = vld [vmem:[%s1 + $0x60] sm:$0xff]
      %v1065 = vld [vmem:[%s1 + $0x68] sm:$0xff]
      %v1066 = vld [vmem:[%s1 + $0x70] sm:$0xff]
      %v1067 = vld [vmem:[%s1 + $0x78] sm:$0xff]
      %v1068 = vld [vmem:[%s1 + $0x80] sm:$0xff]
      %v1069 = vld [vmem:[%s1 + $0x88] sm:$0xff]
      %v1070 = vld [vmem:[%s1 + $0x90] sm:$0xff]
      %v1071 = vld [vmem:[%s1 + $0x98] sm:$0xff]
      %v1072 = vld [vmem:[%s1 + $0xa0] sm:$0xff]
      %v1073 = vld [vmem:[%s1 + $0xa8] sm:$0xff]
      %v1074 = vld [vmem:[%s1 + $0xb0] sm:$0xff]
      %v1075 = vld [vmem:[%s1 + $0xb8] sm:$0xff]
      %v1076 = vld [vmem:[%s1 + $0xc0] sm:$0xff]
      %v1077 = vld [vmem:[%s1 + $0xc8] sm:$0xff]
      %v1078 = vld [vmem:[%s1 + $0xd0] sm:$0xff]
      %v1079 = vld [vmem:[%s1 + $0xd8] sm:$0xff]
      %v1080 = vld [vmem:[%s1 + $0xe0] sm:$0xff]
      %v1081 = vld [vmem:[%s1 + $0xe8] sm:$0xff]
      %v1082 = vld [vmem:[%s1 + $0xf0] sm:$0xff]
      %v1083 = vld [vmem:[%s1 + $0xf8] sm:$0xff]
      %v1084 = vld [vmem:[%s1 + $0x100] sm:$0xff]
      %v1085 = vld [vmem:[%s1 + $0x108] sm:$0xff]
      %v1086 = vld [vmem:[%s1 + $0x110] sm:$0xff]
      %v1087 = vld [vmem:[%s1 + $0x118] sm:$0xff]
      %v1088 = vld [vmem:[%s1 + $0x120] sm:$0xff]
      %v1089 = vld [vmem:[%s1 + $0x128] sm:$0xff]
      %v1090 = vld [vmem:[%s1 + $0x130] sm:$0xff]
      %v1091 = vld [vmem:[%s1 + $0x138] sm:$0xff]
      %v1092 = vld [vmem:[%s1 + $0x140] sm:$0xff]
      %v1093 = vld [vmem:[%s1 + $0x148] sm:$0xff]
      %v1094 = vld [vmem:[%s1 + $0x150] sm:$0xff]
      %v1095 = vld [vmem:[%s1 + $0x158] sm:$0xff]
      %v1096 = vld [vmem:[%s1 + $0x160] sm:$0xff]
      %v1097 = vld [vmem:[%s1 + $0x168] sm:$0xff]
      %v1098 = vld [vmem:[%s1 + $0x170] sm:$0xff]
      %v1099 = vld [vmem:[%s1 + $0x178] sm:$0xff]
      %v1100 = vld [vmem:[%s1 + $0x180] sm:$0xff]
      %v1101 = vld [vmem:[%s1 + $0x188] sm:$0xff]
      %v1102 = vld [vmem:[%s1 + $0x190] sm:$0xff]
      %v1103 = vld [vmem:[%s1 + $0x198] sm:$0xff]
      %v1104 = vld [vmem:[%s1 + $0x1a0] sm:$0xff]
      %v1105 = vld [vmem:[%s1 + $0x1a8] sm:$0xff]
      %v1106 = vld [vmem:[%s1 + $0x1b0] sm:$0xff]
      %v1107 = vld [vmem:[%s1 + $0x1b8] sm:$0xff]
      %v1108 = vld [vmem:[%s1 + $0x1c0] sm:$0xff]
      %v1109 = vld [vmem:[%s1 + $0x1c8] sm:$0xff]
      %v1110 = vld [vmem:[%s1 + $0x1d0] sm:$0xff]
      %v1111 = vld [vmem:[%s1 + $0x1d8] sm:$0xff]
      %v1112 = vld [vmem:[%s1 + $0x1e0] sm:$0xff]
      %v1113 = vld [vmem:[%s1 + $0x1e8] sm:$0xff]
      %v1114 = vld [vmem:[%s1 + $0x1f0] sm:$0xff]
      %v1115 = vld [vmem:[%s1 + $0x1f8] sm:$0xff]
      %v1116 = vld [vmem:[%s1 + $0x200] sm:$0xff]
      %v1117 = vld [vmem:[%s1 + $0x208] sm:$0xff]
      %v1118 = vld [vmem:[%s1 + $0x210] sm:$0xff]
      %v1119 = vld [vmem:[%s1 + $0x218] sm:$0xff]
      %v1120 = vld [vmem:[%s1 + $0x220] sm:$0xff]
      %v1121 = vld [vmem:[%s1 + $0x228] sm:$0xff]
      %v1122 = vld [vmem:[%s1 + $0x230] sm:$0xff]
      %v1123 = vld [vmem:[%s1 + $0x238] sm:$0xff]
      %v1124 = vld [vmem:[%s1 + $0x240] sm:$0xff]
      %v1125 = vld [vmem:[%s1 + $0x248] sm:$0xff]
      %v1126 = vld [vmem:[%s1 + $0x250] sm:$0xff]
      %v1127 = vld [vmem:[%s1 + $0x258] sm:$0xff]
      %v1128 = vld [vmem:[%s1 + $0x260] sm:$0xff]
      %v1129 = vld [vmem:[%s1 + $0x268] sm:$0xff]
      %v1130 = vld [vmem:[%s1 + $0x270] sm:$0xff]
      %v1131 = vld [vmem:[%s1 + $0x278] sm:$0xff]
      %v1132 = vld [vmem:[%s1 + $0x280] sm:$0xff]
      %v1133 = vld [vmem:[%s1 + $0x288] sm:$0xff]
      %v1134 = vld [vmem:[%s1 + $0x290] sm:$0xff]
      %v1135 = vld [vmem:[%s1 + $0x298] sm:$0xff]
      %v1136 = vld [vmem:[%s1 + $0x2a0] sm:$0xff]
      %v1137 = vld [vmem:[%s1 + $0x2a8] sm:$0xff]
      %v1138 = vld [vmem:[%s1 + $0x2b0] sm:$0xff]
      %v1139 = vld [vmem:[%s1 + $0x2b8] sm:$0xff]
      %v1140 = vld [vmem:[%s1 + $0x2c0] sm:$0xff]
      %v1141 = vld [vmem:[%s1 + $0x2c8] sm:$0xff]
      %v1142 = vld [vmem:[%s1 + $0x2d0] sm:$0xff]
      %v1143 = vld [vmem:[%s1 + $0x2d8] sm:$0xff]
      %v1144 = vld [vmem:[%s1 + $0x2e0] sm:$0xff]
      %v1145 = vld [vmem:[%s1 + $0x2e8] sm:$0xff]
      %v1146 = vld [vmem:[%s1 + $0x2f0] sm:$0xff]
      %v1147 = vld [vmem:[%s1 + $0x2f8] sm:$0xff]
      %v1148 = vld [vmem:[%s1 + $0x300] sm:$0xff]
      %v1149 = vld [vmem:[%s1 + $0x308] sm:$0xff]
      %v1150 = vld [vmem:[%s1 + $0x310] sm:$0xff]
      %v1151 = vld [vmem:[%s1 + $0x318] sm:$0xff]
      %v1152 = vld [vmem:[%s1 + $0x320] sm:$0xff]
      %v1153 = vld [vmem:[%s1 + $0x328] sm:$0xff]
      %v1154 = vld [vmem:[%s1 + $0x330] sm:$0xff]
      %v1155 = vld [vmem:[%s1 + $0x338] sm:$0xff]
      %v1156 = vld [vmem:[%s1 + $0x340] sm:$0xff]
      %v1157 = vld [vmem:[%s1 + $0x348] sm:$0xff]
      %v1158 = vld [vmem:[%s1 + $0x350] sm:$0xff]
      %v1159 = vld [vmem:[%s1 + $0x358] sm:$0xff]
      %v1160 = vld [vmem:[%s1 + $0x360] sm:$0xff]
      %v1161 = vld [vmem:[%s1 + $0x368] sm:$0xff]
      %v1162 = vld [vmem:[%s1 + $0x370] sm:$0xff]
      %v1163 = vld [vmem:[%s1 + $0x378] sm:$0xff]
      %v1164 = vld [vmem:[%s1 + $0x380] sm:$0xff]
      %v1165 = vld [vmem:[%s1 + $0x388] sm:$0xff]
      %v1166 = vld [vmem:[%s1 + $0x390] sm:$0xff]
      %v1167 = vld [vmem:[%s1 + $0x398] sm:$0xff]
      %v1168 = vld [vmem:[%s1 + $0x3a0] sm:$0xff]
      %v1169 = vld [vmem:[%s1 + $0x3a8] sm:$0xff]
      %v1170 = vld [vmem:[%s1 + $0x3b0] sm:$0xff]
      %v1171 = vld [vmem:[%s1 + $0x3b8] sm:$0xff]
      %v1172 = vld [vmem:[%s1 + $0x3c0] sm:$0xff]
      %v1173 = vld [vmem:[%s1 + $0x3c8] sm:$0xff]
      %v1174 = vld [vmem:[%s1 + $0x3d0] sm:$0xff]
      %v1175 = vld [vmem:[%s1 + $0x3d8] sm:$0xff]
      %v1176 = vld [vmem:[%s1 + $0x3e0] sm:$0xff]
      %v1177 = vld [vmem:[%s1 + $0x3e8] sm:$0xff]
      %v1178 = vld [vmem:[%s1 + $0x3f0] sm:$0xff]
      %v1179 = vld [vmem:[%s1 + $0x3f8] sm:$0xff]
      %v1180 = vld [vmem:[%s1 + $0x400] sm:$0xff]
      %v1181 = vld [vmem:[%s1 + $0x408] sm:$0xff]
      %v1182 = vld [vmem:[%s1 + $0x410] sm:$0xff]
      %v1183 = vld [vmem:[%s1 + $0x418] sm:$0xff]
      %v1184 = vld [vmem:[%s1 + $0x420] sm:$0xff]
      %v1185 = vld [vmem:[%s1 + $0x428] sm:$0xff]
      %v1186 = vld [vmem:[%s1 + $0x430] sm:$0xff]
      %v1187 = vld [vmem:[%s1 + $0x438] sm:$0xff]
      %v1188 = vld [vmem:[%s1 + $0x440] sm:$0xff]
      %v1189 = vld [vmem:[%s1 + $0x448] sm:$0xff]
      %v1190 = vld [vmem:[%s1 + $0x450] sm:$0xff]
      %v1191 = vld [vmem:[%s1 + $0x458] sm:$0xff]
      %v1192 = vld [vmem:[%s1 + $0x460] sm:$0xff]
      %v1193 = vld [vmem:[%s1 + $0x468] sm:$0xff]
      %v1194 = vld [vmem:[%s1 + $0x470] sm:$0xff]
      %v1195 = vld [vmem:[%s1 + $0x478] sm:$0xff]
      %v1196 = vld [vmem:[%s1 + $0x480] sm:$0xff]
      %v1197 = vld [vmem:[%s1 + $0x488] sm:$0xff]
      %v1198 = vld [vmem:[%s1 + $0x490] sm:$0xff]
      %v1199 = vld [vmem:[%s1 + $0x498] sm:$0xff]
      %v1200 = vld [vmem:[%s1 + $0x4a0] sm:$0xff]
      %v1201 = vld [vmem:[%s1 + $0x4a8] sm:$0xff]
      %v1202 = vld [vmem:[%s1 + $0x4b0] sm:$0xff]
      %v1203 = vld [vmem:[%s1 + $0x4b8] sm:$0xff]
      %v1204 = vld [vmem:[%s1 + $0x4c0] sm:$0xff]
      %v1205 = vld [vmem:[%s1 + $0x4c8] sm:$0xff]
      %v1206 = vld [vmem:[%s1 + $0x4d0] sm:$0xff]
      %v1207 = vld [vmem:[%s1 + $0x4d8] sm:$0xff]
      %v1208 = vld [vmem:[%s1 + $0x4e0] sm:$0xff]
      %v1209 = vld [vmem:[%s1 + $0x4e8] sm:$0xff]
      %v1210 = vld [vmem:[%s1 + $0x4f0] sm:$0xff]
      %v1211 = vld [vmem:[%s1 + $0x4f8] sm:$0xff]
      %v1212 = vld [vmem:[%s1 + $0x500] sm:$0xff]
      %v1213 = vld [vmem:[%s1 + $0x508] sm:$0xff]
      %v1214 = vld [vmem:[%s1 + $0x510] sm:$0xff]
      %v1215 = vld [vmem:[%s1 + $0x518] sm:$0xff]
      %v1216 = vld [vmem:[%s1 + $0x520] sm:$0xff]
      %v1217 = vld [vmem:[%s1 + $0x528] sm:$0xff]
      %v1218 = vld [vmem:[%s1 + $0x530] sm:$0xff]
      %v1219 = vld [vmem:[%s1 + $0x538] sm:$0xff]
      %v1220 = vld [vmem:[%s1 + $0x540] sm:$0xff]
      %v1221 = vld [vmem:[%s1 + $0x548] sm:$0xff]
      %v1222 = vld [vmem:[%s1 + $0x550] sm:$0xff]
      %v1223 = vld [vmem:[%s1 + $0x558] sm:$0xff]
      %v1224 = vld [vmem:[%s1 + $0x560] sm:$0xff]
      %v1225 = vld [vmem:[%s1 + $0x568] sm:$0xff]
      %v1226 = vld [vmem:[%s1 + $0x570] sm:$0xff]
      %v1227 = vld [vmem:[%s1 + $0x578] sm:$0xff]
      %v1228 = vld [vmem:[%s1 + $0x580] sm:$0xff]
      %v1229 = vld [vmem:[%s1 + $0x588] sm:$0xff]
      %v1230 = vld [vmem:[%s1 + $0x590] sm:$0xff]
      %v1231 = vld [vmem:[%s1 + $0x598] sm:$0xff]
      %v1232 = vld [vmem:[%s1 + $0x5a0] sm:$0xff]
      %v1233 = vld [vmem:[%s1 + $0x5a8] sm:$0xff]
      %v1234 = vld [vmem:[%s1 + $0x5b0] sm:$0xff]
      %v1235 = vld [vmem:[%s1 + $0x5b8] sm:$0xff]
      %v1236 = vld [vmem:[%s1 + $0x5c0] sm:$0xff]
      %v1237 = vld [vmem:[%s1 + $0x5c8] sm:$0xff]
      %v1238 = vld [vmem:[%s1 + $0x5d0] sm:$0xff]
      %v1239 = vld [vmem:[%s1 + $0x5d8] sm:$0xff]
      %v1240 = vld [vmem:[%s1 + $0x5e0] sm:$0xff]
      %v1241 = vld [vmem:[%s1 + $0x5e8] sm:$0xff]
      %v1242 = vld [vmem:[%s1 + $0x5f0] sm:$0xff]
      %v1243 = vld [vmem:[%s1 + $0x5f8] sm:$0xff]
      %v1244 = vld [vmem:[%s1 + $0x600] sm:$0xff]
      %v1245 = vld [vmem:[%s1 + $0x608] sm:$0xff]
      %v1246 = vld [vmem:[%s1 + $0x610] sm:$0xff]
      %v1247 = vld [vmem:[%s1 + $0x618] sm:$0xff]
      %v1248 = vld [vmem:[%s1 + $0x620] sm:$0xff]
      %v1249 = vld [vmem:[%s1 + $0x628] sm:$0xff]
      %v1250 = vld [vmem:[%s1 + $0x630] sm:$0xff]
      %v1251 = vld [vmem:[%s1 + $0x638] sm:$0xff]
      %v1252 = vld [vmem:[%s1 + $0x640] sm:$0xff]
      %v1253 = vld [vmem:[%s1 + $0x648] sm:$0xff]
      %v1254 = vld [vmem:[%s1 + $0x650] sm:$0xff]
      %v1255 = vld [vmem:[%s1 + $0x658] sm:$0xff]
      %v1256 = vld [vmem:[%s1 + $0x660] sm:$0xff]
      %v1257 = vld [vmem:[%s1 + $0x668] sm:$0xff]
      %v1258 = vld [vmem:[%s1 + $0x670] sm:$0xff]
      %v1259 = vld [vmem:[%s1 + $0x678] sm:$0xff]
      %v1260 = vld [vmem:[%s1 + $0x680] sm:$0xff]
      %v1261 = vld [vmem:[%s1 + $0x688] sm:$0xff]
      %v1262 = vld [vmem:[%s1 + $0x690] sm:$0xff]
      %v1263 = vld [vmem:[%s1 + $0x698] sm:$0xff]
      %v1264 = vld [vmem:[%s1 + $0x6a0] sm:$0xff]
      %v1265 = vld [vmem:[%s1 + $0x6a8] sm:$0xff]
      %v1266 = vld [vmem:[%s1 + $0x6b0] sm:$0xff]
      %v1267 = vld [vmem:[%s1 + $0x6b8] sm:$0xff]
      %v1268 = vld [vmem:[%s1 + $0x6c0] sm:$0xff]
      %v1269 = vld [vmem:[%s1 + $0x6c8] sm:$0xff]
      %v1270 = vld [vmem:[%s1 + $0x6d0] sm:$0xff]
      %v1271 = vld [vmem:[%s1 + $0x6d8] sm:$0xff]
      %v1272 = vld [vmem:[%s1 + $0x6e0] sm:$0xff]
      %v1273 = vld [vmem:[%s1 + $0x6e8] sm:$0xff]
      %v1274 = vld [vmem:[%s1 + $0x6f0] sm:$0xff]
      %v1275 = vld [vmem:[%s1 + $0x6f8] sm:$0xff]
      %v1276 = vld [vmem:[%s1 + $0x700] sm:$0xff]
      %v1277 = vld [vmem:[%s1 + $0x708] sm:$0xff]
      %v1278 = vld [vmem:[%s1 + $0x710] sm:$0xff]
      %v1279 = vld [vmem:[%s1 + $0x718] sm:$0xff]
      %v1280 = vld [vmem:[%s1 + $0x720] sm:$0xff]
      %v1281 = vld [vmem:[%s1 + $0x728] sm:$0xff]
      %v1282 = vld [vmem:[%s1 + $0x730] sm:$0xff]
      %v1283 = vld [vmem:[%s1 + $0x738] sm:$0xff]
      %v1284 = vld [vmem:[%s1 + $0x740] sm:$0xff]
      %v1285 = vld [vmem:[%s1 + $0x748] sm:$0xff]
      %v1286 = vld [vmem:[%s1 + $0x750] sm:$0xff]
      %v1287 = vld [vmem:[%s1 + $0x758] sm:$0xff]
      %v1288 = vld [vmem:[%s1 + $0x760] sm:$0xff]
      %v1289 = vld [vmem:[%s1 + $0x768] sm:$0xff]
      %v1290 = vld [vmem:[%s1 + $0x770] sm:$0xff]
      %v1291 = vld [vmem:[%s1 + $0x778] sm:$0xff]
      %v1292 = vld [vmem:[%s1 + $0x780] sm:$0xff]
      %v1293 = vld [vmem:[%s1 + $0x788] sm:$0xff]
      %v1294 = vld [vmem:[%s1 + $0x790] sm:$0xff]
      %v1295 = vld [vmem:[%s1 + $0x798] sm:$0xff]
      %v1296 = vld [vmem:[%s1 + $0x7a0] sm:$0xff]
      %v1297 = vld [vmem:[%s1 + $0x7a8] sm:$0xff]
      %v1298 = vld [vmem:[%s1 + $0x7b0] sm:$0xff]
      %v1299 = vld [vmem:[%s1 + $0x7b8] sm:$0xff]
      %v1300 = vld [vmem:[%s1 + $0x7c0] sm:$0xff]
      %v1301 = vld [vmem:[%s1 + $0x7c8] sm:$0xff]
      %v1302 = vld [vmem:[%s1 + $0x7d0] sm:$0xff]
      %v1303 = vld [vmem:[%s1 + $0x7d8] sm:$0xff]
      %v1304 = vld [vmem:[%s1 + $0x7e0] sm:$0xff]
      %v1305 = vld [vmem:[%s1 + $0x7e8] sm:$0xff]
      %v1306 = vld [vmem:[%s1 + $0x7f0] sm:$0xff]
      %v1307 = vld [vmem:[%s1 + $0x7f8] sm:$0xff]
      %1308 = vmatprep.subr.mxu0 %v1053
      %1309 = vmatpush1.msra.mxu0 %v1052
      %1310 = vmatprep.subr.mxu0 %v1057
      %1311 = vmatpush1.msra.mxu0 %v1056
      %1312 = vmatprep.subr.mxu0 %v1061
      %1313 = vmatpush1.msra.mxu0 %v1060
      %1314 = vmatprep.subr.mxu0 %v1065
      %1315 = vmatpush1.msra.mxu0 %v1064
      %1316 = vmatprep.subr.mxu0 %v1069
      %1317 = vmatpush1.msra.mxu0 %v1068
      %1318 = vmatprep.subr.mxu0 %v1073
      %1319 = vmatpush1.msra.mxu0 %v1072
      %1320 = vmatprep.subr.mxu0 %v1077
      %1321 = vmatpush1.msra.mxu0 %v1076
      %1322 = vmatprep.subr.mxu0 %v1081
      %1323 = vmatpush1.msra.mxu0 %v1080
      %1324 = vmatprep.subr.mxu0 %v1085
      %1325 = vmatpush1.msra.mxu0 %v1084
      %1326 = vmatprep.subr.mxu0 %v1089
      %1327 = vmatpush1.msra.mxu0 %v1088
      %1328 = vmatprep.subr.mxu0 %v1093
      %1329 = vmatpush1.msra.mxu0 %v1092
      %1330 = vmatprep.subr.mxu0 %v1097
      %1331 = vmatpush1.msra.mxu0 %v1096
      %1332 = vmatprep.subr.mxu0 %v1101
      %1333 = vmatpush1.msra.mxu0 %v1100
      %1334 = vmatprep.subr.mxu0 %v1105
      %1335 = vmatpush1.msra.mxu0 %v1104
      %1336 = vmatprep.subr.mxu0 %v1109
      %1337 = vmatpush1.msra.mxu0 %v1108
      %1338 = vmatprep.subr.mxu0 %v1113
      %1339 = vmatpush1.msra.mxu0 %v1112
      %1340 = vmatprep.subr.mxu0 %v1117
      %1341 = vmatpush1.msra.mxu0 %v1116
      %1342 = vmatprep.subr.mxu0 %v1121
      %1343 = vmatpush1.msra.mxu0 %v1120
      %1344 = vmatprep.subr.mxu0 %v1125
      %1345 = vmatpush1.msra.mxu0 %v1124
      %1346 = vmatprep.subr.mxu0 %v1129
      %1347 = vmatpush1.msra.mxu0 %v1128
      %1348 = vmatprep.subr.mxu0 %v1133
      %1349 = vmatpush1.msra.mxu0 %v1132
      %1350 = vmatprep.subr.mxu0 %v1137
      %1351 = vmatpush1.msra.mxu0 %v1136
      %1352 = vmatprep.subr.mxu0 %v1141
      %1353 = vmatpush1.msra.mxu0 %v1140
      %1354 = vmatprep.subr.mxu0 %v1145
      %1355 = vmatpush1.msra.mxu0 %v1144
      %1356 = vmatprep.subr.mxu0 %v1149
      %1357 = vmatpush1.msra.mxu0 %v1148
      %1358 = vmatprep.subr.mxu0 %v1153
      %1359 = vmatpush1.msra.mxu0 %v1152
      %1360 = vmatprep.subr.mxu0 %v1157
      %1361 = vmatpush1.msra.mxu0 %v1156
      %1362 = vmatprep.subr.mxu0 %v1161
      %1363 = vmatpush1.msra.mxu0 %v1160
      %1364 = vmatprep.subr.mxu0 %v1165
      %1365 = vmatpush1.msra.mxu0 %v1164
      %1366 = vmatprep.subr.mxu0 %v1169
      %1367 = vmatpush1.msra.mxu0 %v1168
      %1368 = vmatprep.subr.mxu0 %v1173
      %1369 = vmatpush1.msra.mxu0 %v1172
      %1370 = vmatprep.subr.mxu0 %v1177
      %1371 = vmatpush1.msra.mxu0 %v1176
      %1372 = vmatprep.mubr.f32.mxu0 %v943
      %1373 = vmatmul.mubr.f32.gmra.mrb[0].mxu0 %v941
      %v1374 = vpop.f32.mrb[0].mxu0
      %v1375 = vadd.f32 0.0, %v1374
      %v1376 = vpop.f32.mrb[0].mxu0
      %v1377 = vadd.f32 0.0, %v1376
      %1378 = vmatprep.mubr.f32.mxu0 %v949
      %1379 = vmatmul.mubr.f32.gmra.mrb[0].mxu0 %v947
      %v1380 = vpop.f32.mrb[0].mxu0
      %v1381 = vadd.f32 0.0, %v1380
      %v1382 = vpop.f32.mrb[0].mxu0
      %v1383 = vadd.f32 0.0, %v1382
      %1384 = vmatprep.mubr.f32.mxu0 %v955
      %1385 = vmatmul.mubr.f32.gmra.mrb[0].mxu0 %v953
      %v1386 = vpop.f32.mrb[0].mxu0
      %v1387 = vadd.f32 0.0, %v1386
      %v1388 = vpop.f32.mrb[0].mxu0
      %v1389 = vadd.f32 0.0, %v1388
      %1390 = vmatprep.mubr.f32.mxu0 %v961
      %1391 = vmatmul.mubr.f32.gmra.mrb[0].mxu0 %v959
      %v1392 = vpop.f32.mrb[0].mxu0
      %v1393 = vadd.f32 0.0, %v1392
      %v1394 = vpop.f32.mrb[0].mxu0
      %v1395 = vadd.f32 0.0, %v1394
      %1396 = vdwg.mxu0
      %1397 = vmatprep.subr.mxu0 %v1181
      %1398 = vmatpush1.msra.mxu0 %v1180
      %1399 = vmatprep.subr.mxu0 %v1185
      %1400 = vmatpush1.msra.mxu0 %v1184
      %1401 = vmatprep.subr.mxu0 %v1189
      %1402 = vmatpush1.msra.mxu0 %v1188
      %1403 = vmatprep.subr.mxu0 %v1193
      %1404 = vmatpush1.msra.mxu0 %v1192
      %1405 = vmatprep.subr.mxu0 %v1197
      %1406 = vmatpush1.msra.mxu0 %v1196
      %1407 = vmatprep.subr.mxu0 %v1201
      %1408 = vmatpush1.msra.mxu0 %v1200
      %1409 = vmatprep.subr.mxu0 %v1205
      %1410 = vmatpush1.msra.mxu0 %v1204
      %1411 = vmatprep.subr.mxu0 %v1209
      %1412 = vmatpush1.msra.mxu0 %v1208
      %1413 = vmatprep.subr.mxu0 %v1213
      %1414 = vmatpush1.msra.mxu0 %v1212
      %1415 = vmatprep.subr.mxu0 %v1217
      %1416 = vmatpush1.msra.mxu0 %v1216
      %1417 = vmatprep.subr.mxu0 %v1221
      %1418 = vmatpush1.msra.mxu0 %v1220
      %1419 = vmatprep.subr.mxu0 %v1225
      %1420 = vmatpush1.msra.mxu0 %v1224
      %1421 = vmatprep.subr.mxu0 %v1229
      %1422 = vmatpush1.msra.mxu0 %v1228
      %1423 = vmatprep.subr.mxu0 %v1233
      %1424 = vmatpush1.msra.mxu0 %v1232
      %1425 = vmatprep.subr.mxu0 %v1237
      %1426 = vmatpush1.msra.mxu0 %v1236
      %1427 = vmatprep.subr.mxu0 %v1241
      %1428 = vmatpush1.msra.mxu0 %v1240
      %1429 = vmatprep.subr.mxu0 %v1245
      %1430 = vmatpush1.msra.mxu0 %v1244
      %1431 = vmatprep.subr.mxu0 %v1249
      %1432 = vmatpush1.msra.mxu0 %v1248
      %1433 = vmatprep.subr.mxu0 %v1253
      %1434 = vmatpush1.msra.mxu0 %v1252
      %1435 = vmatprep.subr.mxu0 %v1257
      %1436 = vmatpush1.msra.mxu0 %v1256
      %1437 = vmatprep.subr.mxu0 %v1261
      %1438 = vmatpush1.msra.mxu0 %v1260
      %1439 = vmatprep.subr.mxu0 %v1265
      %1440 = vmatpush1.msra.mxu0 %v1264
      %1441 = vmatprep.subr.mxu0 %v1269
      %1442 = vmatpush1.msra.mxu0 %v1268
      %1443 = vmatprep.subr.mxu0 %v1273
      %1444 = vmatpush1.msra.mxu0 %v1272
      %1445 = vmatprep.subr.mxu0 %v1277
      %1446 = vmatpush1.msra.mxu0 %v1276
      %1447 = vmatprep.subr.mxu0 %v1281
      %1448 = vmatpush1.msra.mxu0 %v1280
      %1449 = vmatprep.subr.mxu0 %v1285
      %1450 = vmatpush1.msra.mxu0 %v1284
      %1451 = vmatprep.subr.mxu0 %v1289
      %1452 = vmatpush1.msra.mxu0 %v1288
      %1453 = vmatprep.subr.mxu0 %v1293
      %1454 = vmatpush1.msra.mxu0 %v1292
      %1455 = vmatprep.subr.mxu0 %v1297
      %1456 = vmatpush1.msra.mxu0 %v1296
      %1457 = vmatprep.subr.mxu0 %v1301
      %1458 = vmatpush1.msra.mxu0 %v1300
      %1459 = vmatprep.subr.mxu0 %v1305
      %1460 = vmatpush1.msra.mxu0 %v1304
      %1461 = vmatprep.mubr.f32.mxu0 %v1032
      %1462 = vmatmul.mubr.f32.gmra.mrb[0].mxu0 %v1030
      %v1463 = vpop.f32.mrb[0].mxu0
      %v1464 = vadd.f32 %v1375, %v1463
      %v1465 = vpop.f32.mrb[0].mxu0
      %v1466 = vadd.f32 %v1377, %v1465
      %1467 = vmatprep.mubr.f32.mxu0 %v1038
      %1468 = vmatmul.mubr.f32.gmra.mrb[0].mxu0 %v1036
      %v1469 = vpop.f32.mrb[0].mxu0
      %v1470 = vadd.f32 %v1381, %v1469
      %v1471 = vpop.f32.mrb[0].mxu0
      %v1472 = vadd.f32 %v1383, %v1471
      %1473 = vmatprep.mubr.f32.mxu0 %v1044
      %1474 = vmatmul.mubr.f32.gmra.mrb[0].mxu0 %v1042
      %v1475 = vpop.f32.mrb[0].mxu0
      %v1476 = vadd.f32 %v1387, %v1475
      %v1477 = vpop.f32.mrb[0].mxu0
      %v1478 = vadd.f32 %v1389, %v1477
      %1479 = vmatprep.mubr.f32.mxu0 %v1050
      %1480 = vmatmul.mubr.f32.gmra.mrb[0].mxu0 %v1048
      %v1481 = vpop.f32.mrb[0].mxu0
      %v1482 = vadd.f32 %v1393, %v1481
      %v1483 = vpop.f32.mrb[0].mxu0
      %v1484 = vadd.f32 %v1395, %v1483
      %1485 = vdwg.mxu0
      %1486 = vmatprep.subr.mxu0 %v1055
      %1487 = vmatpush1.msra.mxu0 %v1054
      %1488 = vmatprep.subr.mxu0 %v1059
      %1489 = vmatpush1.msra.mxu0 %v1058
      %1490 = vmatprep.subr.mxu0 %v1063
      %1491 = vmatpush1.msra.mxu0 %v1062
      %1492 = vmatprep.subr.mxu0 %v1067
      %1493 = vmatpush1.msra.mxu0 %v1066
      %1494 = vmatprep.subr.mxu0 %v1071
      %1495 = vmatpush1.msra.mxu0 %v1070
      %1496 = vmatprep.subr.mxu0 %v1075
      %1497 = vmatpush1.msra.mxu0 %v1074
      %1498 = vmatprep.subr.mxu0 %v1079
      %1499 = vmatpush1.msra.mxu0 %v1078
      %1500 = vmatprep.subr.mxu0 %v1083
      %1501 = vmatpush1.msra.mxu0 %v1082
      %1502 = vmatprep.subr.mxu0 %v1087
      %1503 = vmatpush1.msra.mxu0 %v1086
      %1504 = vmatprep.subr.mxu0 %v1091
      %1505 = vmatpush1.msra.mxu0 %v1090
      %1506 = vmatprep.subr.mxu0 %v1095
      %1507 = vmatpush1.msra.mxu0 %v1094
      %1508 = vmatprep.subr.mxu0 %v1099
      %1509 = vmatpush1.msra.mxu0 %v1098
      %1510 = vmatprep.subr.mxu0 %v1103
      %1511 = vmatpush1.msra.mxu0 %v1102
      %1512 = vmatprep.subr.mxu0 %v1107
      %1513 = vmatpush1.msra.mxu0 %v1106
      %1514 = vmatprep.subr.mxu0 %v1111
      %1515 = vmatpush1.msra.mxu0 %v1110
      %1516 = vmatprep.subr.mxu0 %v1115
      %1517 = vmatpush1.msra.mxu0 %v1114
      %1518 = vmatprep.subr.mxu0 %v1119
      %1519 = vmatpush1.msra.mxu0 %v1118
      %1520 = vmatprep.subr.mxu0 %v1123
      %1521 = vmatpush1.msra.mxu0 %v1122
      %1522 = vmatprep.subr.mxu0 %v1127
      %1523 = vmatpush1.msra.mxu0 %v1126
      %1524 = vmatprep.subr.mxu0 %v1131
      %1525 = vmatpush1.msra.mxu0 %v1130
      %1526 = vmatprep.subr.mxu0 %v1135
      %1527 = vmatpush1.msra.mxu0 %v1134
      %1528 = vmatprep.subr.mxu0 %v1139
      %1529 = vmatpush1.msra.mxu0 %v1138
      %1530 = vmatprep.subr.mxu0 %v1143
      %1531 = vmatpush1.msra.mxu0 %v1142
      %1532 = vmatprep.subr.mxu0 %v1147
      %1533 = vmatpush1.msra.mxu0 %v1146
      %1534 = vmatprep.subr.mxu0 %v1151
      %1535 = vmatpush1.msra.mxu0 %v1150
      %1536 = vmatprep.subr.mxu0 %v1155
      %1537 = vmatpush1.msra.mxu0 %v1154
      %1538 = vmatprep.subr.mxu0 %v1159
      %1539 = vmatpush1.msra.mxu0 %v1158
      %1540 = vmatprep.subr.mxu0 %v1163
      %1541 = vmatpush1.msra.mxu0 %v1162
      %1542 = vmatprep.subr.mxu0 %v1167
      %1543 = vmatpush1.msra.mxu0 %v1166
      %1544 = vmatprep.subr.mxu0 %v1171
      %1545 = vmatpush1.msra.mxu0 %v1170
      %1546 = vmatprep.subr.mxu0 %v1175
      %1547 = vmatpush1.msra.mxu0 %v1174
      %1548 = vmatprep.subr.mxu0 %v1179
      %1549 = vmatpush1.msra.mxu0 %v1178
      %1550 = vmatprep.mubr.f32.mxu0 %v943
      %1551 = vmatmul.mubr.f32.gmra.mrb[0].mxu0 %v941
      %v1552 = vpop.f32.mrb[0].mxu0
      %v1553 = vadd.f32 0.0, %v1552
      %v1554 = vpop.f32.mrb[0].mxu0
      %v1555 = vadd.f32 0.0, %v1554
      %1556 = vmatprep.mubr.f32.mxu0 %v949
      %1557 = vmatmul.mubr.f32.gmra.mrb[0].mxu0 %v947
      %v1558 = vpop.f32.mrb[0].mxu0
      %v1559 = vadd.f32 0.0, %v1558
      %v1560 = vpop.f32.mrb[0].mxu0
      %v1561 = vadd.f32 0.0, %v1560
      %1562 = vmatprep.mubr.f32.mxu0 %v955
      %1563 = vmatmul.mubr.f32.gmra.mrb[0].mxu0 %v953
      %v1564 = vpop.f32.mrb[0].mxu0
      %v1565 = vadd.f32 0.0, %v1564
      %v1566 = vpop.f32.mrb[0].mxu0
      %v1567 = vadd.f32 0.0, %v1566
      %1568 = vmatprep.mubr.f32.mxu0 %v961
      %1569 = vmatmul.mubr.f32.gmra.mrb[0].mxu0 %v959
      %v1570 = vpop.f32.mrb[0].mxu0
      %v1571 = vadd.f32 0.0, %v1570
      %v1572 = vpop.f32.mrb[0].mxu0
      %v1573 = vadd.f32 0.0, %v1572
      %1574 = vdwg.mxu0
      %1575 = vmatprep.subr.mxu0 %v1183
      %1576 = vmatpush1.msra.mxu0 %v1182
      %1577 = vmatprep.subr.mxu0 %v1187
      %1578 = vmatpush1.msra.mxu0 %v1186
      %1579 = vmatprep.subr.mxu0 %v1191
      %1580 = vmatpush1.msra.mxu0 %v1190
      %1581 = vmatprep.subr.mxu0 %v1195
      %1582 = vmatpush1.msra.mxu0 %v1194
      %1583 = vmatprep.subr.mxu0 %v1199
      %1584 = vmatpush1.msra.mxu0 %v1198
      %1585 = vmatprep.subr.mxu0 %v1203
      %1586 = vmatpush1.msra.mxu0 %v1202
      %1587 = vmatprep.subr.mxu0 %v1207
      %1588 = vmatpush1.msra.mxu0 %v1206
      %1589 = vmatprep.subr.mxu0 %v1211
      %1590 = vmatpush1.msra.mxu0 %v1210
      %1591 = vmatprep.subr.mxu0 %v1215
      %1592 = vmatpush1.msra.mxu0 %v1214
      %1593 = vmatprep.subr.mxu0 %v1219
      %1594 = vmatpush1.msra.mxu0 %v1218
      %1595 = vmatprep.subr.mxu0 %v1223
      %1596 = vmatpush1.msra.mxu0 %v1222
      %1597 = vmatprep.subr.mxu0 %v1227
      %1598 = vmatpush1.msra.mxu0 %v1226
      %1599 = vmatprep.subr.mxu0 %v1231
      %1600 = vmatpush1.msra.mxu0 %v1230
      %1601 = vmatprep.subr.mxu0 %v1235
      %1602 = vmatpush1.msra.mxu0 %v1234
      %1603 = vmatprep.subr.mxu0 %v1239
      %1604 = vmatpush1.msra.mxu0 %v1238
      %1605 = vmatprep.subr.mxu0 %v1243
      %1606 = vmatpush1.msra.mxu0 %v1242
      %1607 = vmatprep.subr.mxu0 %v1247
      %1608 = vmatpush1.msra.mxu0 %v1246
      %1609 = vmatprep.subr.mxu0 %v1251
      %1610 = vmatpush1.msra.mxu0 %v1250
      %1611 = vmatprep.subr.mxu0 %v1255
      %1612 = vmatpush1.msra.mxu0 %v1254
      %1613 = vmatprep.subr.mxu0 %v1259
      %1614 = vmatpush1.msra.mxu0 %v1258
      %1615 = vmatprep.subr.mxu0 %v1263
      %1616 = vmatpush1.msra.mxu0 %v1262
      %1617 = vmatprep.subr.mxu0 %v1267
      %1618 = vmatpush1.msra.mxu0 %v1266
      %1619 = vmatprep.subr.mxu0 %v1271
      %1620 = vmatpush1.msra.mxu0 %v1270
      %1621 = vmatprep.subr.mxu0 %v1275
      %1622 = vmatpush1.msra.mxu0 %v1274
      %1623 = vmatprep.subr.mxu0 %v1279
      %1624 = vmatpush1.msra.mxu0 %v1278
      %1625 = vmatprep.subr.mxu0 %v1283
      %1626 = vmatpush1.msra.mxu0 %v1282
      %1627 = vmatprep.subr.mxu0 %v1287
      %1628 = vmatpush1.msra.mxu0 %v1286
      %1629 = vmatprep.subr.mxu0 %v1291
      %1630 = vmatpush1.msra.mxu0 %v1290
      %1631 = vmatprep.subr.mxu0 %v1295
      %1632 = vmatpush1.msra.mxu0 %v1294
      %1633 = vmatprep.subr.mxu0 %v1299
      %1634 = vmatpush1.msra.mxu0 %v1298
      %1635 = vmatprep.subr.mxu0 %v1303
      %1636 = vmatpush1.msra.mxu0 %v1302
      %1637 = vmatprep.subr.mxu0 %v1307
      %1638 = vmatpush1.msra.mxu0 %v1306
      %1639 = vmatprep.mubr.f32.mxu0 %v1032
      %1640 = vmatmul.mubr.f32.gmra.mrb[0].mxu0 %v1030
      %v1641 = vpop.f32.mrb[0].mxu0
      %v1642 = vadd.f32 %v1553, %v1641
      %v1643 = vpop.f32.mrb[0].mxu0
      %v1644 = vadd.f32 %v1555, %v1643
      %1645 = vmatprep.mubr.f32.mxu0 %v1038
      %1646 = vmatmul.mubr.f32.gmra.mrb[0].mxu0 %v1036
      %v1647 = vpop.f32.mrb[0].mxu0
      %v1648 = vadd.f32 %v1559, %v1647
      %v1649 = vpop.f32.mrb[0].mxu0
      %v1650 = vadd.f32 %v1561, %v1649
      %1651 = vmatprep.mubr.f32.mxu0 %v1044
      %1652 = vmatmul.mubr.f32.gmra.mrb[0].mxu0 %v1042
      %v1653 = vpop.f32.mrb[0].mxu0
      %v1654 = vadd.f32 %v1565, %v1653
      %v1655 = vpop.f32.mrb[0].mxu0
      %v1656 = vadd.f32 %v1567, %v1655
      %1657 = vmatprep.mubr.f32.mxu0 %v1050
      %1658 = vmatmul.mubr.f32.gmra.mrb[0].mxu0 %v1048
      %v1659 = vpop.f32.mrb[0].mxu0
      %v1660 = vadd.f32 %v1571, %v1659
      %v1661 = vpop.f32.mrb[0].mxu0
      %v1662 = vadd.f32 %v1573, %v1661
      %1663 = vdwg.mxu0
      %v1664 = vadd.f32 %v657, %v1464
      %v1665 = vadd.f32 %v659, %v1466
      %v1666 = vadd.f32 %v835, %v1642
      %v1667 = vadd.f32 %v837, %v1644
      %v1668 = vadd.f32 %v663, %v1470
      %v1669 = vadd.f32 %v665, %v1472
      %v1670 = vadd.f32 %v841, %v1648
      %v1671 = vadd.f32 %v843, %v1650
      %v1672 = vadd.f32 %v669, %v1476
      %v1673 = vadd.f32 %v671, %v1478
      %v1674 = vadd.f32 %v847, %v1654
      %v1675 = vadd.f32 %v849, %v1656
      %v1676 = vadd.f32 %v675, %v1482
      %v1677 = vadd.f32 %v677, %v1484
      %v1678 = vadd.f32 %v853, %v1660
      %v1679 = vadd.f32 %v855, %v1662
      %s1680 = scalar_lea.vmem %s2, 32
      %v1681 = vld [vmem:[%s1680] sm:$0xff]
      %v1682 = vld [vmem:[%s1680 + $0x8] sm:$0xff]
      %v1683 = vld [vmem:[%s1680 + $0x10] sm:$0xff]
      %v1684 = vld [vmem:[%s1680 + $0x18] sm:$0xff]
      %v1686 = vsel %vm861, %v1681, 0
      %v1689 = vsel %vm861, %v1682, 0
      %v1692 = vsel %vm861, %v1683, 0
      %v1695 = vsel %vm861, %v1684, 0
      %1697 = vmatprep.subr.mxu0 %v207
      %1698 = vmatpush1.msra.mxu0 %v206
      %1699 = vmatprep.subr.mxu0 %v211
      %1700 = vmatpush1.msra.mxu0 %v210
      %1701 = vmatprep.subr.mxu0 %v215
      %1702 = vmatpush1.msra.mxu0 %v214
      %1703 = vmatprep.subr.mxu0 %v219
      %1704 = vmatpush1.msra.mxu0 %v218
      %1705 = vmatprep.subr.mxu0 0.0
      %1706 = vmatpush1.msra.mxu0 0.0
      %1707 = vmatprep.subr.mxu0 0.0
      %1708 = vmatpush1.msra.mxu0 0.0
      %1709 = vmatprep.subr.mxu0 0.0
      %1710 = vmatpush1.msra.mxu0 0.0
      %1711 = vmatprep.subr.mxu0 0.0
      %1712 = vmatpush1.msra.mxu0 0.0
      %1713 = vmatprep.subr.mxu0 0.0
      %1714 = vmatpush1.msra.mxu0 0.0
      %1715 = vmatprep.subr.mxu0 0.0
      %1716 = vmatpush1.msra.mxu0 0.0
      %1717 = vmatprep.subr.mxu0 0.0
      %1718 = vmatpush1.msra.mxu0 0.0
      %1719 = vmatprep.subr.mxu0 0.0
      %1720 = vmatpush1.msra.mxu0 0.0
      %1721 = vmatprep.subr.mxu0 0.0
      %1722 = vmatpush1.msra.mxu0 0.0
      %1723 = vmatprep.subr.mxu0 0.0
      %1724 = vmatpush1.msra.mxu0 0.0
      %1725 = vmatprep.subr.mxu0 0.0
      %1726 = vmatpush1.msra.mxu0 0.0
      %1727 = vmatprep.subr.mxu0 0.0
      %1728 = vmatpush1.msra.mxu0 0.0
      %1729 = vmatprep.subr.mxu0 0.0
      %1730 = vmatpush1.msra.mxu0 0.0
      %1731 = vmatprep.subr.mxu0 0.0
      %1732 = vmatpush1.msra.mxu0 0.0
      %1733 = vmatprep.subr.mxu0 0.0
      %1734 = vmatpush1.msra.mxu0 0.0
      %1735 = vmatprep.subr.mxu0 0.0
      %1736 = vmatpush1.msra.mxu0 0.0
      %1737 = vmatprep.subr.mxu0 0.0
      %1738 = vmatpush1.msra.mxu0 0.0
      %1739 = vmatprep.subr.mxu0 0.0
      %1740 = vmatpush1.msra.mxu0 0.0
      %1741 = vmatprep.subr.mxu0 0.0
      %1742 = vmatpush1.msra.mxu0 0.0
      %1743 = vmatprep.subr.mxu0 0.0
      %1744 = vmatpush1.msra.mxu0 0.0
      %1745 = vmatprep.subr.mxu0 0.0
      %1746 = vmatpush1.msra.mxu0 0.0
      %1747 = vmatprep.subr.mxu0 0.0
      %1748 = vmatpush1.msra.mxu0 0.0
      %1749 = vmatprep.subr.mxu0 0.0
      %1750 = vmatpush1.msra.mxu0 0.0
      %1751 = vmatprep.subr.mxu0 0.0
      %1752 = vmatpush1.msra.mxu0 0.0
      %1753 = vmatprep.subr.mxu0 0.0
      %1754 = vmatpush1.msra.mxu0 0.0
      %1755 = vmatprep.subr.mxu0 0.0
      %1756 = vmatpush1.msra.mxu0 0.0
      %1757 = vmatprep.subr.mxu0 0.0
      %1758 = vmatpush1.msra.mxu0 0.0
      %1759 = vmatprep.subr.mxu0 0.0
      %1760 = vmatpush1.msra.mxu0 0.0
      %1761 = vmatprep.mubr.f32.mxu0 0.0
      %1762 = vmatmul.mubr.f32.gmra.mrb[0].mxu0 %v1686
      %v1763 = vpop.f32.mrb[0].mxu0
      %v1764 = vadd.f32 0.0, %v1763
      %v1765 = vpop.f32.mrb[0].mxu0
      %v1766 = vadd.f32 0.0, %v1765
      %1767 = vmatprep.mubr.f32.mxu0 0.0
      %1768 = vmatmul.mubr.f32.gmra.mrb[0].mxu0 %v1689
      %v1769 = vpop.f32.mrb[0].mxu0
      %v1770 = vadd.f32 0.0, %v1769
      %v1771 = vpop.f32.mrb[0].mxu0
      %v1772 = vadd.f32 0.0, %v1771
      %1773 = vmatprep.mubr.f32.mxu0 0.0
      %1774 = vmatmul.mubr.f32.gmra.mrb[0].mxu0 %v1692
      %v1775 = vpop.f32.mrb[0].mxu0
      %v1776 = vadd.f32 0.0, %v1775
      %v1777 = vpop.f32.mrb[0].mxu0
      %v1778 = vadd.f32 0.0, %v1777
      %1779 = vmatprep.mubr.f32.mxu0 0.0
      %1780 = vmatmul.mubr.f32.gmra.mrb[0].mxu0 %v1695
      %v1781 = vpop.f32.mrb[0].mxu0
      %v1782 = vadd.f32 0.0, %v1781
      %v1783 = vpop.f32.mrb[0].mxu0
      %v1784 = vadd.f32 0.0, %v1783
      %1785 = vdwg.mxu0
      %1786 = vmatprep.subr.mxu0 %v209
      %1787 = vmatpush1.msra.mxu0 %v208
      %1788 = vmatprep.subr.mxu0 %v213
      %1789 = vmatpush1.msra.mxu0 %v212
      %1790 = vmatprep.subr.mxu0 %v217
      %1791 = vmatpush1.msra.mxu0 %v216
      %1792 = vmatprep.subr.mxu0 %v221
      %1793 = vmatpush1.msra.mxu0 %v220
      %1794 = vmatprep.subr.mxu0 0.0
      %1795 = vmatpush1.msra.mxu0 0.0
      %1796 = vmatprep.subr.mxu0 0.0
      %1797 = vmatpush1.msra.mxu0 0.0
      %1798 = vmatprep.subr.mxu0 0.0
      %1799 = vmatpush1.msra.mxu0 0.0
      %1800 = vmatprep.subr.mxu0 0.0
      %1801 = vmatpush1.msra.mxu0 0.0
      %1802 = vmatprep.subr.mxu0 0.0
      %1803 = vmatpush1.msra.mxu0 0.0
      %1804 = vmatprep.subr.mxu0 0.0
      %1805 = vmatpush1.msra.mxu0 0.0
      %1806 = vmatprep.subr.mxu0 0.0
      %1807 = vmatpush1.msra.mxu0 0.0
      %1808 = vmatprep.subr.mxu0 0.0
      %1809 = vmatpush1.msra.mxu0 0.0
      %1810 = vmatprep.subr.mxu0 0.0
      %1811 = vmatpush1.msra.mxu0 0.0
      %1812 = vmatprep.subr.mxu0 0.0
      %1813 = vmatpush1.msra.mxu0 0.0
      %1814 = vmatprep.subr.mxu0 0.0
      %1815 = vmatpush1.msra.mxu0 0.0
      %1816 = vmatprep.subr.mxu0 0.0
      %1817 = vmatpush1.msra.mxu0 0.0
      %1818 = vmatprep.subr.mxu0 0.0
      %1819 = vmatpush1.msra.mxu0 0.0
      %1820 = vmatprep.subr.mxu0 0.0
      %1821 = vmatpush1.msra.mxu0 0.0
      %1822 = vmatprep.subr.mxu0 0.0
      %1823 = vmatpush1.msra.mxu0 0.0
      %1824 = vmatprep.subr.mxu0 0.0
      %1825 = vmatpush1.msra.mxu0 0.0
      %1826 = vmatprep.subr.mxu0 0.0
      %1827 = vmatpush1.msra.mxu0 0.0
      %1828 = vmatprep.subr.mxu0 0.0
      %1829 = vmatpush1.msra.mxu0 0.0
      %1830 = vmatprep.subr.mxu0 0.0
      %1831 = vmatpush1.msra.mxu0 0.0
      %1832 = vmatprep.subr.mxu0 0.0
      %1833 = vmatpush1.msra.mxu0 0.0
      %1834 = vmatprep.subr.mxu0 0.0
      %1835 = vmatpush1.msra.mxu0 0.0
      %1836 = vmatprep.subr.mxu0 0.0
      %1837 = vmatpush1.msra.mxu0 0.0
      %1838 = vmatprep.subr.mxu0 0.0
      %1839 = vmatpush1.msra.mxu0 0.0
      %1840 = vmatprep.subr.mxu0 0.0
      %1841 = vmatpush1.msra.mxu0 0.0
      %1842 = vmatprep.subr.mxu0 0.0
      %1843 = vmatpush1.msra.mxu0 0.0
      %1844 = vmatprep.subr.mxu0 0.0
      %1845 = vmatpush1.msra.mxu0 0.0
      %1846 = vmatprep.subr.mxu0 0.0
      %1847 = vmatpush1.msra.mxu0 0.0
      %1848 = vmatprep.subr.mxu0 0.0
      %1849 = vmatpush1.msra.mxu0 0.0
      %1850 = vmatprep.mubr.f32.mxu0 0.0
      %1851 = vmatmul.mubr.f32.gmra.mrb[0].mxu0 %v1686
      %v1852 = vpop.f32.mrb[0].mxu0
      %v1853 = vadd.f32 0.0, %v1852
      %v1854 = vpop.f32.mrb[0].mxu0
      %v1855 = vadd.f32 0.0, %v1854
      %1856 = vmatprep.mubr.f32.mxu0 0.0
      %1857 = vmatmul.mubr.f32.gmra.mrb[0].mxu0 %v1689
      %v1858 = vpop.f32.mrb[0].mxu0
      %v1859 = vadd.f32 0.0, %v1858
      %v1860 = vpop.f32.mrb[0].mxu0
      %v1861 = vadd.f32 0.0, %v1860
      %1862 = vmatprep.mubr.f32.mxu0 0.0
      %1863 = vmatmul.mubr.f32.gmra.mrb[0].mxu0 %v1692
      %v1864 = vpop.f32.mrb[0].mxu0
      %v1865 = vadd.f32 0.0, %v1864
      %v1866 = vpop.f32.mrb[0].mxu0
      %v1867 = vadd.f32 0.0, %v1866
      %1868 = vmatprep.mubr.f32.mxu0 0.0
      %1869 = vmatmul.mubr.f32.gmra.mrb[0].mxu0 %v1695
      %v1870 = vpop.f32.mrb[0].mxu0
      %v1871 = vadd.f32 0.0, %v1870
      %v1872 = vpop.f32.mrb[0].mxu0
      %v1873 = vadd.f32 0.0, %v1872
      %1874 = vdwg.mxu0
      %s1875 = scalar_lea.vmem %s1, 4096
      %v1876 = vld [vmem:[%s1875] sm:$0xff]
      %v1877 = vld [vmem:[%s1875 + $0x8] sm:$0xff]
      %v1878 = vld [vmem:[%s1875 + $0x10] sm:$0xff]
      %v1879 = vld [vmem:[%s1875 + $0x18] sm:$0xff]
      %v1880 = vld [vmem:[%s1875 + $0x20] sm:$0xff]
      %v1881 = vld [vmem:[%s1875 + $0x28] sm:$0xff]
      %v1882 = vld [vmem:[%s1875 + $0x30] sm:$0xff]
      %v1883 = vld [vmem:[%s1875 + $0x38] sm:$0xff]
      %v1884 = vld [vmem:[%s1875 + $0x40] sm:$0xff]
      %v1885 = vld [vmem:[%s1875 + $0x48] sm:$0xff]
      %v1886 = vld [vmem:[%s1875 + $0x50] sm:$0xff]
      %v1887 = vld [vmem:[%s1875 + $0x58] sm:$0xff]
      %v1888 = vld [vmem:[%s1875 + $0x60] sm:$0xff]
      %v1889 = vld [vmem:[%s1875 + $0x68] sm:$0xff]
      %v1890 = vld [vmem:[%s1875 + $0x70] sm:$0xff]
      %v1891 = vld [vmem:[%s1875 + $0x78] sm:$0xff]
      %v1892 = vld [vmem:[%s1875 + $0x80] sm:$0xff]
      %v1893 = vld [vmem:[%s1875 + $0x88] sm:$0xff]
      %v1894 = vld [vmem:[%s1875 + $0x90] sm:$0xff]
      %v1895 = vld [vmem:[%s1875 + $0x98] sm:$0xff]
      %v1896 = vld [vmem:[%s1875 + $0xa0] sm:$0xff]
      %v1897 = vld [vmem:[%s1875 + $0xa8] sm:$0xff]
      %v1898 = vld [vmem:[%s1875 + $0xb0] sm:$0xff]
      %v1899 = vld [vmem:[%s1875 + $0xb8] sm:$0xff]
      %v1900 = vld [vmem:[%s1875 + $0xc0] sm:$0xff]
      %v1901 = vld [vmem:[%s1875 + $0xc8] sm:$0xff]
      %v1902 = vld [vmem:[%s1875 + $0xd0] sm:$0xff]
      %v1903 = vld [vmem:[%s1875 + $0xd8] sm:$0xff]
      %v1904 = vld [vmem:[%s1875 + $0xe0] sm:$0xff]
      %v1905 = vld [vmem:[%s1875 + $0xe8] sm:$0xff]
      %v1906 = vld [vmem:[%s1875 + $0xf0] sm:$0xff]
      %v1907 = vld [vmem:[%s1875 + $0xf8] sm:$0xff]
      %v1908 = vld [vmem:[%s1875 + $0x100] sm:$0xff]
      %v1909 = vld [vmem:[%s1875 + $0x108] sm:$0xff]
      %v1910 = vld [vmem:[%s1875 + $0x110] sm:$0xff]
      %v1911 = vld [vmem:[%s1875 + $0x118] sm:$0xff]
      %v1912 = vld [vmem:[%s1875 + $0x120] sm:$0xff]
      %v1913 = vld [vmem:[%s1875 + $0x128] sm:$0xff]
      %v1914 = vld [vmem:[%s1875 + $0x130] sm:$0xff]
      %v1915 = vld [vmem:[%s1875 + $0x138] sm:$0xff]
      %v1916 = vld [vmem:[%s1875 + $0x140] sm:$0xff]
      %v1917 = vld [vmem:[%s1875 + $0x148] sm:$0xff]
      %v1918 = vld [vmem:[%s1875 + $0x150] sm:$0xff]
      %v1919 = vld [vmem:[%s1875 + $0x158] sm:$0xff]
      %v1920 = vld [vmem:[%s1875 + $0x160] sm:$0xff]
      %v1921 = vld [vmem:[%s1875 + $0x168] sm:$0xff]
      %v1922 = vld [vmem:[%s1875 + $0x170] sm:$0xff]
      %v1923 = vld [vmem:[%s1875 + $0x178] sm:$0xff]
      %v1924 = vld [vmem:[%s1875 + $0x180] sm:$0xff]
      %v1925 = vld [vmem:[%s1875 + $0x188] sm:$0xff]
      %v1926 = vld [vmem:[%s1875 + $0x190] sm:$0xff]
      %v1927 = vld [vmem:[%s1875 + $0x198] sm:$0xff]
      %v1928 = vld [vmem:[%s1875 + $0x1a0] sm:$0xff]
      %v1929 = vld [vmem:[%s1875 + $0x1a8] sm:$0xff]
      %v1930 = vld [vmem:[%s1875 + $0x1b0] sm:$0xff]
      %v1931 = vld [vmem:[%s1875 + $0x1b8] sm:$0xff]
      %v1932 = vld [vmem:[%s1875 + $0x1c0] sm:$0xff]
      %v1933 = vld [vmem:[%s1875 + $0x1c8] sm:$0xff]
      %v1934 = vld [vmem:[%s1875 + $0x1d0] sm:$0xff]
      %v1935 = vld [vmem:[%s1875 + $0x1d8] sm:$0xff]
      %v1936 = vld [vmem:[%s1875 + $0x1e0] sm:$0xff]
      %v1937 = vld [vmem:[%s1875 + $0x1e8] sm:$0xff]
      %v1938 = vld [vmem:[%s1875 + $0x1f0] sm:$0xff]
      %v1939 = vld [vmem:[%s1875 + $0x1f8] sm:$0xff]
      %v1940 = vld [vmem:[%s1875 + $0x200] sm:$0xff]
      %v1941 = vld [vmem:[%s1875 + $0x208] sm:$0xff]
      %v1942 = vld [vmem:[%s1875 + $0x210] sm:$0xff]
      %v1943 = vld [vmem:[%s1875 + $0x218] sm:$0xff]
      %v1944 = vld [vmem:[%s1875 + $0x220] sm:$0xff]
      %v1945 = vld [vmem:[%s1875 + $0x228] sm:$0xff]
      %v1946 = vld [vmem:[%s1875 + $0x230] sm:$0xff]
      %v1947 = vld [vmem:[%s1875 + $0x238] sm:$0xff]
      %v1948 = vld [vmem:[%s1875 + $0x240] sm:$0xff]
      %v1949 = vld [vmem:[%s1875 + $0x248] sm:$0xff]
      %v1950 = vld [vmem:[%s1875 + $0x250] sm:$0xff]
      %v1951 = vld [vmem:[%s1875 + $0x258] sm:$0xff]
      %v1952 = vld [vmem:[%s1875 + $0x260] sm:$0xff]
      %v1953 = vld [vmem:[%s1875 + $0x268] sm:$0xff]
      %v1954 = vld [vmem:[%s1875 + $0x270] sm:$0xff]
      %v1955 = vld [vmem:[%s1875 + $0x278] sm:$0xff]
      %v1956 = vld [vmem:[%s1875 + $0x280] sm:$0xff]
      %v1957 = vld [vmem:[%s1875 + $0x288] sm:$0xff]
      %v1958 = vld [vmem:[%s1875 + $0x290] sm:$0xff]
      %v1959 = vld [vmem:[%s1875 + $0x298] sm:$0xff]
      %v1960 = vld [vmem:[%s1875 + $0x2a0] sm:$0xff]
      %v1961 = vld [vmem:[%s1875 + $0x2a8] sm:$0xff]
      %v1962 = vld [vmem:[%s1875 + $0x2b0] sm:$0xff]
      %v1963 = vld [vmem:[%s1875 + $0x2b8] sm:$0xff]
      %v1964 = vld [vmem:[%s1875 + $0x2c0] sm:$0xff]
      %v1965 = vld [vmem:[%s1875 + $0x2c8] sm:$0xff]
      %v1966 = vld [vmem:[%s1875 + $0x2d0] sm:$0xff]
      %v1967 = vld [vmem:[%s1875 + $0x2d8] sm:$0xff]
      %v1968 = vld [vmem:[%s1875 + $0x2e0] sm:$0xff]
      %v1969 = vld [vmem:[%s1875 + $0x2e8] sm:$0xff]
      %v1970 = vld [vmem:[%s1875 + $0x2f0] sm:$0xff]
      %v1971 = vld [vmem:[%s1875 + $0x2f8] sm:$0xff]
      %v1972 = vld [vmem:[%s1875 + $0x300] sm:$0xff]
      %v1973 = vld [vmem:[%s1875 + $0x308] sm:$0xff]
      %v1974 = vld [vmem:[%s1875 + $0x310] sm:$0xff]
      %v1975 = vld [vmem:[%s1875 + $0x318] sm:$0xff]
      %v1976 = vld [vmem:[%s1875 + $0x320] sm:$0xff]
      %v1977 = vld [vmem:[%s1875 + $0x328] sm:$0xff]
      %v1978 = vld [vmem:[%s1875 + $0x330] sm:$0xff]
      %v1979 = vld [vmem:[%s1875 + $0x338] sm:$0xff]
      %v1980 = vld [vmem:[%s1875 + $0x340] sm:$0xff]
      %v1981 = vld [vmem:[%s1875 + $0x348] sm:$0xff]
      %v1982 = vld [vmem:[%s1875 + $0x350] sm:$0xff]
      %v1983 = vld [vmem:[%s1875 + $0x358] sm:$0xff]
      %v1984 = vld [vmem:[%s1875 + $0x360] sm:$0xff]
      %v1985 = vld [vmem:[%s1875 + $0x368] sm:$0xff]
      %v1986 = vld [vmem:[%s1875 + $0x370] sm:$0xff]
      %v1987 = vld [vmem:[%s1875 + $0x378] sm:$0xff]
      %v1988 = vld [vmem:[%s1875 + $0x380] sm:$0xff]
      %v1989 = vld [vmem:[%s1875 + $0x388] sm:$0xff]
      %v1990 = vld [vmem:[%s1875 + $0x390] sm:$0xff]
      %v1991 = vld [vmem:[%s1875 + $0x398] sm:$0xff]
      %v1992 = vld [vmem:[%s1875 + $0x3a0] sm:$0xff]
      %v1993 = vld [vmem:[%s1875 + $0x3a8] sm:$0xff]
      %v1994 = vld [vmem:[%s1875 + $0x3b0] sm:$0xff]
      %v1995 = vld [vmem:[%s1875 + $0x3b8] sm:$0xff]
      %v1996 = vld [vmem:[%s1875 + $0x3c0] sm:$0xff]
      %v1997 = vld [vmem:[%s1875 + $0x3c8] sm:$0xff]
      %v1998 = vld [vmem:[%s1875 + $0x3d0] sm:$0xff]
      %v1999 = vld [vmem:[%s1875 + $0x3d8] sm:$0xff]
      %v2000 = vld [vmem:[%s1875 + $0x3e0] sm:$0xff]
      %v2001 = vld [vmem:[%s1875 + $0x3e8] sm:$0xff]
      %v2002 = vld [vmem:[%s1875 + $0x3f0] sm:$0xff]
      %v2003 = vld [vmem:[%s1875 + $0x3f8] sm:$0xff]
      %v2004 = vld [vmem:[%s1875 + $0x400] sm:$0xff]
      %v2005 = vld [vmem:[%s1875 + $0x408] sm:$0xff]
      %v2006 = vld [vmem:[%s1875 + $0x410] sm:$0xff]
      %v2007 = vld [vmem:[%s1875 + $0x418] sm:$0xff]
      %v2008 = vld [vmem:[%s1875 + $0x420] sm:$0xff]
      %v2009 = vld [vmem:[%s1875 + $0x428] sm:$0xff]
      %v2010 = vld [vmem:[%s1875 + $0x430] sm:$0xff]
      %v2011 = vld [vmem:[%s1875 + $0x438] sm:$0xff]
      %v2012 = vld [vmem:[%s1875 + $0x440] sm:$0xff]
      %v2013 = vld [vmem:[%s1875 + $0x448] sm:$0xff]
      %v2014 = vld [vmem:[%s1875 + $0x450] sm:$0xff]
      %v2015 = vld [vmem:[%s1875 + $0x458] sm:$0xff]
      %v2016 = vld [vmem:[%s1875 + $0x460] sm:$0xff]
      %v2017 = vld [vmem:[%s1875 + $0x468] sm:$0xff]
      %v2018 = vld [vmem:[%s1875 + $0x470] sm:$0xff]
      %v2019 = vld [vmem:[%s1875 + $0x478] sm:$0xff]
      %v2020 = vld [vmem:[%s1875 + $0x480] sm:$0xff]
      %v2021 = vld [vmem:[%s1875 + $0x488] sm:$0xff]
      %v2022 = vld [vmem:[%s1875 + $0x490] sm:$0xff]
      %v2023 = vld [vmem:[%s1875 + $0x498] sm:$0xff]
      %v2024 = vld [vmem:[%s1875 + $0x4a0] sm:$0xff]
      %v2025 = vld [vmem:[%s1875 + $0x4a8] sm:$0xff]
      %v2026 = vld [vmem:[%s1875 + $0x4b0] sm:$0xff]
      %v2027 = vld [vmem:[%s1875 + $0x4b8] sm:$0xff]
      %v2028 = vld [vmem:[%s1875 + $0x4c0] sm:$0xff]
      %v2029 = vld [vmem:[%s1875 + $0x4c8] sm:$0xff]
      %v2030 = vld [vmem:[%s1875 + $0x4d0] sm:$0xff]
      %v2031 = vld [vmem:[%s1875 + $0x4d8] sm:$0xff]
      %v2032 = vld [vmem:[%s1875 + $0x4e0] sm:$0xff]
      %v2033 = vld [vmem:[%s1875 + $0x4e8] sm:$0xff]
      %v2034 = vld [vmem:[%s1875 + $0x4f0] sm:$0xff]
      %v2035 = vld [vmem:[%s1875 + $0x4f8] sm:$0xff]
      %v2036 = vld [vmem:[%s1875 + $0x500] sm:$0xff]
      %v2037 = vld [vmem:[%s1875 + $0x508] sm:$0xff]
      %v2038 = vld [vmem:[%s1875 + $0x510] sm:$0xff]
      %v2039 = vld [vmem:[%s1875 + $0x518] sm:$0xff]
      %v2040 = vld [vmem:[%s1875 + $0x520] sm:$0xff]
      %v2041 = vld [vmem:[%s1875 + $0x528] sm:$0xff]
      %v2042 = vld [vmem:[%s1875 + $0x530] sm:$0xff]
      %v2043 = vld [vmem:[%s1875 + $0x538] sm:$0xff]
      %v2044 = vld [vmem:[%s1875 + $0x540] sm:$0xff]
      %v2045 = vld [vmem:[%s1875 + $0x548] sm:$0xff]
      %v2046 = vld [vmem:[%s1875 + $0x550] sm:$0xff]
      %v2047 = vld [vmem:[%s1875 + $0x558] sm:$0xff]
      %v2048 = vld [vmem:[%s1875 + $0x560] sm:$0xff]
      %v2049 = vld [vmem:[%s1875 + $0x568] sm:$0xff]
      %v2050 = vld [vmem:[%s1875 + $0x570] sm:$0xff]
      %v2051 = vld [vmem:[%s1875 + $0x578] sm:$0xff]
      %v2052 = vld [vmem:[%s1875 + $0x580] sm:$0xff]
      %v2053 = vld [vmem:[%s1875 + $0x588] sm:$0xff]
      %v2054 = vld [vmem:[%s1875 + $0x590] sm:$0xff]
      %v2055 = vld [vmem:[%s1875 + $0x598] sm:$0xff]
      %v2056 = vld [vmem:[%s1875 + $0x5a0] sm:$0xff]
      %v2057 = vld [vmem:[%s1875 + $0x5a8] sm:$0xff]
      %v2058 = vld [vmem:[%s1875 + $0x5b0] sm:$0xff]
      %v2059 = vld [vmem:[%s1875 + $0x5b8] sm:$0xff]
      %v2060 = vld [vmem:[%s1875 + $0x5c0] sm:$0xff]
      %v2061 = vld [vmem:[%s1875 + $0x5c8] sm:$0xff]
      %v2062 = vld [vmem:[%s1875 + $0x5d0] sm:$0xff]
      %v2063 = vld [vmem:[%s1875 + $0x5d8] sm:$0xff]
      %v2064 = vld [vmem:[%s1875 + $0x5e0] sm:$0xff]
      %v2065 = vld [vmem:[%s1875 + $0x5e8] sm:$0xff]
      %v2066 = vld [vmem:[%s1875 + $0x5f0] sm:$0xff]
      %v2067 = vld [vmem:[%s1875 + $0x5f8] sm:$0xff]
      %v2068 = vld [vmem:[%s1875 + $0x600] sm:$0xff]
      %v2069 = vld [vmem:[%s1875 + $0x608] sm:$0xff]
      %v2070 = vld [vmem:[%s1875 + $0x610] sm:$0xff]
      %v2071 = vld [vmem:[%s1875 + $0x618] sm:$0xff]
      %v2072 = vld [vmem:[%s1875 + $0x620] sm:$0xff]
      %v2073 = vld [vmem:[%s1875 + $0x628] sm:$0xff]
      %v2074 = vld [vmem:[%s1875 + $0x630] sm:$0xff]
      %v2075 = vld [vmem:[%s1875 + $0x638] sm:$0xff]
      %v2076 = vld [vmem:[%s1875 + $0x640] sm:$0xff]
      %v2077 = vld [vmem:[%s1875 + $0x648] sm:$0xff]
      %v2078 = vld [vmem:[%s1875 + $0x650] sm:$0xff]
      %v2079 = vld [vmem:[%s1875 + $0x658] sm:$0xff]
      %v2080 = vld [vmem:[%s1875 + $0x660] sm:$0xff]
      %v2081 = vld [vmem:[%s1875 + $0x668] sm:$0xff]
      %v2082 = vld [vmem:[%s1875 + $0x670] sm:$0xff]
      %v2083 = vld [vmem:[%s1875 + $0x678] sm:$0xff]
      %v2084 = vld [vmem:[%s1875 + $0x680] sm:$0xff]
      %v2085 = vld [vmem:[%s1875 + $0x688] sm:$0xff]
      %v2086 = vld [vmem:[%s1875 + $0x690] sm:$0xff]
      %v2087 = vld [vmem:[%s1875 + $0x698] sm:$0xff]
      %v2088 = vld [vmem:[%s1875 + $0x6a0] sm:$0xff]
      %v2089 = vld [vmem:[%s1875 + $0x6a8] sm:$0xff]
      %v2090 = vld [vmem:[%s1875 + $0x6b0] sm:$0xff]
      %v2091 = vld [vmem:[%s1875 + $0x6b8] sm:$0xff]
      %v2092 = vld [vmem:[%s1875 + $0x6c0] sm:$0xff]
      %v2093 = vld [vmem:[%s1875 + $0x6c8] sm:$0xff]
      %v2094 = vld [vmem:[%s1875 + $0x6d0] sm:$0xff]
      %v2095 = vld [vmem:[%s1875 + $0x6d8] sm:$0xff]
      %v2096 = vld [vmem:[%s1875 + $0x6e0] sm:$0xff]
      %v2097 = vld [vmem:[%s1875 + $0x6e8] sm:$0xff]
      %v2098 = vld [vmem:[%s1875 + $0x6f0] sm:$0xff]
      %v2099 = vld [vmem:[%s1875 + $0x6f8] sm:$0xff]
      %v2100 = vld [vmem:[%s1875 + $0x700] sm:$0xff]
      %v2101 = vld [vmem:[%s1875 + $0x708] sm:$0xff]
      %v2102 = vld [vmem:[%s1875 + $0x710] sm:$0xff]
      %v2103 = vld [vmem:[%s1875 + $0x718] sm:$0xff]
      %v2104 = vld [vmem:[%s1875 + $0x720] sm:$0xff]
      %v2105 = vld [vmem:[%s1875 + $0x728] sm:$0xff]
      %v2106 = vld [vmem:[%s1875 + $0x730] sm:$0xff]
      %v2107 = vld [vmem:[%s1875 + $0x738] sm:$0xff]
      %v2108 = vld [vmem:[%s1875 + $0x740] sm:$0xff]
      %v2109 = vld [vmem:[%s1875 + $0x748] sm:$0xff]
      %v2110 = vld [vmem:[%s1875 + $0x750] sm:$0xff]
      %v2111 = vld [vmem:[%s1875 + $0x758] sm:$0xff]
      %v2112 = vld [vmem:[%s1875 + $0x760] sm:$0xff]
      %v2113 = vld [vmem:[%s1875 + $0x768] sm:$0xff]
      %v2114 = vld [vmem:[%s1875 + $0x770] sm:$0xff]
      %v2115 = vld [vmem:[%s1875 + $0x778] sm:$0xff]
      %v2116 = vld [vmem:[%s1875 + $0x780] sm:$0xff]
      %v2117 = vld [vmem:[%s1875 + $0x788] sm:$0xff]
      %v2118 = vld [vmem:[%s1875 + $0x790] sm:$0xff]
      %v2119 = vld [vmem:[%s1875 + $0x798] sm:$0xff]
      %v2120 = vld [vmem:[%s1875 + $0x7a0] sm:$0xff]
      %v2121 = vld [vmem:[%s1875 + $0x7a8] sm:$0xff]
      %v2122 = vld [vmem:[%s1875 + $0x7b0] sm:$0xff]
      %v2123 = vld [vmem:[%s1875 + $0x7b8] sm:$0xff]
      %v2124 = vld [vmem:[%s1875 + $0x7c0] sm:$0xff]
      %v2125 = vld [vmem:[%s1875 + $0x7c8] sm:$0xff]
      %v2126 = vld [vmem:[%s1875 + $0x7d0] sm:$0xff]
      %v2127 = vld [vmem:[%s1875 + $0x7d8] sm:$0xff]
      %v2128 = vld [vmem:[%s1875 + $0x7e0] sm:$0xff]
      %v2129 = vld [vmem:[%s1875 + $0x7e8] sm:$0xff]
      %v2130 = vld [vmem:[%s1875 + $0x7f0] sm:$0xff]
      %v2131 = vld [vmem:[%s1875 + $0x7f8] sm:$0xff]
      %2132 = vmatprep.subr.mxu0 %v1877
      %2133 = vmatpush1.msra.mxu0 %v1876
      %2134 = vmatprep.subr.mxu0 %v1881
      %2135 = vmatpush1.msra.mxu0 %v1880
      %2136 = vmatprep.subr.mxu0 %v1885
      %2137 = vmatpush1.msra.mxu0 %v1884
      %2138 = vmatprep.subr.mxu0 %v1889
      %2139 = vmatpush1.msra.mxu0 %v1888
      %2140 = vmatprep.subr.mxu0 %v1893
      %2141 = vmatpush1.msra.mxu0 %v1892
      %2142 = vmatprep.subr.mxu0 %v1897
      %2143 = vmatpush1.msra.mxu0 %v1896
      %2144 = vmatprep.subr.mxu0 %v1901
      %2145 = vmatpush1.msra.mxu0 %v1900
      %2146 = vmatprep.subr.mxu0 %v1905
      %2147 = vmatpush1.msra.mxu0 %v1904
      %2148 = vmatprep.subr.mxu0 %v1909
      %2149 = vmatpush1.msra.mxu0 %v1908
      %2150 = vmatprep.subr.mxu0 %v1913
      %2151 = vmatpush1.msra.mxu0 %v1912
      %2152 = vmatprep.subr.mxu0 %v1917
      %2153 = vmatpush1.msra.mxu0 %v1916
      %2154 = vmatprep.subr.mxu0 %v1921
      %2155 = vmatpush1.msra.mxu0 %v1920
      %2156 = vmatprep.subr.mxu0 %v1925
      %2157 = vmatpush1.msra.mxu0 %v1924
      %2158 = vmatprep.subr.mxu0 %v1929
      %2159 = vmatpush1.msra.mxu0 %v1928
      %2160 = vmatprep.subr.mxu0 %v1933
      %2161 = vmatpush1.msra.mxu0 %v1932
      %2162 = vmatprep.subr.mxu0 %v1937
      %2163 = vmatpush1.msra.mxu0 %v1936
      %2164 = vmatprep.subr.mxu0 %v1941
      %2165 = vmatpush1.msra.mxu0 %v1940
      %2166 = vmatprep.subr.mxu0 %v1945
      %2167 = vmatpush1.msra.mxu0 %v1944
      %2168 = vmatprep.subr.mxu0 %v1949
      %2169 = vmatpush1.msra.mxu0 %v1948
      %2170 = vmatprep.subr.mxu0 %v1953
      %2171 = vmatpush1.msra.mxu0 %v1952
      %2172 = vmatprep.subr.mxu0 %v1957
      %2173 = vmatpush1.msra.mxu0 %v1956
      %2174 = vmatprep.subr.mxu0 %v1961
      %2175 = vmatpush1.msra.mxu0 %v1960
      %2176 = vmatprep.subr.mxu0 %v1965
      %2177 = vmatpush1.msra.mxu0 %v1964
      %2178 = vmatprep.subr.mxu0 %v1969
      %2179 = vmatpush1.msra.mxu0 %v1968
      %2180 = vmatprep.subr.mxu0 %v1973
      %2181 = vmatpush1.msra.mxu0 %v1972
      %2182 = vmatprep.subr.mxu0 %v1977
      %2183 = vmatpush1.msra.mxu0 %v1976
      %2184 = vmatprep.subr.mxu0 %v1981
      %2185 = vmatpush1.msra.mxu0 %v1980
      %2186 = vmatprep.subr.mxu0 %v1985
      %2187 = vmatpush1.msra.mxu0 %v1984
      %2188 = vmatprep.subr.mxu0 %v1989
      %2189 = vmatpush1.msra.mxu0 %v1988
      %2190 = vmatprep.subr.mxu0 %v1993
      %2191 = vmatpush1.msra.mxu0 %v1992
      %2192 = vmatprep.subr.mxu0 %v1997
      %2193 = vmatpush1.msra.mxu0 %v1996
      %2194 = vmatprep.subr.mxu0 %v2001
      %2195 = vmatpush1.msra.mxu0 %v2000
      %2196 = vmatprep.mubr.f32.mxu0 %v1766
      %2197 = vmatmul.mubr.f32.gmra.mrb[0].mxu0 %v1764
      %v2198 = vpop.f32.mrb[0].mxu0
      %v2199 = vadd.f32 0.0, %v2198
      %v2200 = vpop.f32.mrb[0].mxu0
      %v2201 = vadd.f32 0.0, %v2200
      %2202 = vmatprep.mubr.f32.mxu0 %v1772
      %2203 = vmatmul.mubr.f32.gmra.mrb[0].mxu0 %v1770
      %v2204 = vpop.f32.mrb[0].mxu0
      %v2205 = vadd.f32 0.0, %v2204
      %v2206 = vpop.f32.mrb[0].mxu0
      %v2207 = vadd.f32 0.0, %v2206
      %2208 = vmatprep.mubr.f32.mxu0 %v1778
      %2209 = vmatmul.mubr.f32.gmra.mrb[0].mxu0 %v1776
      %v2210 = vpop.f32.mrb[0].mxu0
      %v2211 = vadd.f32 0.0, %v2210
      %v2212 = vpop.f32.mrb[0].mxu0
      %v2213 = vadd.f32 0.0, %v2212
      %2214 = vmatprep.mubr.f32.mxu0 %v1784
      %2215 = vmatmul.mubr.f32.gmra.mrb[0].mxu0 %v1782
      %v2216 = vpop.f32.mrb[0].mxu0
      %v2217 = vadd.f32 0.0, %v2216
      %v2218 = vpop.f32.mrb[0].mxu0
      %v2219 = vadd.f32 0.0, %v2218
      %2220 = vdwg.mxu0
      %2221 = vmatprep.subr.mxu0 %v2005
      %2222 = vmatpush1.msra.mxu0 %v2004
      %2223 = vmatprep.subr.mxu0 %v2009
      %2224 = vmatpush1.msra.mxu0 %v2008
      %2225 = vmatprep.subr.mxu0 %v2013
      %2226 = vmatpush1.msra.mxu0 %v2012
      %2227 = vmatprep.subr.mxu0 %v2017
      %2228 = vmatpush1.msra.mxu0 %v2016
      %2229 = vmatprep.subr.mxu0 %v2021
      %2230 = vmatpush1.msra.mxu0 %v2020
      %2231 = vmatprep.subr.mxu0 %v2025
      %2232 = vmatpush1.msra.mxu0 %v2024
      %2233 = vmatprep.subr.mxu0 %v2029
      %2234 = vmatpush1.msra.mxu0 %v2028
      %2235 = vmatprep.subr.mxu0 %v2033
      %2236 = vmatpush1.msra.mxu0 %v2032
      %2237 = vmatprep.subr.mxu0 %v2037
      %2238 = vmatpush1.msra.mxu0 %v2036
      %2239 = vmatprep.subr.mxu0 %v2041
      %2240 = vmatpush1.msra.mxu0 %v2040
      %2241 = vmatprep.subr.mxu0 %v2045
      %2242 = vmatpush1.msra.mxu0 %v2044
      %2243 = vmatprep.subr.mxu0 %v2049
      %2244 = vmatpush1.msra.mxu0 %v2048
      %2245 = vmatprep.subr.mxu0 %v2053
      %2246 = vmatpush1.msra.mxu0 %v2052
      %2247 = vmatprep.subr.mxu0 %v2057
      %2248 = vmatpush1.msra.mxu0 %v2056
      %2249 = vmatprep.subr.mxu0 %v2061
      %2250 = vmatpush1.msra.mxu0 %v2060
      %2251 = vmatprep.subr.mxu0 %v2065
      %2252 = vmatpush1.msra.mxu0 %v2064
      %2253 = vmatprep.subr.mxu0 %v2069
      %2254 = vmatpush1.msra.mxu0 %v2068
      %2255 = vmatprep.subr.mxu0 %v2073
      %2256 = vmatpush1.msra.mxu0 %v2072
      %2257 = vmatprep.subr.mxu0 %v2077
      %2258 = vmatpush1.msra.mxu0 %v2076
      %2259 = vmatprep.subr.mxu0 %v2081
      %2260 = vmatpush1.msra.mxu0 %v2080
      %2261 = vmatprep.subr.mxu0 %v2085
      %2262 = vmatpush1.msra.mxu0 %v2084
      %2263 = vmatprep.subr.mxu0 %v2089
      %2264 = vmatpush1.msra.mxu0 %v2088
      %2265 = vmatprep.subr.mxu0 %v2093
      %2266 = vmatpush1.msra.mxu0 %v2092
      %2267 = vmatprep.subr.mxu0 %v2097
      %2268 = vmatpush1.msra.mxu0 %v2096
      %2269 = vmatprep.subr.mxu0 %v2101
      %2270 = vmatpush1.msra.mxu0 %v2100
      %2271 = vmatprep.subr.mxu0 %v2105
      %2272 = vmatpush1.msra.mxu0 %v2104
      %2273 = vmatprep.subr.mxu0 %v2109
      %2274 = vmatpush1.msra.mxu0 %v2108
      %2275 = vmatprep.subr.mxu0 %v2113
      %2276 = vmatpush1.msra.mxu0 %v2112
      %2277 = vmatprep.subr.mxu0 %v2117
      %2278 = vmatpush1.msra.mxu0 %v2116
      %2279 = vmatprep.subr.mxu0 %v2121
      %2280 = vmatpush1.msra.mxu0 %v2120
      %2281 = vmatprep.subr.mxu0 %v2125
      %2282 = vmatpush1.msra.mxu0 %v2124
      %2283 = vmatprep.subr.mxu0 %v2129
      %2284 = vmatpush1.msra.mxu0 %v2128
      %2285 = vmatprep.mubr.f32.mxu0 %v1855
      %2286 = vmatmul.mubr.f32.gmra.mrb[0].mxu0 %v1853
      %v2287 = vpop.f32.mrb[0].mxu0
      %v2288 = vadd.f32 %v2199, %v2287
      %v2289 = vpop.f32.mrb[0].mxu0
      %v2290 = vadd.f32 %v2201, %v2289
      %2291 = vmatprep.mubr.f32.mxu0 %v1861
      %2292 = vmatmul.mubr.f32.gmra.mrb[0].mxu0 %v1859
      %v2293 = vpop.f32.mrb[0].mxu0
      %v2294 = vadd.f32 %v2205, %v2293
      %v2295 = vpop.f32.mrb[0].mxu0
      %v2296 = vadd.f32 %v2207, %v2295
      %2297 = vmatprep.mubr.f32.mxu0 %v1867
      %2298 = vmatmul.mubr.f32.gmra.mrb[0].mxu0 %v1865
      %v2299 = vpop.f32.mrb[0].mxu0
      %v2300 = vadd.f32 %v2211, %v2299
      %v2301 = vpop.f32.mrb[0].mxu0
      %v2302 = vadd.f32 %v2213, %v2301
      %2303 = vmatprep.mubr.f32.mxu0 %v1873
      %2304 = vmatmul.mubr.f32.gmra.mrb[0].mxu0 %v1871
      %v2305 = vpop.f32.mrb[0].mxu0
      %v2306 = vadd.f32 %v2217, %v2305
      %v2307 = vpop.f32.mrb[0].mxu0
      %v2308 = vadd.f32 %v2219, %v2307
      %2309 = vdwg.mxu0
      %2310 = vmatprep.subr.mxu0 %v1879
      %2311 = vmatpush1.msra.mxu0 %v1878
      %2312 = vmatprep.subr.mxu0 %v1883
      %2313 = vmatpush1.msra.mxu0 %v1882
      %2314 = vmatprep.subr.mxu0 %v1887
      %2315 = vmatpush1.msra.mxu0 %v1886
      %2316 = vmatprep.subr.mxu0 %v1891
      %2317 = vmatpush1.msra.mxu0 %v1890
      %2318 = vmatprep.subr.mxu0 %v1895
      %2319 = vmatpush1.msra.mxu0 %v1894
      %2320 = vmatprep.subr.mxu0 %v1899
      %2321 = vmatpush1.msra.mxu0 %v1898
      %2322 = vmatprep.subr.mxu0 %v1903
      %2323 = vmatpush1.msra.mxu0 %v1902
      %2324 = vmatprep.subr.mxu0 %v1907
      %2325 = vmatpush1.msra.mxu0 %v1906
      %2326 = vmatprep.subr.mxu0 %v1911
      %2327 = vmatpush1.msra.mxu0 %v1910
      %2328 = vmatprep.subr.mxu0 %v1915
      %2329 = vmatpush1.msra.mxu0 %v1914
      %2330 = vmatprep.subr.mxu0 %v1919
      %2331 = vmatpush1.msra.mxu0 %v1918
      %2332 = vmatprep.subr.mxu0 %v1923
      %2333 = vmatpush1.msra.mxu0 %v1922
      %2334 = vmatprep.subr.mxu0 %v1927
      %2335 = vmatpush1.msra.mxu0 %v1926
      %2336 = vmatprep.subr.mxu0 %v1931
      %2337 = vmatpush1.msra.mxu0 %v1930
      %2338 = vmatprep.subr.mxu0 %v1935
      %2339 = vmatpush1.msra.mxu0 %v1934
      %2340 = vmatprep.subr.mxu0 %v1939
      %2341 = vmatpush1.msra.mxu0 %v1938
      %2342 = vmatprep.subr.mxu0 %v1943
      %2343 = vmatpush1.msra.mxu0 %v1942
      %2344 = vmatprep.subr.mxu0 %v1947
      %2345 = vmatpush1.msra.mxu0 %v1946
      %2346 = vmatprep.subr.mxu0 %v1951
      %2347 = vmatpush1.msra.mxu0 %v1950
      %2348 = vmatprep.subr.mxu0 %v1955
      %2349 = vmatpush1.msra.mxu0 %v1954
      %2350 = vmatprep.subr.mxu0 %v1959
      %2351 = vmatpush1.msra.mxu0 %v1958
      %2352 = vmatprep.subr.mxu0 %v1963
      %2353 = vmatpush1.msra.mxu0 %v1962
      %2354 = vmatprep.subr.mxu0 %v1967
      %2355 = vmatpush1.msra.mxu0 %v1966
      %2356 = vmatprep.subr.mxu0 %v1971
      %2357 = vmatpush1.msra.mxu0 %v1970
      %2358 = vmatprep.subr.mxu0 %v1975
      %2359 = vmatpush1.msra.mxu0 %v1974
      %2360 = vmatprep.subr.mxu0 %v1979
      %2361 = vmatpush1.msra.mxu0 %v1978
      %2362 = vmatprep.subr.mxu0 %v1983
      %2363 = vmatpush1.msra.mxu0 %v1982
      %2364 = vmatprep.subr.mxu0 %v1987
      %2365 = vmatpush1.msra.mxu0 %v1986
      %2366 = vmatprep.subr.mxu0 %v1991
      %2367 = vmatpush1.msra.mxu0 %v1990
      %2368 = vmatprep.subr.mxu0 %v1995
      %2369 = vmatpush1.msra.mxu0 %v1994
      %2370 = vmatprep.subr.mxu0 %v1999
      %2371 = vmatpush1.msra.mxu0 %v1998
      %2372 = vmatprep.subr.mxu0 %v2003
      %2373 = vmatpush1.msra.mxu0 %v2002
      %2374 = vmatprep.mubr.f32.mxu0 %v1766
      %2375 = vmatmul.mubr.f32.gmra.mrb[0].mxu0 %v1764
      %v2376 = vpop.f32.mrb[0].mxu0
      %v2377 = vadd.f32 0.0, %v2376
      %v2378 = vpop.f32.mrb[0].mxu0
      %v2379 = vadd.f32 0.0, %v2378
      %2380 = vmatprep.mubr.f32.mxu0 %v1772
      %2381 = vmatmul.mubr.f32.gmra.mrb[0].mxu0 %v1770
      %v2382 = vpop.f32.mrb[0].mxu0
      %v2383 = vadd.f32 0.0, %v2382
      %v2384 = vpop.f32.mrb[0].mxu0
      %v2385 = vadd.f32 0.0, %v2384
      %2386 = vmatprep.mubr.f32.mxu0 %v1778
      %2387 = vmatmul.mubr.f32.gmra.mrb[0].mxu0 %v1776
      %v2388 = vpop.f32.mrb[0].mxu0
      %v2389 = vadd.f32 0.0, %v2388
      %v2390 = vpop.f32.mrb[0].mxu0
      %v2391 = vadd.f32 0.0, %v2390
      %2392 = vmatprep.mubr.f32.mxu0 %v1784
      %2393 = vmatmul.mubr.f32.gmra.mrb[0].mxu0 %v1782
      %v2394 = vpop.f32.mrb[0].mxu0
      %v2395 = vadd.f32 0.0, %v2394
      %v2396 = vpop.f32.mrb[0].mxu0
      %v2397 = vadd.f32 0.0, %v2396
      %2398 = vdwg.mxu0
      %2399 = vmatprep.subr.mxu0 %v2007
      %2400 = vmatpush1.msra.mxu0 %v2006
      %2401 = vmatprep.subr.mxu0 %v2011
      %2402 = vmatpush1.msra.mxu0 %v2010
      %2403 = vmatprep.subr.mxu0 %v2015
      %2404 = vmatpush1.msra.mxu0 %v2014
      %2405 = vmatprep.subr.mxu0 %v2019
      %2406 = vmatpush1.msra.mxu0 %v2018
      %2407 = vmatprep.subr.mxu0 %v2023
      %2408 = vmatpush1.msra.mxu0 %v2022
      %2409 = vmatprep.subr.mxu0 %v2027
      %2410 = vmatpush1.msra.mxu0 %v2026
      %2411 = vmatprep.subr.mxu0 %v2031
      %2412 = vmatpush1.msra.mxu0 %v2030
      %2413 = vmatprep.subr.mxu0 %v2035
      %2414 = vmatpush1.msra.mxu0 %v2034
      %2415 = vmatprep.subr.mxu0 %v2039
      %2416 = vmatpush1.msra.mxu0 %v2038
      %2417 = vmatprep.subr.mxu0 %v2043
      %2418 = vmatpush1.msra.mxu0 %v2042
      %2419 = vmatprep.subr.mxu0 %v2047
      %2420 = vmatpush1.msra.mxu0 %v2046
      %2421 = vmatprep.subr.mxu0 %v2051
      %2422 = vmatpush1.msra.mxu0 %v2050
      %2423 = vmatprep.subr.mxu0 %v2055
      %2424 = vmatpush1.msra.mxu0 %v2054
      %2425 = vmatprep.subr.mxu0 %v2059
      %2426 = vmatpush1.msra.mxu0 %v2058
      %2427 = vmatprep.subr.mxu0 %v2063
      %2428 = vmatpush1.msra.mxu0 %v2062
      %2429 = vmatprep.subr.mxu0 %v2067
      %2430 = vmatpush1.msra.mxu0 %v2066
      %2431 = vmatprep.subr.mxu0 %v2071
      %2432 = vmatpush1.msra.mxu0 %v2070
      %2433 = vmatprep.subr.mxu0 %v2075
      %2434 = vmatpush1.msra.mxu0 %v2074
      %2435 = vmatprep.subr.mxu0 %v2079
      %2436 = vmatpush1.msra.mxu0 %v2078
      %2437 = vmatprep.subr.mxu0 %v2083
      %2438 = vmatpush1.msra.mxu0 %v2082
      %2439 = vmatprep.subr.mxu0 %v2087
      %2440 = vmatpush1.msra.mxu0 %v2086
      %2441 = vmatprep.subr.mxu0 %v2091
      %2442 = vmatpush1.msra.mxu0 %v2090
      %2443 = vmatprep.subr.mxu0 %v2095
      %2444 = vmatpush1.msra.mxu0 %v2094
      %2445 = vmatprep.subr.mxu0 %v2099
      %2446 = vmatpush1.msra.mxu0 %v2098
      %2447 = vmatprep.subr.mxu0 %v2103
      %2448 = vmatpush1.msra.mxu0 %v2102
      %2449 = vmatprep.subr.mxu0 %v2107
      %2450 = vmatpush1.msra.mxu0 %v2106
      %2451 = vmatprep.subr.mxu0 %v2111
      %2452 = vmatpush1.msra.mxu0 %v2110
      %2453 = vmatprep.subr.mxu0 %v2115
      %2454 = vmatpush1.msra.mxu0 %v2114
      %2455 = vmatprep.subr.mxu0 %v2119
      %2456 = vmatpush1.msra.mxu0 %v2118
      %2457 = vmatprep.subr.mxu0 %v2123
      %2458 = vmatpush1.msra.mxu0 %v2122
      %2459 = vmatprep.subr.mxu0 %v2127
      %2460 = vmatpush1.msra.mxu0 %v2126
      %2461 = vmatprep.subr.mxu0 %v2131
      %2462 = vmatpush1.msra.mxu0 %v2130
      %2463 = vmatprep.mubr.f32.mxu0 %v1855
      %2464 = vmatmul.mubr.f32.gmra.mrb[0].mxu0 %v1853
      %v2465 = vpop.f32.mrb[0].mxu0
      %v2466 = vadd.f32 %v2377, %v2465
      %v2467 = vpop.f32.mrb[0].mxu0
      %v2468 = vadd.f32 %v2379, %v2467
      %2469 = vmatprep.mubr.f32.mxu0 %v1861
      %2470 = vmatmul.mubr.f32.gmra.mrb[0].mxu0 %v1859
      %v2471 = vpop.f32.mrb[0].mxu0
      %v2472 = vadd.f32 %v2383, %v2471
      %v2473 = vpop.f32.mrb[0].mxu0
      %v2474 = vadd.f32 %v2385, %v2473
      %2475 = vmatprep.mubr.f32.mxu0 %v1867
      %2476 = vmatmul.mubr.f32.gmra.mrb[0].mxu0 %v1865
      %v2477 = vpop.f32.mrb[0].mxu0
      %v2478 = vadd.f32 %v2389, %v2477
      %v2479 = vpop.f32.mrb[0].mxu0
      %v2480 = vadd.f32 %v2391, %v2479
      %2481 = vmatprep.mubr.f32.mxu0 %v1873
      %2482 = vmatmul.mubr.f32.gmra.mrb[0].mxu0 %v1871
      %v2483 = vpop.f32.mrb[0].mxu0
      %v2484 = vadd.f32 %v2395, %v2483
      %v2485 = vpop.f32.mrb[0].mxu0
      %v2486 = vadd.f32 %v2397, %v2485
      %2487 = vdwg.mxu0
      %v2488 = vadd.f32 %v1664, %v2288
      %v2489 = vadd.f32 %v1665, %v2290
      %v2490 = vadd.f32 %v1666, %v2466
      %v2491 = vadd.f32 %v1667, %v2468
      %v2492 = vadd.f32 %v1668, %v2294
      %v2493 = vadd.f32 %v1669, %v2296
      %v2494 = vadd.f32 %v1670, %v2472
      %v2495 = vadd.f32 %v1671, %v2474
      %v2496 = vadd.f32 %v1672, %v2300
      %v2497 = vadd.f32 %v1673, %v2302
      %v2498 = vadd.f32 %v1674, %v2478
      %v2499 = vadd.f32 %v1675, %v2480
      %v2500 = vadd.f32 %v1676, %v2306
      %v2501 = vadd.f32 %v1677, %v2308
      %v2502 = vadd.f32 %v1678, %v2484
      %v2503 = vadd.f32 %v1679, %v2486
      %v2504 = vmax.f32 %v2488, 0.0
      %v2505 = vmax.f32 %v2489, 0.0
      %v2506 = vmax.f32 %v2490, 0.0
      %v2507 = vmax.f32 %v2491, 0.0
      %v2508 = vmax.f32 %v2492, 0.0
      %v2509 = vmax.f32 %v2493, 0.0
      %v2510 = vmax.f32 %v2494, 0.0
      %v2511 = vmax.f32 %v2495, 0.0
      %v2512 = vmax.f32 %v2496, 0.0
      %v2513 = vmax.f32 %v2497, 0.0
      %v2514 = vmax.f32 %v2498, 0.0
      %v2515 = vmax.f32 %v2499, 0.0
      %v2516 = vmax.f32 %v2500, 0.0
      %v2517 = vmax.f32 %v2501, 0.0
      %v2518 = vmax.f32 %v2502, 0.0
      %v2519 = vmax.f32 %v2503, 0.0
      %2520 = vst [vmem:[%s204] sm:$0xff] %v2504
      %2521 = vst [vmem:[%s204 + $0x8] sm:$0xff] %v2505
      %2522 = vst [vmem:[%s204 + $0x10] sm:$0xff] %v2506
      %2523 = vst [vmem:[%s204 + $0x18] sm:$0xff] %v2507
      %2524 = vst [vmem:[%s204 + $0x20] sm:$0xff] %v2508
      %2525 = vst [vmem:[%s204 + $0x28] sm:$0xff] %v2509
      %2526 = vst [vmem:[%s204 + $0x30] sm:$0xff] %v2510
      %2527 = vst [vmem:[%s204 + $0x38] sm:$0xff] %v2511
      %2528 = vst [vmem:[%s204 + $0x40] sm:$0xff] %v2512
      %2529 = vst [vmem:[%s204 + $0x48] sm:$0xff] %v2513
      %2530 = vst [vmem:[%s204 + $0x50] sm:$0xff] %v2514
      %2531 = vst [vmem:[%s204 + $0x58] sm:$0xff] %v2515
      %2532 = vst [vmem:[%s204 + $0x60] sm:$0xff] %v2516
      %2533 = vst [vmem:[%s204 + $0x68] sm:$0xff] %v2517
      %2534 = vst [vmem:[%s204 + $0x70] sm:$0xff] %v2518
      %2535 = vst [vmem:[%s204 + $0x78] sm:$0xff] %v2519
      %s2536 = smul.u32 4, %s15
      %p2537 = scmp.lt.s32.totalorder %s2536, 7
      %s2538 = scalar_select %p2537, %s2536, 7
      %s2539 = smul.addr %s2538, 4
      %s2540 = smul.addr %s2539, 8
      %s2541 = scalar_lea.vmem %s4, %s2540
      // Predicated region
      $region37: #{alt_filter.2} parent=35 // pred_check
        %p2542 = pneg %p122
      $region38: #{alt_filter.2} parent=35 // pred_check_branch
        %2544 = sbr.rel (%p2542) target = $region40
      $region39: #{alt_filter.2} parent=35 // pred_region
        %s2545 = smul.u32 4, %s15
      $region40: #{alt_filter.2} parent=35 // pred_fallthru
        _
    $region36: #{alt_filter.2} parent=5 // pred_fallthru
      _
    %p2546 = scmp.le.s32.totalorder 2, %s10
    // Predicated region
    $region41: #{alt_filter.2} parent=5 // pred_check
      %p2547 = pneg %p2546
    $region42: #{alt_filter.2} parent=5 // pred_check_branch
      %2549 = sbr.rel (%p2547) target = $region44
    $region43: #{alt_filter.2} parent=5 // pred_region
      %s2550 = ssub.s32 %s10, 2
      // Predicated region
      $region45: #{alt_filter.2} parent=43 // pred_check
        %p2551 = pneg %p128
      $region46: #{alt_filter.2} parent=43 // pred_check_branch
        %2553 = sbr.rel (%p2551) target = $region48
      $region47: #{alt_filter.2} parent=43 // pred_region
        %s2554 = smul.u32 4, %s16
        %p2555 = scmp.lt.s32.totalorder %s2554, 7
        %s2556 = scalar_select %p2555, %s2554, 7
        %s2557 = smul.addr %s2556, 4
        %s2558 = smul.addr %s2557, 8
        %s2559 = scalar_lea.vmem %s4, %s2558
      $region48: #{alt_filter.2} parent=43 // pred_fallthru
        _
    $region44: #{alt_filter.2} parent=5 // pred_fallthru
      _
  $region6: #{alt_filter.2} parent=0 // loop_footer
    %s14 = sadd.s32 1, %s10
  $region7: #{alt_filter.2} parent=0 // loop_footer_branch
    %9 = sbr.rel target = $region3
  $region8: #{alt_filter.2} parent=0 // loop_exit
    _

// kernel: tile.18
$region0: #{tile.18}
  #allocation0 [shape = 's32[1]{0}', space=sflag, size = 0x4, scoped, tag = 'scoped memory for tile.18']
  %s0 = inlined_call_operand.vmem [shape: f32[64], index: 0, kind: input, shape index: {}]
  %s1 = inlined_call_operand.vmem [shape: f32[2,64], index: 1, kind: output, shape index: {}]
  // Predicated region
  $region2: #{tile.18} parent=0 // pred_check
    _
  $region3: #{tile.18} parent=0 // pred_check_branch
    %3 = sbr.rel (0) target = $region5
  $region4: #{tile.18} parent=0 // pred_region
    _
  $region5: #{tile.18} parent=0 // pred_fallthru
    _
  %v4 = vld [vmem:[%s0] ss:$0 sm:$0xff]
  %5 = vst [vmem:[%s1] sm:$0x3] %v4

// kernel: tile.19
$region0: #{tile.19}
  %s0 = inlined_call_operand.vmem [shape: f32[2,64], index: 0, kind: input, shape index: {}]
  %s1 = inlined_call_operand.vmem [shape: f32[1,128], index: 1, kind: output, shape index: {}]
  $region1: #{tile.19} parent=0
    #allocation0 [shape = 'u8[4096]{0}', space=vmem, size = 0x1000, scoped, tag = 'scoped mem for output reshape']
    #allocation1 [shape = 'u8[4096]{0}', space=vmem, size = 0x1000, scoped, tag = 'scoped mem for input reshape']
    %s3 = sshllo.u32 0, 2
    %v4 = vld [vmem:[%s0] sm:%s3]
    %5 = vst [vmem:[#allocation1] sm:%s3] %v4
    %v6 = vld [vmem:[#allocation1] sm:$0x1]
    %vm7 = vcmask 523264
    %8 = vst.msk [vmem:[#allocation0] sm:$0x1] %vm7, %v6
    %s9 = scalar_lea.vmem [#allocation1], 1
    %v10 = vld [vmem:[%s9] sm:$0x1]
    %11 = vrot.lane.b32.xlu0 %v10, 64
    %v12 = vpop.permute.xlu0 %11
    %vm13 = vcmask 1048064
    %14 = vst.msk [vmem:[#allocation0] sm:$0x1] %vm13, %v12
    %s16 = sshllo.u32 0, 1
    %v18 = vld [vmem:[#allocation0] sm:%s16]
    %s19 = sshllo.u32 0, 1
    %20 = vst [vmem:[%s1] sm:%s19] %v18

// kernel: alt_filter.3
$region0: #{alt_filter.3}
  #allocation0 [shape = 'u32[]', space=smem, size = 0x4, offset = 0x4, fixed_abs, tag = 'smem constant byte address 0x4 - core index']
  #allocation1 [shape = 'u32[144,128]{1,0:T(1,128)}', space=vmem, size = 0x12000, scoped, tag = 'internal scratch']
  %s0 = inlined_call_operand.vmem [shape: f32[256,128], index: 0, kind: input, shape index: {}]
  %s1 = inlined_call_operand.vmem [shape: f32[3,128,128], index: 1, kind: input, shape index: {}]
  %s2 = inlined_call_operand.vmem [shape: f32[2,128,128], index: 2, kind: input, shape index: {}]
  %s3 = inlined_call_operand.vmem [shape: f32[1,128], index: 3, kind: input, shape index: {}]
  %s4 = inlined_call_operand.vmem [shape: f32[256,128], index: 4, kind: output, shape index: {}]
  %s5 = sld [smem:[#allocation0]]
  $region49: #{alt_filter.3} parent=0
    _
  %s7 = ssub.s32 1, %s5
  %s8 = scalar_select 0, %s7, %s5
  loop: start=0, step=1, limit=4
  $region2: #{alt_filter.3} parent=0 // loop_pre_header
    _
  $region3: #{alt_filter.3} parent=0 // loop_header
    %s10 = sphi 0, %s14
    %p11 = scmp.ge.s32.totalorder %s10, 4
    %s20 = sphi 0, %s22
    %s23 = sphi 0, %s20
    %s24 = sphi 0, %s23
    %s40 = sphi 0, %s24
    %s44 = sphi 0, %s44
    %s46 = sphi 0, %s44
    %s47 = sphi 0, %s46
    %s61 = sphi 0, %s47
    %s65 = sphi 0, %s65
    %s67 = sphi 0, %s65
    %s68 = sphi 0, %s67
    %s82 = sphi 0, %s68
    %s86 = sphi 0, %s86
    %s88 = sphi 0, %s86
    %s89 = sphi 0, %s88
    %s103 = sphi 0, %s89
    %s109 = sphi 0, %s111
    %s112 = sphi 0, %s109
    %s113 = sphi 0, %s112
    %s129 = sphi 0, %s113
  $region4: #{alt_filter.3} parent=0 // loop_header_branch
    %13 = sbr.rel (%p11) target = $region8
  $region5: #{alt_filter.3} parent=0 // loop_body
    %s15 = ssub.s32 %s10, 1
    %s16 = ssub.s32 %s10, 2
    %s17 = sadd.s32 %s10, 1
    %s18 = ssub.s32 %s10, %s17
    %p19 = scmp.eq.s32.totalorder %s18, 0
    %s21 = sadd.s32 %s20, 1
    %s22 = scalar_select %p19, %s20, %s21
    %p25 = pneg %p19
    %p26 = scmp.eq.s32.totalorder %s10, 1
    %p27 = por %p25, %p26
    %p28 = scmp.ne.s32.totalorder %s20, %s23
    %p29 = scmp.eq.s32.totalorder %s10, 0
    %p30 = por %p28, %p29
    %p31 = scmp.ne.s32.totalorder %s20, %s23
    %p32 = scmp.eq.s32.totalorder %s15, 1
    %p33 = por %p31, %p32
    %p34 = scmp.ne.s32.totalorder %s23, %s24
    %p35 = scmp.eq.s32.totalorder %s15, 0
    %p36 = por %p34, %p35
    %p37 = scmp.ne.s32.totalorder %s23, %s24
    %p38 = scmp.eq.s32.totalorder %s16, 1
    %p39 = por %p37, %p38
    %p41 = scmp.ne.s32.totalorder %s24, %s40
    %p42 = scmp.eq.s32.totalorder %s16, 0
    %p43 = por %p41, %p42
    %s45 = sadd.s32 %s44, 1
    %p48 = scmp.eq.s32.totalorder %s10, 1
    %p49 = scmp.ne.s32.totalorder %s44, %s46
    %p50 = scmp.eq.s32.totalorder %s10, 0
    %p51 = por %p49, %p50
    %p52 = scmp.ne.s32.totalorder %s44, %s46
    %p53 = scmp.eq.s32.totalorder %s15, 1
    %p54 = por %p52, %p53
    %p55 = scmp.ne.s32.totalorder %s46, %s47
    %p56 = scmp.eq.s32.totalorder %s15, 0
    %p57 = por %p55, %p56
    %p58 = scmp.ne.s32.totalorder %s46, %s47
    %p59 = scmp.eq.s32.totalorder %s16, 1
    %p60 = por %p58, %p59
    %p62 = scmp.ne.s32.totalorder %s47, %s61
    %p63 = scmp.eq.s32.totalorder %s16, 0
    %p64 = por %p62, %p63
    %s66 = sadd.s32 %s65, 1
    %p69 = scmp.eq.s32.totalorder %s10, 1
    %p70 = scmp.ne.s32.totalorder %s65, %s67
    %p71 = scmp.eq.s32.totalorder %s10, 0
    %p72 = por %p70, %p71
    %p73 = scmp.ne.s32.totalorder %s65, %s67
    %p74 = scmp.eq.s32.totalorder %s15, 1
    %p75 = por %p73, %p74
    %p76 = scmp.ne.s32.totalorder %s67, %s68
    %p77 = scmp.eq.s32.totalorder %s15, 0
    %p78 = por %p76, %p77
    %p79 = scmp.ne.s32.totalorder %s67, %s68
    %p80 = scmp.eq.s32.totalorder %s16, 1
    %p81 = por %p79, %p80
    %p83 = scmp.ne.s32.totalorder %s68, %s82
    %p84 = scmp.eq.s32.totalorder %s16, 0
    %p85 = por %p83, %p84
    %s87 = sadd.s32 %s86, 1
    %p90 = scmp.eq.s32.totalorder %s10, 1
    %p91 = scmp.ne.s32.totalorder %s86, %s88
    %p92 = scmp.eq.s32.totalorder %s10, 0
    %p93 = por %p91, %p92
    %p94 = scmp.ne.s32.totalorder %s86, %s88
    %p95 = scmp.eq.s32.totalorder %s15, 1
    %p96 = por %p94, %p95
    %p97 = scmp.ne.s32.totalorder %s88, %s89
    %p98 = scmp.eq.s32.totalorder %s15, 0
    %p99 = por %p97, %p98
    %p100 = scmp.ne.s32.totalorder %s88, %s89
    %p101 = scmp.eq.s32.totalorder %s16, 1
    %p102 = por %p100, %p101
    %p104 = scmp.ne.s32.totalorder %s89, %s103
    %p105 = scmp.eq.s32.totalorder %s16, 0
    %p106 = por %p104, %p105
    %s107 = ssub.s32 %s10, %s17
    %p108 = scmp.eq.s32.totalorder %s107, 0
    %s110 = sadd.s32 %s109, 1
    %s111 = scalar_select %p108, %s109, %s110
    %p114 = pneg %p108
    %p115 = scmp.eq.s32.totalorder %s10, 1
    %p116 = por %p114, %p115
    %p117 = scmp.ne.s32.totalorder %s109, %s112
    %p118 = scmp.eq.s32.totalorder %s10, 0
    %p119 = por %p117, %p118
    %p120 = scmp.ne.s32.totalorder %s109, %s112
    %p121 = scmp.eq.s32.totalorder %s15, 1
    %p122 = por %p120, %p121
    %p123 = scmp.ne.s32.totalorder %s112, %s113
    %p124 = scmp.eq.s32.totalorder %s15, 0
    %p125 = por %p123, %p124
    %p126 = scmp.ne.s32.totalorder %s112, %s113
    %p127 = scmp.eq.s32.totalorder %s16, 1
    %p128 = por %p126, %p127
    %p130 = scmp.ne.s32.totalorder %s113, %s129
    %p131 = scmp.eq.s32.totalorder %s16, 0
    %p132 = por %p130, %p131
    %p133 = scmp.le.s32.totalorder 1, %s10
    %p134 = scmp.lt.s32.totalorder %s10, 3
    %p135 = pnand %p133, %p134
    %p136 = pneg %p135
    // Predicated region
    $region9: #{alt_filter.3} parent=5 // pred_check
      _
    $region10: #{alt_filter.3} parent=5 // pred_check_branch
      %138 = sbr.rel (%p135) target = $region12
    $region11: #{alt_filter.3} parent=5 // pred_region
      %s139 = ssub.s32 %s10, 1
      // Predicated region
      $region13: #{alt_filter.3} parent=11 // pred_check
        %p140 = pneg %p57
      $region14: #{alt_filter.3} parent=11 // pred_check_branch
        %142 = sbr.rel (%p140) target = $region16
      $region15: #{alt_filter.3} parent=11 // pred_region
        _
      $region16: #{alt_filter.3} parent=11 // pred_fallthru
        _
      // Predicated region
      $region17: #{alt_filter.3} parent=11 // pred_check
        %p143 = pneg %p78
      $region18: #{alt_filter.3} parent=11 // pred_check_branch
        %145 = sbr.rel (%p143) target = $region20
      $region19: #{alt_filter.3} parent=11 // pred_region
        _
      $region20: #{alt_filter.3} parent=11 // pred_fallthru
        _
      // Predicated region
      $region21: #{alt_filter.3} parent=11 // pred_check
        %p146 = pneg %p99
      $region22: #{alt_filter.3} parent=11 // pred_check_branch
        %148 = sbr.rel (%p146) target = $region24
      $region23: #{alt_filter.3} parent=11 // pred_region
        _
      $region24: #{alt_filter.3} parent=11 // pred_fallthru
        _
    $region12: #{alt_filter.3} parent=5 // pred_fallthru
      _
    %p149 = scmp.lt.s32.totalorder %s10, 2
    // Predicated region
    $region25: #{alt_filter.3} parent=5 // pred_check
      %p150 = pneg %p149
    $region26: #{alt_filter.3} parent=5 // pred_check_branch
      %152 = sbr.rel (%p150) target = $region28
    $region27: #{alt_filter.3} parent=5 // pred_region
      // Predicated region
      $region29: #{alt_filter.3} parent=27 // pred_check
        %p153 = pneg %p30
      $region30: #{alt_filter.3} parent=27 // pred_check_branch
        %155 = sbr.rel (%p153) target = $region32
      $region31: #{alt_filter.3} parent=27 // pred_region
        %s156 = smul.u32 16, %s10
        %p157 = scmp.lt.s32.totalorder %s156, 31
        %s158 = scalar_select %p157, %s156, 31
        %s159 = smul.addr %s158, 8
        %s160 = scalar_lea.vmem %s0, %s159
        %s161 = smul.u32 16, %s10
      $region32: #{alt_filter.3} parent=27 // pred_fallthru
        _
    $region28: #{alt_filter.3} parent=5 // pred_fallthru
      _
    %p162 = scmp.le.s32.totalorder 1, %s10
    %p163 = scmp.lt.s32.totalorder %s10, 3
    %p164 = pnand %p162, %p163
    %p165 = pneg %p164
    // Predicated region
    $region33: #{alt_filter.3} parent=5 // pred_check
      _
    $region34: #{alt_filter.3} parent=5 // pred_check_branch
      %167 = sbr.rel (%p164) target = $region36
    $region35: #{alt_filter.3} parent=5 // pred_region
      %s168 = ssub.s32 %s10, 1
      %s169 = smul.u32 16, %s15
      %p170 = scmp.lt.s32.totalorder %s169, 31
      %s171 = scalar_select %p170, %s169, 31
      %s172 = smul.addr %s171, 8
      %s173 = scalar_lea.vmem %s0, %s172
      %p174 = pneg %p36
      %p175 = pneg %p33
      %p176 = pneg %p57
      %p177 = pneg %p54
      %p178 = pneg %p78
      %p179 = pneg %p75
      %p180 = pneg %p99
      %p181 = pneg %p96
      %p182 = pneg %p125
      %p183 = pneg %p122
      %s184 = smul.u32 16, %s15
      %p185 = scmp.lt.s32.totalorder %s184, 31
      %s186 = scalar_select %p185, %s184, 31
      %s187 = smul.addr %s186, 8
      %s188 = scalar_lea.vmem %s4, %s187
      %s189 = smul.u32 16, %s15
      %p190 = scmp.lt.s32.totalorder %s189, 31
      %s191 = scalar_select %p190, %s189, 31
      %s192 = smul.addr %s191, 8
      %s193 = scalar_lea.vmem %s0, %s192
      %s194 = smul.u32 16, %s15
      %s195 = smul.u32 16, %s15
      %p196 = scmp.lt.s32.totalorder %s195, 31
      %s197 = scalar_select %p196, %s195, 31
      %s198 = smul.addr %s197, 8
      %s199 = scalar_lea.vmem %s4, %s198
      %s200 = smul.u32 16, %s15
      %v201 = vld [vmem:[%s193] sm:$0xff]
      %v202 = vld [vmem:[%s193 + $0x8] sm:$0xff]
      %v203 = vld [vmem:[%s193 + $0x10] sm:$0xff]
      %v204 = vld [vmem:[%s193 + $0x18] sm:$0xff]
      %v205 = vld [vmem:[%s193 + $0x20] sm:$0xff]
      %v206 = vld [vmem:[%s193 + $0x28] sm:$0xff]
      %v207 = vld [vmem:[%s193 + $0x30] sm:$0xff]
      %v208 = vld [vmem:[%s193 + $0x38] sm:$0xff]
      %v209 = vld [vmem:[%s193 + $0x40] sm:$0xff]
      %v210 = vld [vmem:[%s193 + $0x48] sm:$0xff]
      %v211 = vld [vmem:[%s193 + $0x50] sm:$0xff]
      %v212 = vld [vmem:[%s193 + $0x58] sm:$0xff]
      %v213 = vld [vmem:[%s193 + $0x60] sm:$0xff]
      %v214 = vld [vmem:[%s193 + $0x68] sm:$0xff]
      %v215 = vld [vmem:[%s193 + $0x70] sm:$0xff]
      %v216 = vld [vmem:[%s193 + $0x78] sm:$0xff]
      %s217 = scalar_lea.vmem %s1, 128
      %v218 = vld [vmem:[%s217] sm:$0xff]
      %v219 = vld [vmem:[%s217 + $0x8] sm:$0xff]
      %v220 = vld [vmem:[%s217 + $0x10] sm:$0xff]
      %v221 = vld [vmem:[%s217 + $0x18] sm:$0xff]
      %v222 = vld [vmem:[%s217 + $0x20] sm:$0xff]
      %v223 = vld [vmem:[%s217 + $0x28] sm:$0xff]
      %v224 = vld [vmem:[%s217 + $0x30] sm:$0xff]
      %v225 = vld [vmem:[%s217 + $0x38] sm:$0xff]
      %v226 = vld [vmem:[%s217 + $0x40] sm:$0xff]
      %v227 = vld [vmem:[%s217 + $0x48] sm:$0xff]
      %v228 = vld [vmem:[%s217 + $0x50] sm:$0xff]
      %v229 = vld [vmem:[%s217 + $0x58] sm:$0xff]
      %v230 = vld [vmem:[%s217 + $0x60] sm:$0xff]
      %v231 = vld [vmem:[%s217 + $0x68] sm:$0xff]
      %v232 = vld [vmem:[%s217 + $0x70] sm:$0xff]
      %v233 = vld [vmem:[%s217 + $0x78] sm:$0xff]
      %v234 = vld [vmem:[%s3] sm:$0x1]
      %v236 = vlaneseq
      %v237 = vshrl.u32 %v236, 7
      %v238 = vsub.s32 0, %v237
      %v239 = vrot.slane %v234, %v238
      %241 = vmatprep.subr.mxu0 0.0
      %242 = vmatpush1.msra.mxu0 %v218
      %243 = vmatprep.subr.mxu0 0.0
      %244 = vmatpush1.msra.mxu0 %v219
      %245 = vmatprep.subr.mxu0 0.0
      %246 = vmatpush1.msra.mxu0 %v220
      %247 = vmatprep.subr.mxu0 0.0
      %248 = vmatpush1.msra.mxu0 %v221
      %249 = vmatprep.subr.mxu0 0.0
      %250 = vmatpush1.msra.mxu0 %v222
      %251 = vmatprep.subr.mxu0 0.0
      %252 = vmatpush1.msra.mxu0 %v223
      %253 = vmatprep.subr.mxu0 0.0
      %254 = vmatpush1.msra.mxu0 %v224
      %255 = vmatprep.subr.mxu0 0.0
      %256 = vmatpush1.msra.mxu0 %v225
      %257 = vmatprep.subr.mxu0 0.0
      %258 = vmatpush1.msra.mxu0 %v226
      %259 = vmatprep.subr.mxu0 0.0
      %260 = vmatpush1.msra.mxu0 %v227
      %261 = vmatprep.subr.mxu0 0.0
      %262 = vmatpush1.msra.mxu0 %v228
      %263 = vmatprep.subr.mxu0 0.0
      %264 = vmatpush1.msra.mxu0 %v229
      %265 = vmatprep.subr.mxu0 0.0
      %266 = vmatpush1.msra.mxu0 %v230
      %267 = vmatprep.subr.mxu0 0.0
      %268 = vmatpush1.msra.mxu0 %v231
      %269 = vmatprep.subr.mxu0 0.0
      %270 = vmatpush1.msra.mxu0 %v232
      %271 = vmatprep.subr.mxu0 0.0
      %272 = vmatpush1.msra.mxu0 %v233
      %273 = vmatprep.subr.mxu0 0.0
      %274 = vmatpush1.msra.mxu0 0.0
      %275 = vmatprep.subr.mxu0 0.0
      %276 = vmatpush1.msra.mxu0 0.0
      %277 = vmatprep.subr.mxu0 0.0
      %278 = vmatpush1.msra.mxu0 0.0
      %279 = vmatprep.subr.mxu0 0.0
      %280 = vmatpush1.msra.mxu0 0.0
      %281 = vmatprep.subr.mxu0 0.0
      %282 = vmatpush1.msra.mxu0 0.0
      %283 = vmatprep.subr.mxu0 0.0
      %284 = vmatpush1.msra.mxu0 0.0
      %285 = vmatprep.subr.mxu0 0.0
      %286 = vmatpush1.msra.mxu0 0.0
      %287 = vmatprep.subr.mxu0 0.0
      %288 = vmatpush1.msra.mxu0 0.0
      %289 = vmatprep.subr.mxu0 0.0
      %290 = vmatpush1.msra.mxu0 0.0
      %291 = vmatprep.subr.mxu0 0.0
      %292 = vmatpush1.msra.mxu0 0.0
      %293 = vmatprep.subr.mxu0 0.0
      %294 = vmatpush1.msra.mxu0 0.0
      %295 = vmatprep.subr.mxu0 0.0
      %296 = vmatpush1.msra.mxu0 0.0
      %297 = vmatprep.subr.mxu0 0.0
      %298 = vmatpush1.msra.mxu0 0.0
      %299 = vmatprep.subr.mxu0 0.0
      %300 = vmatpush1.msra.mxu0 0.0
      %301 = vmatprep.subr.mxu0 0.0
      %302 = vmatpush1.msra.mxu0 0.0
      %303 = vmatprep.subr.mxu0 0.0
      %304 = vmatpush1.msra.mxu0 0.0
      %305 = vmatprep.mubr.f32.mxu0 0.0
      %306 = vmatmul.mubr.f32.gmra.mrb[0].mxu0 %v201
      %v307 = vpop.f32.mrb[0].mxu0
      %v308 = vadd.f32 %v239, %v307
      %v309 = vpop.f32.mrb[0].mxu0
      %310 = vmatprep.mubr.f32.mxu0 0.0
      %311 = vmatmul.mubr.f32.gmra.mrb[0].mxu0 %v202
      %v312 = vpop.f32.mrb[0].mxu0
      %v313 = vadd.f32 %v239, %v312
      %v314 = vpop.f32.mrb[0].mxu0
      %315 = vmatprep.mubr.f32.mxu0 0.0
      %316 = vmatmul.mubr.f32.gmra.mrb[0].mxu0 %v203
      %v317 = vpop.f32.mrb[0].mxu0
      %v318 = vadd.f32 %v239, %v317
      %v319 = vpop.f32.mrb[0].mxu0
      %320 = vmatprep.mubr.f32.mxu0 0.0
      %321 = vmatmul.mubr.f32.gmra.mrb[0].mxu0 %v204
      %v322 = vpop.f32.mrb[0].mxu0
      %v323 = vadd.f32 %v239, %v322
      %v324 = vpop.f32.mrb[0].mxu0
      %325 = vmatprep.mubr.f32.mxu0 0.0
      %326 = vmatmul.mubr.f32.gmra.mrb[0].mxu0 %v205
      %v327 = vpop.f32.mrb[0].mxu0
      %v328 = vadd.f32 %v239, %v327
      %v329 = vpop.f32.mrb[0].mxu0
      %330 = vmatprep.mubr.f32.mxu0 0.0
      %331 = vmatmul.mubr.f32.gmra.mrb[0].mxu0 %v206
      %v332 = vpop.f32.mrb[0].mxu0
      %v333 = vadd.f32 %v239, %v332
      %v334 = vpop.f32.mrb[0].mxu0
      %335 = vmatprep.mubr.f32.mxu0 0.0
      %336 = vmatmul.mubr.f32.gmra.mrb[0].mxu0 %v207
      %v337 = vpop.f32.mrb[0].mxu0
      %v338 = vadd.f32 %v239, %v337
      %v339 = vpop.f32.mrb[0].mxu0
      %340 = vmatprep.mubr.f32.mxu0 0.0
      %341 = vmatmul.mubr.f32.gmra.mrb[0].mxu0 %v208
      %v342 = vpop.f32.mrb[0].mxu0
      %v343 = vadd.f32 %v239, %v342
      %v344 = vpop.f32.mrb[0].mxu0
      %345 = vmatprep.mubr.f32.mxu0 0.0
      %346 = vmatmul.mubr.f32.gmra.mrb[0].mxu0 %v209
      %v347 = vpop.f32.mrb[0].mxu0
      %v348 = vadd.f32 %v239, %v347
      %v349 = vpop.f32.mrb[0].mxu0
      %350 = vmatprep.mubr.f32.mxu0 0.0
      %351 = vmatmul.mubr.f32.gmra.mrb[0].mxu0 %v210
      %v352 = vpop.f32.mrb[0].mxu0
      %v353 = vadd.f32 %v239, %v352
      %v354 = vpop.f32.mrb[0].mxu0
      %355 = vmatprep.mubr.f32.mxu0 0.0
      %356 = vmatmul.mubr.f32.gmra.mrb[0].mxu0 %v211
      %v357 = vpop.f32.mrb[0].mxu0
      %v358 = vadd.f32 %v239, %v357
      %v359 = vpop.f32.mrb[0].mxu0
      %360 = vmatprep.mubr.f32.mxu0 0.0
      %361 = vmatmul.mubr.f32.gmra.mrb[0].mxu0 %v212
      %v362 = vpop.f32.mrb[0].mxu0
      %v363 = vadd.f32 %v239, %v362
      %v364 = vpop.f32.mrb[0].mxu0
      %365 = vmatprep.mubr.f32.mxu0 0.0
      %366 = vmatmul.mubr.f32.gmra.mrb[0].mxu0 %v213
      %v367 = vpop.f32.mrb[0].mxu0
      %v368 = vadd.f32 %v239, %v367
      %v369 = vpop.f32.mrb[0].mxu0
      %370 = vmatprep.mubr.f32.mxu0 0.0
      %371 = vmatmul.mubr.f32.gmra.mrb[0].mxu0 %v214
      %v372 = vpop.f32.mrb[0].mxu0
      %v373 = vadd.f32 %v239, %v372
      %v374 = vpop.f32.mrb[0].mxu0
      %375 = vmatprep.mubr.f32.mxu0 0.0
      %376 = vmatmul.mubr.f32.gmra.mrb[0].mxu0 %v215
      %v377 = vpop.f32.mrb[0].mxu0
      %v378 = vadd.f32 %v239, %v377
      %v379 = vpop.f32.mrb[0].mxu0
      %380 = vmatprep.mubr.f32.mxu0 0.0
      %381 = vmatmul.mubr.f32.gmra.mrb[0].mxu0 %v216
      %v382 = vpop.f32.mrb[0].mxu0
      %v383 = vadd.f32 %v239, %v382
      %v384 = vpop.f32.mrb[0].mxu0
      %385 = vdwg.mxu0
      %v386 = vld [vmem:[%s2] sm:$0xff]
      %v387 = vld [vmem:[%s2 + $0x8] sm:$0xff]
      %v388 = vld [vmem:[%s2 + $0x10] sm:$0xff]
      %v389 = vld [vmem:[%s2 + $0x18] sm:$0xff]
      %v390 = vld [vmem:[%s2 + $0x20] sm:$0xff]
      %v391 = vld [vmem:[%s2 + $0x28] sm:$0xff]
      %v392 = vld [vmem:[%s2 + $0x30] sm:$0xff]
      %v393 = vld [vmem:[%s2 + $0x38] sm:$0xff]
      %v394 = vld [vmem:[%s2 + $0x40] sm:$0xff]
      %v395 = vld [vmem:[%s2 + $0x48] sm:$0xff]
      %v396 = vld [vmem:[%s2 + $0x50] sm:$0xff]
      %v397 = vld [vmem:[%s2 + $0x58] sm:$0xff]
      %v398 = vld [vmem:[%s2 + $0x60] sm:$0xff]
      %v399 = vld [vmem:[%s2 + $0x68] sm:$0xff]
      %v400 = vld [vmem:[%s2 + $0x70] sm:$0xff]
      %v401 = vld [vmem:[%s2 + $0x78] sm:$0xff]
      %402 = vmatprep.subr.mxu0 0.0
      %403 = vmatpush1.msra.mxu0 %v201
      %404 = vmatprep.subr.mxu0 0.0
      %405 = vmatpush1.msra.mxu0 %v202
      %406 = vmatprep.subr.mxu0 0.0
      %407 = vmatpush1.msra.mxu0 %v203
      %408 = vmatprep.subr.mxu0 0.0
      %409 = vmatpush1.msra.mxu0 %v204
      %410 = vmatprep.subr.mxu0 0.0
      %411 = vmatpush1.msra.mxu0 %v205
      %412 = vmatprep.subr.mxu0 0.0
      %413 = vmatpush1.msra.mxu0 %v206
      %414 = vmatprep.subr.mxu0 0.0
      %415 = vmatpush1.msra.mxu0 %v207
      %416 = vmatprep.subr.mxu0 0.0
      %417 = vmatpush1.msra.mxu0 %v208
      %418 = vmatprep.subr.mxu0 0.0
      %419 = vmatpush1.msra.mxu0 %v209
      %420 = vmatprep.subr.mxu0 0.0
      %421 = vmatpush1.msra.mxu0 %v210
      %422 = vmatprep.subr.mxu0 0.0
      %423 = vmatpush1.msra.mxu0 %v211
      %424 = vmatprep.subr.mxu0 0.0
      %425 = vmatpush1.msra.mxu0 %v212
      %426 = vmatprep.subr.mxu0 0.0
      %427 = vmatpush1.msra.mxu0 %v213
      %428 = vmatprep.subr.mxu0 0.0
      %429 = vmatpush1.msra.mxu0 %v214
      %430 = vmatprep.subr.mxu0 0.0
      %431 = vmatpush1.msra.mxu0 %v215
      %432 = vmatprep.subr.mxu0 0.0
      %433 = vmatpush1.msra.mxu0 %v216
      %434 = vmatprep.subr.mxu0 0.0
      %435 = vmatpush1.msra.mxu0 0.0
      %436 = vmatprep.subr.mxu0 0.0
      %437 = vmatpush1.msra.mxu0 0.0
      %438 = vmatprep.subr.mxu0 0.0
      %439 = vmatpush1.msra.mxu0 0.0
      %440 = vmatprep.subr.mxu0 0.0
      %441 = vmatpush1.msra.mxu0 0.0
      %442 = vmatprep.subr.mxu0 0.0
      %443 = vmatpush1.msra.mxu0 0.0
      %444 = vmatprep.subr.mxu0 0.0
      %445 = vmatpush1.msra.mxu0 0.0
      %446 = vmatprep.subr.mxu0 0.0
      %447 = vmatpush1.msra.mxu0 0.0
      %448 = vmatprep.subr.mxu0 0.0
      %449 = vmatpush1.msra.mxu0 0.0
      %450 = vmatprep.subr.mxu0 0.0
      %451 = vmatpush1.msra.mxu0 0.0
      %452 = vmatprep.subr.mxu0 0.0
      %453 = vmatpush1.msra.mxu0 0.0
      %454 = vmatprep.subr.mxu0 0.0
      %455 = vmatpush1.msra.mxu0 0.0
      %456 = vmatprep.subr.mxu0 0.0
      %457 = vmatpush1.msra.mxu0 0.0
      %458 = vmatprep.subr.mxu0 0.0
      %459 = vmatpush1.msra.mxu0 0.0
      %460 = vmatprep.subr.mxu0 0.0
      %461 = vmatpush1.msra.mxu0 0.0
      %462 = vmatprep.subr.mxu0 0.0
      %463 = vmatpush1.msra.mxu0 0.0
      %464 = vmatprep.subr.mxu0 0.0
      %465 = vmatpush1.msra.mxu0 0.0
      %466 = vmatprep.mubr.f32.mxu0 0.0
      %467 = vmatmul.mubr.f32.gmra.mrb[0].mxu0 %v386
      %v468 = vpop.f32.mrb[0].mxu0
      %v469 = vadd.f32 0.0, %v468
      %v470 = vpop.f32.mrb[0].mxu0
      %471 = vmatprep.mubr.f32.mxu0 0.0
      %472 = vmatmul.mubr.f32.gmra.mrb[0].mxu0 %v387
      %v473 = vpop.f32.mrb[0].mxu0
      %v474 = vadd.f32 0.0, %v473
      %v475 = vpop.f32.mrb[0].mxu0
      %476 = vmatprep.mubr.f32.mxu0 0.0
      %477 = vmatmul.mubr.f32.gmra.mrb[0].mxu0 %v388
      %v478 = vpop.f32.mrb[0].mxu0
      %v479 = vadd.f32 0.0, %v478
      %v480 = vpop.f32.mrb[0].mxu0
      %481 = vmatprep.mubr.f32.mxu0 0.0
      %482 = vmatmul.mubr.f32.gmra.mrb[0].mxu0 %v389
      %v483 = vpop.f32.mrb[0].mxu0
      %v484 = vadd.f32 0.0, %v483
      %v485 = vpop.f32.mrb[0].mxu0
      %486 = vmatprep.mubr.f32.mxu0 0.0
      %487 = vmatmul.mubr.f32.gmra.mrb[0].mxu0 %v390
      %v488 = vpop.f32.mrb[0].mxu0
      %v489 = vadd.f32 0.0, %v488
      %v490 = vpop.f32.mrb[0].mxu0
      %491 = vmatprep.mubr.f32.mxu0 0.0
      %492 = vmatmul.mubr.f32.gmra.mrb[0].mxu0 %v391
      %v493 = vpop.f32.mrb[0].mxu0
      %v494 = vadd.f32 0.0, %v493
      %v495 = vpop.f32.mrb[0].mxu0
      %496 = vmatprep.mubr.f32.mxu0 0.0
      %497 = vmatmul.mubr.f32.gmra.mrb[0].mxu0 %v392
      %v498 = vpop.f32.mrb[0].mxu0
      %v499 = vadd.f32 0.0, %v498
      %v500 = vpop.f32.mrb[0].mxu0
      %501 = vmatprep.mubr.f32.mxu0 0.0
      %502 = vmatmul.mubr.f32.gmra.mrb[0].mxu0 %v393
      %v503 = vpop.f32.mrb[0].mxu0
      %v504 = vadd.f32 0.0, %v503
      %v505 = vpop.f32.mrb[0].mxu0
      %506 = vmatprep.mubr.f32.mxu0 0.0
      %507 = vmatmul.mubr.f32.gmra.mrb[0].mxu0 %v394
      %v508 = vpop.f32.mrb[0].mxu0
      %v509 = vadd.f32 0.0, %v508
      %v510 = vpop.f32.mrb[0].mxu0
      %511 = vmatprep.mubr.f32.mxu0 0.0
      %512 = vmatmul.mubr.f32.gmra.mrb[0].mxu0 %v395
      %v513 = vpop.f32.mrb[0].mxu0
      %v514 = vadd.f32 0.0, %v513
      %v515 = vpop.f32.mrb[0].mxu0
      %516 = vmatprep.mubr.f32.mxu0 0.0
      %517 = vmatmul.mubr.f32.gmra.mrb[0].mxu0 %v396
      %v518 = vpop.f32.mrb[0].mxu0
      %v519 = vadd.f32 0.0, %v518
      %v520 = vpop.f32.mrb[0].mxu0
      %521 = vmatprep.mubr.f32.mxu0 0.0
      %522 = vmatmul.mubr.f32.gmra.mrb[0].mxu0 %v397
      %v523 = vpop.f32.mrb[0].mxu0
      %v524 = vadd.f32 0.0, %v523
      %v525 = vpop.f32.mrb[0].mxu0
      %526 = vmatprep.mubr.f32.mxu0 0.0
      %527 = vmatmul.mubr.f32.gmra.mrb[0].mxu0 %v398
      %v528 = vpop.f32.mrb[0].mxu0
      %v529 = vadd.f32 0.0, %v528
      %v530 = vpop.f32.mrb[0].mxu0
      %531 = vmatprep.mubr.f32.mxu0 0.0
      %532 = vmatmul.mubr.f32.gmra.mrb[0].mxu0 %v399
      %v533 = vpop.f32.mrb[0].mxu0
      %v534 = vadd.f32 0.0, %v533
      %v535 = vpop.f32.mrb[0].mxu0
      %536 = vmatprep.mubr.f32.mxu0 0.0
      %537 = vmatmul.mubr.f32.gmra.mrb[0].mxu0 %v400
      %v538 = vpop.f32.mrb[0].mxu0
      %v539 = vadd.f32 0.0, %v538
      %v540 = vpop.f32.mrb[0].mxu0
      %541 = vmatprep.mubr.f32.mxu0 0.0
      %542 = vmatmul.mubr.f32.gmra.mrb[0].mxu0 %v401
      %v543 = vpop.f32.mrb[0].mxu0
      %v544 = vadd.f32 0.0, %v543
      %v545 = vpop.f32.mrb[0].mxu0
      %546 = vdwg.mxu0
      %v547 = vld [vmem:[%s1] sm:$0xff]
      %v548 = vld [vmem:[%s1 + $0x8] sm:$0xff]
      %v549 = vld [vmem:[%s1 + $0x10] sm:$0xff]
      %v550 = vld [vmem:[%s1 + $0x18] sm:$0xff]
      %v551 = vld [vmem:[%s1 + $0x20] sm:$0xff]
      %v552 = vld [vmem:[%s1 + $0x28] sm:$0xff]
      %v553 = vld [vmem:[%s1 + $0x30] sm:$0xff]
      %v554 = vld [vmem:[%s1 + $0x38] sm:$0xff]
      %v555 = vld [vmem:[%s1 + $0x40] sm:$0xff]
      %v556 = vld [vmem:[%s1 + $0x48] sm:$0xff]
      %v557 = vld [vmem:[%s1 + $0x50] sm:$0xff]
      %v558 = vld [vmem:[%s1 + $0x58] sm:$0xff]
      %v559 = vld [vmem:[%s1 + $0x60] sm:$0xff]
      %v560 = vld [vmem:[%s1 + $0x68] sm:$0xff]
      %v561 = vld [vmem:[%s1 + $0x70] sm:$0xff]
      %v562 = vld [vmem:[%s1 + $0x78] sm:$0xff]
      %563 = vmatprep.subr.mxu0 0.0
      %564 = vmatpush1.msra.mxu0 %v547
      %565 = vmatprep.subr.mxu0 0.0
      %566 = vmatpush1.msra.mxu0 %v548
      %567 = vmatprep.subr.mxu0 0.0
      %568 = vmatpush1.msra.mxu0 %v549
      %569 = vmatprep.subr.mxu0 0.0
      %570 = vmatpush1.msra.mxu0 %v550
      %571 = vmatprep.subr.mxu0 0.0
      %572 = vmatpush1.msra.mxu0 %v551
      %573 = vmatprep.subr.mxu0 0.0
      %574 = vmatpush1.msra.mxu0 %v552
      %575 = vmatprep.subr.mxu0 0.0
      %576 = vmatpush1.msra.mxu0 %v553
      %577 = vmatprep.subr.mxu0 0.0
      %578 = vmatpush1.msra.mxu0 %v554
      %579 = vmatprep.subr.mxu0 0.0
      %580 = vmatpush1.msra.mxu0 %v555
      %581 = vmatprep.subr.mxu0 0.0
      %582 = vmatpush1.msra.mxu0 %v556
      %583 = vmatprep.subr.mxu0 0.0
      %584 = vmatpush1.msra.mxu0 %v557
      %585 = vmatprep.subr.mxu0 0.0
      %586 = vmatpush1.msra.mxu0 %v558
      %587 = vmatprep.subr.mxu0 0.0
      %588 = vmatpush1.msra.mxu0 %v559
      %589 = vmatprep.subr.mxu0 0.0
      %590 = vmatpush1.msra.mxu0 %v560
      %591 = vmatprep.subr.mxu0 0.0
      %592 = vmatpush1.msra.mxu0 %v561
      %593 = vmatprep.subr.mxu0 0.0
      %594 = vmatpush1.msra.mxu0 %v562
      %595 = vmatprep.subr.mxu0 0.0
      %596 = vmatpush1.msra.mxu0 0.0
      %597 = vmatprep.subr.mxu0 0.0
      %598 = vmatpush1.msra.mxu0 0.0
      %599 = vmatprep.subr.mxu0 0.0
      %600 = vmatpush1.msra.mxu0 0.0
      %601 = vmatprep.subr.mxu0 0.0
      %602 = vmatpush1.msra.mxu0 0.0
      %603 = vmatprep.subr.mxu0 0.0
      %604 = vmatpush1.msra.mxu0 0.0
      %605 = vmatprep.subr.mxu0 0.0
      %606 = vmatpush1.msra.mxu0 0.0
      %607 = vmatprep.subr.mxu0 0.0
      %608 = vmatpush1.msra.mxu0 0.0
      %609 = vmatprep.subr.mxu0 0.0
      %610 = vmatpush1.msra.mxu0 0.0
      %611 = vmatprep.subr.mxu0 0.0
      %612 = vmatpush1.msra.mxu0 0.0
      %613 = vmatprep.subr.mxu0 0.0
      %614 = vmatpush1.msra.mxu0 0.0
      %615 = vmatprep.subr.mxu0 0.0
      %616 = vmatpush1.msra.mxu0 0.0
      %617 = vmatprep.subr.mxu0 0.0
      %618 = vmatpush1.msra.mxu0 0.0
      %619 = vmatprep.subr.mxu0 0.0
      %620 = vmatpush1.msra.mxu0 0.0
      %621 = vmatprep.subr.mxu0 0.0
      %622 = vmatpush1.msra.mxu0 0.0
      %623 = vmatprep.subr.mxu0 0.0
      %624 = vmatpush1.msra.mxu0 0.0
      %625 = vmatprep.subr.mxu0 0.0
      %626 = vmatpush1.msra.mxu0 0.0
      %627 = vmatprep.mubr.f32.mxu0 0.0
      %628 = vmatmul.mubr.f32.gmra.mrb[0].mxu0 %v469
      %v629 = vpop.f32.mrb[0].mxu0
      %v630 = vadd.f32 0.0, %v629
      %v631 = vpop.f32.mrb[0].mxu0
      %632 = vmatprep.mubr.f32.mxu0 0.0
      %633 = vmatmul.mubr.f32.gmra.mrb[0].mxu0 %v474
      %v634 = vpop.f32.mrb[0].mxu0
      %v635 = vadd.f32 0.0, %v634
      %v636 = vpop.f32.mrb[0].mxu0
      %637 = vmatprep.mubr.f32.mxu0 0.0
      %638 = vmatmul.mubr.f32.gmra.mrb[0].mxu0 %v479
      %v639 = vpop.f32.mrb[0].mxu0
      %v640 = vadd.f32 0.0, %v639
      %v641 = vpop.f32.mrb[0].mxu0
      %642 = vmatprep.mubr.f32.mxu0 0.0
      %643 = vmatmul.mubr.f32.gmra.mrb[0].mxu0 %v484
      %v644 = vpop.f32.mrb[0].mxu0
      %v645 = vadd.f32 0.0, %v644
      %v646 = vpop.f32.mrb[0].mxu0
      %647 = vmatprep.mubr.f32.mxu0 0.0
      %648 = vmatmul.mubr.f32.gmra.mrb[0].mxu0 %v489
      %v649 = vpop.f32.mrb[0].mxu0
      %v650 = vadd.f32 0.0, %v649
      %v651 = vpop.f32.mrb[0].mxu0
      %652 = vmatprep.mubr.f32.mxu0 0.0
      %653 = vmatmul.mubr.f32.gmra.mrb[0].mxu0 %v494
      %v654 = vpop.f32.mrb[0].mxu0
      %v655 = vadd.f32 0.0, %v654
      %v656 = vpop.f32.mrb[0].mxu0
      %657 = vmatprep.mubr.f32.mxu0 0.0
      %658 = vmatmul.mubr.f32.gmra.mrb[0].mxu0 %v499
      %v659 = vpop.f32.mrb[0].mxu0
      %v660 = vadd.f32 0.0, %v659
      %v661 = vpop.f32.mrb[0].mxu0
      %662 = vmatprep.mubr.f32.mxu0 0.0
      %663 = vmatmul.mubr.f32.gmra.mrb[0].mxu0 %v504
      %v664 = vpop.f32.mrb[0].mxu0
      %v665 = vadd.f32 0.0, %v664
      %v666 = vpop.f32.mrb[0].mxu0
      %667 = vmatprep.mubr.f32.mxu0 0.0
      %668 = vmatmul.mubr.f32.gmra.mrb[0].mxu0 %v509
      %v669 = vpop.f32.mrb[0].mxu0
      %v670 = vadd.f32 0.0, %v669
      %v671 = vpop.f32.mrb[0].mxu0
      %672 = vmatprep.mubr.f32.mxu0 0.0
      %673 = vmatmul.mubr.f32.gmra.mrb[0].mxu0 %v514
      %v674 = vpop.f32.mrb[0].mxu0
      %v675 = vadd.f32 0.0, %v674
      %v676 = vpop.f32.mrb[0].mxu0
      %677 = vmatprep.mubr.f32.mxu0 0.0
      %678 = vmatmul.mubr.f32.gmra.mrb[0].mxu0 %v519
      %v679 = vpop.f32.mrb[0].mxu0
      %v680 = vadd.f32 0.0, %v679
      %v681 = vpop.f32.mrb[0].mxu0
      %682 = vmatprep.mubr.f32.mxu0 0.0
      %683 = vmatmul.mubr.f32.gmra.mrb[0].mxu0 %v524
      %v684 = vpop.f32.mrb[0].mxu0
      %v685 = vadd.f32 0.0, %v684
      %v686 = vpop.f32.mrb[0].mxu0
      %687 = vmatprep.mubr.f32.mxu0 0.0
      %688 = vmatmul.mubr.f32.gmra.mrb[0].mxu0 %v529
      %v689 = vpop.f32.mrb[0].mxu0
      %v690 = vadd.f32 0.0, %v689
      %v691 = vpop.f32.mrb[0].mxu0
      %692 = vmatprep.mubr.f32.mxu0 0.0
      %693 = vmatmul.mubr.f32.gmra.mrb[0].mxu0 %v534
      %v694 = vpop.f32.mrb[0].mxu0
      %v695 = vadd.f32 0.0, %v694
      %v696 = vpop.f32.mrb[0].mxu0
      %697 = vmatprep.mubr.f32.mxu0 0.0
      %698 = vmatmul.mubr.f32.gmra.mrb[0].mxu0 %v539
      %v699 = vpop.f32.mrb[0].mxu0
      %v700 = vadd.f32 0.0, %v699
      %v701 = vpop.f32.mrb[0].mxu0
      %702 = vmatprep.mubr.f32.mxu0 0.0
      %703 = vmatmul.mubr.f32.gmra.mrb[0].mxu0 %v544
      %v704 = vpop.f32.mrb[0].mxu0
      %v705 = vadd.f32 0.0, %v704
      %v706 = vpop.f32.mrb[0].mxu0
      %707 = vdwg.mxu0
      %v708 = vadd.f32 %v308, %v630
      %v709 = vadd.f32 %v313, %v635
      %v710 = vadd.f32 %v318, %v640
      %v711 = vadd.f32 %v323, %v645
      %v712 = vadd.f32 %v328, %v650
      %v713 = vadd.f32 %v333, %v655
      %v714 = vadd.f32 %v338, %v660
      %v715 = vadd.f32 %v343, %v665
      %v716 = vadd.f32 %v348, %v670
      %v717 = vadd.f32 %v353, %v675
      %v718 = vadd.f32 %v358, %v680
      %v719 = vadd.f32 %v363, %v685
      %v720 = vadd.f32 %v368, %v690
      %v721 = vadd.f32 %v373, %v695
      %v722 = vadd.f32 %v378, %v700
      %v723 = vadd.f32 %v383, %v705
      %s724 = scalar_lea.vmem %s2, 128
      %v725 = vld [vmem:[%s724] sm:$0xff]
      %v726 = vld [vmem:[%s724 + $0x8] sm:$0xff]
      %v727 = vld [vmem:[%s724 + $0x10] sm:$0xff]
      %v728 = vld [vmem:[%s724 + $0x18] sm:$0xff]
      %v729 = vld [vmem:[%s724 + $0x20] sm:$0xff]
      %v730 = vld [vmem:[%s724 + $0x28] sm:$0xff]
      %v731 = vld [vmem:[%s724 + $0x30] sm:$0xff]
      %v732 = vld [vmem:[%s724 + $0x38] sm:$0xff]
      %v733 = vld [vmem:[%s724 + $0x40] sm:$0xff]
      %v734 = vld [vmem:[%s724 + $0x48] sm:$0xff]
      %v735 = vld [vmem:[%s724 + $0x50] sm:$0xff]
      %v736 = vld [vmem:[%s724 + $0x58] sm:$0xff]
      %v737 = vld [vmem:[%s724 + $0x60] sm:$0xff]
      %v738 = vld [vmem:[%s724 + $0x68] sm:$0xff]
      %v739 = vld [vmem:[%s724 + $0x70] sm:$0xff]
      %v740 = vld [vmem:[%s724 + $0x78] sm:$0xff]
      %741 = vmatprep.subr.mxu0 0.0
      %742 = vmatpush1.msra.mxu0 %v201
      %743 = vmatprep.subr.mxu0 0.0
      %744 = vmatpush1.msra.mxu0 %v202
      %745 = vmatprep.subr.mxu0 0.0
      %746 = vmatpush1.msra.mxu0 %v203
      %747 = vmatprep.subr.mxu0 0.0
      %748 = vmatpush1.msra.mxu0 %v204
      %749 = vmatprep.subr.mxu0 0.0
      %750 = vmatpush1.msra.mxu0 %v205
      %751 = vmatprep.subr.mxu0 0.0
      %752 = vmatpush1.msra.mxu0 %v206
      %753 = vmatprep.subr.mxu0 0.0
      %754 = vmatpush1.msra.mxu0 %v207
      %755 = vmatprep.subr.mxu0 0.0
      %756 = vmatpush1.msra.mxu0 %v208
      %757 = vmatprep.subr.mxu0 0.0
      %758 = vmatpush1.msra.mxu0 %v209
      %759 = vmatprep.subr.mxu0 0.0
      %760 = vmatpush1.msra.mxu0 %v210
      %761 = vmatprep.subr.mxu0 0.0
      %762 = vmatpush1.msra.mxu0 %v211
      %763 = vmatprep.subr.mxu0 0.0
      %764 = vmatpush1.msra.mxu0 %v212
      %765 = vmatprep.subr.mxu0 0.0
      %766 = vmatpush1.msra.mxu0 %v213
      %767 = vmatprep.subr.mxu0 0.0
      %768 = vmatpush1.msra.mxu0 %v214
      %769 = vmatprep.subr.mxu0 0.0
      %770 = vmatpush1.msra.mxu0 %v215
      %771 = vmatprep.subr.mxu0 0.0
      %772 = vmatpush1.msra.mxu0 %v216
      %773 = vmatprep.subr.mxu0 0.0
      %774 = vmatpush1.msra.mxu0 0.0
      %775 = vmatprep.subr.mxu0 0.0
      %776 = vmatpush1.msra.mxu0 0.0
      %777 = vmatprep.subr.mxu0 0.0
      %778 = vmatpush1.msra.mxu0 0.0
      %779 = vmatprep.subr.mxu0 0.0
      %780 = vmatpush1.msra.mxu0 0.0
      %781 = vmatprep.subr.mxu0 0.0
      %782 = vmatpush1.msra.mxu0 0.0
      %783 = vmatprep.subr.mxu0 0.0
      %784 = vmatpush1.msra.mxu0 0.0
      %785 = vmatprep.subr.mxu0 0.0
      %786 = vmatpush1.msra.mxu0 0.0
      %787 = vmatprep.subr.mxu0 0.0
      %788 = vmatpush1.msra.mxu0 0.0
      %789 = vmatprep.subr.mxu0 0.0
      %790 = vmatpush1.msra.mxu0 0.0
      %791 = vmatprep.subr.mxu0 0.0
      %792 = vmatpush1.msra.mxu0 0.0
      %793 = vmatprep.subr.mxu0 0.0
      %794 = vmatpush1.msra.mxu0 0.0
      %795 = vmatprep.subr.mxu0 0.0
      %796 = vmatpush1.msra.mxu0 0.0
      %797 = vmatprep.subr.mxu0 0.0
      %798 = vmatpush1.msra.mxu0 0.0
      %799 = vmatprep.subr.mxu0 0.0
      %800 = vmatpush1.msra.mxu0 0.0
      %801 = vmatprep.subr.mxu0 0.0
      %802 = vmatpush1.msra.mxu0 0.0
      %803 = vmatprep.subr.mxu0 0.0
      %804 = vmatpush1.msra.mxu0 0.0
      %805 = vmatprep.mubr.f32.mxu0 0.0
      %806 = vmatmul.mubr.f32.gmra.mrb[0].mxu0 %v725
      %v807 = vpop.f32.mrb[0].mxu0
      %v808 = vadd.f32 0.0, %v807
      %v809 = vpop.f32.mrb[0].mxu0
      %810 = vmatprep.mubr.f32.mxu0 0.0
      %811 = vmatmul.mubr.f32.gmra.mrb[0].mxu0 %v726
      %v812 = vpop.f32.mrb[0].mxu0
      %v813 = vadd.f32 0.0, %v812
      %v814 = vpop.f32.mrb[0].mxu0
      %815 = vmatprep.mubr.f32.mxu0 0.0
      %816 = vmatmul.mubr.f32.gmra.mrb[0].mxu0 %v727
      %v817 = vpop.f32.mrb[0].mxu0
      %v818 = vadd.f32 0.0, %v817
      %v819 = vpop.f32.mrb[0].mxu0
      %820 = vmatprep.mubr.f32.mxu0 0.0
      %821 = vmatmul.mubr.f32.gmra.mrb[0].mxu0 %v728
      %v822 = vpop.f32.mrb[0].mxu0
      %v823 = vadd.f32 0.0, %v822
      %v824 = vpop.f32.mrb[0].mxu0
      %825 = vmatprep.mubr.f32.mxu0 0.0
      %826 = vmatmul.mubr.f32.gmra.mrb[0].mxu0 %v729
      %v827 = vpop.f32.mrb[0].mxu0
      %v828 = vadd.f32 0.0, %v827
      %v829 = vpop.f32.mrb[0].mxu0
      %830 = vmatprep.mubr.f32.mxu0 0.0
      %831 = vmatmul.mubr.f32.gmra.mrb[0].mxu0 %v730
      %v832 = vpop.f32.mrb[0].mxu0
      %v833 = vadd.f32 0.0, %v832
      %v834 = vpop.f32.mrb[0].mxu0
      %835 = vmatprep.mubr.f32.mxu0 0.0
      %836 = vmatmul.mubr.f32.gmra.mrb[0].mxu0 %v731
      %v837 = vpop.f32.mrb[0].mxu0
      %v838 = vadd.f32 0.0, %v837
      %v839 = vpop.f32.mrb[0].mxu0
      %840 = vmatprep.mubr.f32.mxu0 0.0
      %841 = vmatmul.mubr.f32.gmra.mrb[0].mxu0 %v732
      %v842 = vpop.f32.mrb[0].mxu0
      %v843 = vadd.f32 0.0, %v842
      %v844 = vpop.f32.mrb[0].mxu0
      %845 = vmatprep.mubr.f32.mxu0 0.0
      %846 = vmatmul.mubr.f32.gmra.mrb[0].mxu0 %v733
      %v847 = vpop.f32.mrb[0].mxu0
      %v848 = vadd.f32 0.0, %v847
      %v849 = vpop.f32.mrb[0].mxu0
      %850 = vmatprep.mubr.f32.mxu0 0.0
      %851 = vmatmul.mubr.f32.gmra.mrb[0].mxu0 %v734
      %v852 = vpop.f32.mrb[0].mxu0
      %v853 = vadd.f32 0.0, %v852
      %v854 = vpop.f32.mrb[0].mxu0
      %855 = vmatprep.mubr.f32.mxu0 0.0
      %856 = vmatmul.mubr.f32.gmra.mrb[0].mxu0 %v735
      %v857 = vpop.f32.mrb[0].mxu0
      %v858 = vadd.f32 0.0, %v857
      %v859 = vpop.f32.mrb[0].mxu0
      %860 = vmatprep.mubr.f32.mxu0 0.0
      %861 = vmatmul.mubr.f32.gmra.mrb[0].mxu0 %v736
      %v862 = vpop.f32.mrb[0].mxu0
      %v863 = vadd.f32 0.0, %v862
      %v864 = vpop.f32.mrb[0].mxu0
      %865 = vmatprep.mubr.f32.mxu0 0.0
      %866 = vmatmul.mubr.f32.gmra.mrb[0].mxu0 %v737
      %v867 = vpop.f32.mrb[0].mxu0
      %v868 = vadd.f32 0.0, %v867
      %v869 = vpop.f32.mrb[0].mxu0
      %870 = vmatprep.mubr.f32.mxu0 0.0
      %871 = vmatmul.mubr.f32.gmra.mrb[0].mxu0 %v738
      %v872 = vpop.f32.mrb[0].mxu0
      %v873 = vadd.f32 0.0, %v872
      %v874 = vpop.f32.mrb[0].mxu0
      %875 = vmatprep.mubr.f32.mxu0 0.0
      %876 = vmatmul.mubr.f32.gmra.mrb[0].mxu0 %v739
      %v877 = vpop.f32.mrb[0].mxu0
      %v878 = vadd.f32 0.0, %v877
      %v879 = vpop.f32.mrb[0].mxu0
      %880 = vmatprep.mubr.f32.mxu0 0.0
      %881 = vmatmul.mubr.f32.gmra.mrb[0].mxu0 %v740
      %v882 = vpop.f32.mrb[0].mxu0
      %v883 = vadd.f32 0.0, %v882
      %v884 = vpop.f32.mrb[0].mxu0
      %885 = vdwg.mxu0
      %s886 = scalar_lea.vmem %s1, 256
      %v887 = vld [vmem:[%s886] sm:$0xff]
      %v888 = vld [vmem:[%s886 + $0x8] sm:$0xff]
      %v889 = vld [vmem:[%s886 + $0x10] sm:$0xff]
      %v890 = vld [vmem:[%s886 + $0x18] sm:$0xff]
      %v891 = vld [vmem:[%s886 + $0x20] sm:$0xff]
      %v892 = vld [vmem:[%s886 + $0x28] sm:$0xff]
      %v893 = vld [vmem:[%s886 + $0x30] sm:$0xff]
      %v894 = vld [vmem:[%s886 + $0x38] sm:$0xff]
      %v895 = vld [vmem:[%s886 + $0x40] sm:$0xff]
      %v896 = vld [vmem:[%s886 + $0x48] sm:$0xff]
      %v897 = vld [vmem:[%s886 + $0x50] sm:$0xff]
      %v898 = vld [vmem:[%s886 + $0x58] sm:$0xff]
      %v899 = vld [vmem:[%s886 + $0x60] sm:$0xff]
      %v900 = vld [vmem:[%s886 + $0x68] sm:$0xff]
      %v901 = vld [vmem:[%s886 + $0x70] sm:$0xff]
      %v902 = vld [vmem:[%s886 + $0x78] sm:$0xff]
      %903 = vmatprep.subr.mxu0 0.0
      %904 = vmatpush1.msra.mxu0 %v887
      %905 = vmatprep.subr.mxu0 0.0
      %906 = vmatpush1.msra.mxu0 %v888
      %907 = vmatprep.subr.mxu0 0.0
      %908 = vmatpush1.msra.mxu0 %v889
      %909 = vmatprep.subr.mxu0 0.0
      %910 = vmatpush1.msra.mxu0 %v890
      %911 = vmatprep.subr.mxu0 0.0
      %912 = vmatpush1.msra.mxu0 %v891
      %913 = vmatprep.subr.mxu0 0.0
      %914 = vmatpush1.msra.mxu0 %v892
      %915 = vmatprep.subr.mxu0 0.0
      %916 = vmatpush1.msra.mxu0 %v893
      %917 = vmatprep.subr.mxu0 0.0
      %918 = vmatpush1.msra.mxu0 %v894
      %919 = vmatprep.subr.mxu0 0.0
      %920 = vmatpush1.msra.mxu0 %v895
      %921 = vmatprep.subr.mxu0 0.0
      %922 = vmatpush1.msra.mxu0 %v896
      %923 = vmatprep.subr.mxu0 0.0
      %924 = vmatpush1.msra.mxu0 %v897
      %925 = vmatprep.subr.mxu0 0.0
      %926 = vmatpush1.msra.mxu0 %v898
      %927 = vmatprep.subr.mxu0 0.0
      %928 = vmatpush1.msra.mxu0 %v899
      %929 = vmatprep.subr.mxu0 0.0
      %930 = vmatpush1.msra.mxu0 %v900
      %931 = vmatprep.subr.mxu0 0.0
      %932 = vmatpush1.msra.mxu0 %v901
      %933 = vmatprep.subr.mxu0 0.0
      %934 = vmatpush1.msra.mxu0 %v902
      %935 = vmatprep.subr.mxu0 0.0
      %936 = vmatpush1.msra.mxu0 0.0
      %937 = vmatprep.subr.mxu0 0.0
      %938 = vmatpush1.msra.mxu0 0.0
      %939 = vmatprep.subr.mxu0 0.0
      %940 = vmatpush1.msra.mxu0 0.0
      %941 = vmatprep.subr.mxu0 0.0
      %942 = vmatpush1.msra.mxu0 0.0
      %943 = vmatprep.subr.mxu0 0.0
      %944 = vmatpush1.msra.mxu0 0.0
      %945 = vmatprep.subr.mxu0 0.0
      %946 = vmatpush1.msra.mxu0 0.0
      %947 = vmatprep.subr.mxu0 0.0
      %948 = vmatpush1.msra.mxu0 0.0
      %949 = vmatprep.subr.mxu0 0.0
      %950 = vmatpush1.msra.mxu0 0.0
      %951 = vmatprep.subr.mxu0 0.0
      %952 = vmatpush1.msra.mxu0 0.0
      %953 = vmatprep.subr.mxu0 0.0
      %954 = vmatpush1.msra.mxu0 0.0
      %955 = vmatprep.subr.mxu0 0.0
      %956 = vmatpush1.msra.mxu0 0.0
      %957 = vmatprep.subr.mxu0 0.0
      %958 = vmatpush1.msra.mxu0 0.0
      %959 = vmatprep.subr.mxu0 0.0
      %960 = vmatpush1.msra.mxu0 0.0
      %961 = vmatprep.subr.mxu0 0.0
      %962 = vmatpush1.msra.mxu0 0.0
      %963 = vmatprep.subr.mxu0 0.0
      %964 = vmatpush1.msra.mxu0 0.0
      %965 = vmatprep.subr.mxu0 0.0
      %966 = vmatpush1.msra.mxu0 0.0
      %967 = vmatprep.mubr.f32.mxu0 0.0
      %968 = vmatmul.mubr.f32.gmra.mrb[0].mxu0 %v808
      %v969 = vpop.f32.mrb[0].mxu0
      %v970 = vadd.f32 0.0, %v969
      %v971 = vpop.f32.mrb[0].mxu0
      %972 = vmatprep.mubr.f32.mxu0 0.0
      %973 = vmatmul.mubr.f32.gmra.mrb[0].mxu0 %v813
      %v974 = vpop.f32.mrb[0].mxu0
      %v975 = vadd.f32 0.0, %v974
      %v976 = vpop.f32.mrb[0].mxu0
      %977 = vmatprep.mubr.f32.mxu0 0.0
      %978 = vmatmul.mubr.f32.gmra.mrb[0].mxu0 %v818
      %v979 = vpop.f32.mrb[0].mxu0
      %v980 = vadd.f32 0.0, %v979
      %v981 = vpop.f32.mrb[0].mxu0
      %982 = vmatprep.mubr.f32.mxu0 0.0
      %983 = vmatmul.mubr.f32.gmra.mrb[0].mxu0 %v823
      %v984 = vpop.f32.mrb[0].mxu0
      %v985 = vadd.f32 0.0, %v984
      %v986 = vpop.f32.mrb[0].mxu0
      %987 = vmatprep.mubr.f32.mxu0 0.0
      %988 = vmatmul.mubr.f32.gmra.mrb[0].mxu0 %v828
      %v989 = vpop.f32.mrb[0].mxu0
      %v990 = vadd.f32 0.0, %v989
      %v991 = vpop.f32.mrb[0].mxu0
      %992 = vmatprep.mubr.f32.mxu0 0.0
      %993 = vmatmul.mubr.f32.gmra.mrb[0].mxu0 %v833
      %v994 = vpop.f32.mrb[0].mxu0
      %v995 = vadd.f32 0.0, %v994
      %v996 = vpop.f32.mrb[0].mxu0
      %997 = vmatprep.mubr.f32.mxu0 0.0
      %998 = vmatmul.mubr.f32.gmra.mrb[0].mxu0 %v838
      %v999 = vpop.f32.mrb[0].mxu0
      %v1000 = vadd.f32 0.0, %v999
      %v1001 = vpop.f32.mrb[0].mxu0
      %1002 = vmatprep.mubr.f32.mxu0 0.0
      %1003 = vmatmul.mubr.f32.gmra.mrb[0].mxu0 %v843
      %v1004 = vpop.f32.mrb[0].mxu0
      %v1005 = vadd.f32 0.0, %v1004
      %v1006 = vpop.f32.mrb[0].mxu0
      %1007 = vmatprep.mubr.f32.mxu0 0.0
      %1008 = vmatmul.mubr.f32.gmra.mrb[0].mxu0 %v848
      %v1009 = vpop.f32.mrb[0].mxu0
      %v1010 = vadd.f32 0.0, %v1009
      %v1011 = vpop.f32.mrb[0].mxu0
      %1012 = vmatprep.mubr.f32.mxu0 0.0
      %1013 = vmatmul.mubr.f32.gmra.mrb[0].mxu0 %v853
      %v1014 = vpop.f32.mrb[0].mxu0
      %v1015 = vadd.f32 0.0, %v1014
      %v1016 = vpop.f32.mrb[0].mxu0
      %1017 = vmatprep.mubr.f32.mxu0 0.0
      %1018 = vmatmul.mubr.f32.gmra.mrb[0].mxu0 %v858
      %v1019 = vpop.f32.mrb[0].mxu0
      %v1020 = vadd.f32 0.0, %v1019
      %v1021 = vpop.f32.mrb[0].mxu0
      %1022 = vmatprep.mubr.f32.mxu0 0.0
      %1023 = vmatmul.mubr.f32.gmra.mrb[0].mxu0 %v863
      %v1024 = vpop.f32.mrb[0].mxu0
      %v1025 = vadd.f32 0.0, %v1024
      %v1026 = vpop.f32.mrb[0].mxu0
      %1027 = vmatprep.mubr.f32.mxu0 0.0
      %1028 = vmatmul.mubr.f32.gmra.mrb[0].mxu0 %v868
      %v1029 = vpop.f32.mrb[0].mxu0
      %v1030 = vadd.f32 0.0, %v1029
      %v1031 = vpop.f32.mrb[0].mxu0
      %1032 = vmatprep.mubr.f32.mxu0 0.0
      %1033 = vmatmul.mubr.f32.gmra.mrb[0].mxu0 %v873
      %v1034 = vpop.f32.mrb[0].mxu0
      %v1035 = vadd.f32 0.0, %v1034
      %v1036 = vpop.f32.mrb[0].mxu0
      %1037 = vmatprep.mubr.f32.mxu0 0.0
      %1038 = vmatmul.mubr.f32.gmra.mrb[0].mxu0 %v878
      %v1039 = vpop.f32.mrb[0].mxu0
      %v1040 = vadd.f32 0.0, %v1039
      %v1041 = vpop.f32.mrb[0].mxu0
      %1042 = vmatprep.mubr.f32.mxu0 0.0
      %1043 = vmatmul.mubr.f32.gmra.mrb[0].mxu0 %v883
      %v1044 = vpop.f32.mrb[0].mxu0
      %v1045 = vadd.f32 0.0, %v1044
      %v1046 = vpop.f32.mrb[0].mxu0
      %1047 = vdwg.mxu0
      %v1048 = vadd.f32 %v708, %v970
      %v1049 = vadd.f32 %v709, %v975
      %v1050 = vadd.f32 %v710, %v980
      %v1051 = vadd.f32 %v711, %v985
      %v1052 = vadd.f32 %v712, %v990
      %v1053 = vadd.f32 %v713, %v995
      %v1054 = vadd.f32 %v714, %v1000
      %v1055 = vadd.f32 %v715, %v1005
      %v1056 = vadd.f32 %v716, %v1010
      %v1057 = vadd.f32 %v717, %v1015
      %v1058 = vadd.f32 %v718, %v1020
      %v1059 = vadd.f32 %v719, %v1025
      %v1060 = vadd.f32 %v720, %v1030
      %v1061 = vadd.f32 %v721, %v1035
      %v1062 = vadd.f32 %v722, %v1040
      %v1063 = vadd.f32 %v723, %v1045
      %v1064 = vmax.f32 %v1048, 0.0
      %v1065 = vmax.f32 %v1049, 0.0
      %v1066 = vmax.f32 %v1050, 0.0
      %v1067 = vmax.f32 %v1051, 0.0
      %v1068 = vmax.f32 %v1052, 0.0
      %v1069 = vmax.f32 %v1053, 0.0
      %v1070 = vmax.f32 %v1054, 0.0
      %v1071 = vmax.f32 %v1055, 0.0
      %v1072 = vmax.f32 %v1056, 0.0
      %v1073 = vmax.f32 %v1057, 0.0
      %v1074 = vmax.f32 %v1058, 0.0
      %v1075 = vmax.f32 %v1059, 0.0
      %v1076 = vmax.f32 %v1060, 0.0
      %v1077 = vmax.f32 %v1061, 0.0
      %v1078 = vmax.f32 %v1062, 0.0
      %v1079 = vmax.f32 %v1063, 0.0
      %1080 = vst [vmem:[%s199] sm:$0xff] %v1064
      %1081 = vst [vmem:[%s199 + $0x8] sm:$0xff] %v1065
      %1082 = vst [vmem:[%s199 + $0x10] sm:$0xff] %v1066
      %1083 = vst [vmem:[%s199 + $0x18] sm:$0xff] %v1067
      %1084 = vst [vmem:[%s199 + $0x20] sm:$0xff] %v1068
      %1085 = vst [vmem:[%s199 + $0x28] sm:$0xff] %v1069
      %1086 = vst [vmem:[%s199 + $0x30] sm:$0xff] %v1070
      %1087 = vst [vmem:[%s199 + $0x38] sm:$0xff] %v1071
      %1088 = vst [vmem:[%s199 + $0x40] sm:$0xff] %v1072
      %1089 = vst [vmem:[%s199 + $0x48] sm:$0xff] %v1073
      %1090 = vst [vmem:[%s199 + $0x50] sm:$0xff] %v1074
      %1091 = vst [vmem:[%s199 + $0x58] sm:$0xff] %v1075
      %1092 = vst [vmem:[%s199 + $0x60] sm:$0xff] %v1076
      %1093 = vst [vmem:[%s199 + $0x68] sm:$0xff] %v1077
      %1094 = vst [vmem:[%s199 + $0x70] sm:$0xff] %v1078
      %1095 = vst [vmem:[%s199 + $0x78] sm:$0xff] %v1079
      %s1096 = smul.u32 16, %s15
      %p1097 = scmp.lt.s32.totalorder %s1096, 31
      %s1098 = scalar_select %p1097, %s1096, 31
      %s1099 = smul.addr %s1098, 8
      %s1100 = scalar_lea.vmem %s4, %s1099
      // Predicated region
      $region37: #{alt_filter.3} parent=35 // pred_check
        %p1101 = pneg %p122
      $region38: #{alt_filter.3} parent=35 // pred_check_branch
        %1103 = sbr.rel (%p1101) target = $region40
      $region39: #{alt_filter.3} parent=35 // pred_region
        %s1104 = smul.u32 16, %s15
      $region40: #{alt_filter.3} parent=35 // pred_fallthru
        _
    $region36: #{alt_filter.3} parent=5 // pred_fallthru
      _
    %p1105 = scmp.le.s32.totalorder 2, %s10
    // Predicated region
    $region41: #{alt_filter.3} parent=5 // pred_check
      %p1106 = pneg %p1105
    $region42: #{alt_filter.3} parent=5 // pred_check_branch
      %1108 = sbr.rel (%p1106) target = $region44
    $region43: #{alt_filter.3} parent=5 // pred_region
      %s1109 = ssub.s32 %s10, 2
      // Predicated region
      $region45: #{alt_filter.3} parent=43 // pred_check
        %p1110 = pneg %p128
      $region46: #{alt_filter.3} parent=43 // pred_check_branch
        %1112 = sbr.rel (%p1110) target = $region48
      $region47: #{alt_filter.3} parent=43 // pred_region
        %s1113 = smul.u32 16, %s16
        %p1114 = scmp.lt.s32.totalorder %s1113, 31
        %s1115 = scalar_select %p1114, %s1113, 31
        %s1116 = smul.addr %s1115, 8
        %s1117 = scalar_lea.vmem %s4, %s1116
      $region48: #{alt_filter.3} parent=43 // pred_fallthru
        _
    $region44: #{alt_filter.3} parent=5 // pred_fallthru
      _
  $region6: #{alt_filter.3} parent=0 // loop_footer
    %s14 = sadd.s32 1, %s10
  $region7: #{alt_filter.3} parent=0 // loop_footer_branch
    %9 = sbr.rel target = $region3
  $region8: #{alt_filter.3} parent=0 // loop_exit
    _

</llo_original>
